<compile_context>
chip_gen: v6e
topology: v6e:2x2x1
jax: 0.10.0
libtpu: 0.0.40
codegen_flags: <defaults>
</compile_context>

<pallas_src>
import functools

import jax
import jax.numpy as jnp
from jax.experimental import pallas as pl
from jax.experimental.pallas import tpu as pltpu

LANE = 128


def _round_up(n, m):
    return ((n + m - 1) // m) * m


# ----------------------------------------------------------------------------
# Kernel 1: fused 3x3 conv (9 accumulated in-kernel dots) + bias + ReLU +
# global average pool.  One grid step per image.
# ----------------------------------------------------------------------------
def _conv_gap_kernel(x_ref, w_ref, b_ref, o_ref, *, H, W, C):
    # x_ref: (HW2P, C) flattened zero-padded NHWC image (VMEM resident), where
    # HW2P >= (H+2)*(W+2) + 2 so every shifted window below is in-bounds.
    Wp = W + 2
    rows = H * Wp                      # conv outputs + 2 masked "wrap" cols/row
    x = x_ref[...]
    w = w_ref[...]                     # (9*C, CP) im2col-layout weights
    CP = w.shape[1]

    acc = jnp.zeros((rows, CP), jnp.float32)
    for di in range(3):
        for dj in range(3):
            t = di * 3 + dj
            r0 = di * Wp + dj          # static contiguous window, no reshape
            acc = acc + jnp.dot(x[r0:r0 + rows, :],
                                w[t * C:(t + 1) * C, :],
                                preferred_element_type=jnp.float32)

    y = jnp.maximum(acc + b_ref[...], 0.0)                        # bias + ReLU
    # Mask out the 2-wide pad ("wrap") columns before pooling.
    col_idx = jax.lax.broadcasted_iota(jnp.int32, (rows, 1), 0) % Wp
    y = jnp.where(col_idx < W, y, 0.0)
    o_ref[...] = jnp.sum(y, axis=0, keepdims=True) * (1.0 / (H * W))


def conv_gap_features(x_nchw, params):
    """x_nchw: (N, C, H, W) -> pooled conv features (N, CP) with CP lane-padded."""
    N, C, H, W = x_nchw.shape
    c_mid = params["conv_w"].shape[0]
    CP = _round_up(c_mid, LANE)

    # NCHW -> NHWC (channels on lanes), 'same' zero pad, flatten spatial grid.
    x_pad = jnp.pad(jnp.transpose(x_nchw, (0, 2, 3, 1)),
                    ((0, 0), (1, 1), (1, 1), (0, 0)))
    HW2 = (H + 2) * (W + 2)
    # Max window start offset is 2*(W+2)+2 and window length is H*(W+2), so the
    # flat buffer needs >= HW2 + 2 rows; round to a sublane multiple.
    HW2P = _round_up(HW2 + 2, 8)
    x_flat = jnp.pad(x_pad.reshape(N, HW2, C),
                     ((0, 0), (0, HW2P - HW2), (0, 0)))

    # PyTorch conv weight (o, c, di, dj) -> im2col layout ((di*3+dj)*C + c, o),
    # lane-padded output channels; bias lane-padded with zeros (ReLU(0)=0).
    w = jnp.transpose(params["conv_w"], (2, 3, 1, 0)).reshape(9 * C, c_mid)
    w = jnp.pad(w, ((0, 0), (0, CP - c_mid)))
    b = jnp.pad(params["conv_b"], (0, CP - c_mid)).reshape(1, CP)

    rows = H * (W + 2)
    flops = 2 * N * rows * (9 * C) * CP
    bytes_accessed = 4 * (x_flat.size + w.size + b.size + N * CP)

    out = pl.pallas_call(
        functools.partial(_conv_gap_kernel, H=H, W=W, C=C),
        grid_spec=pltpu.PrefetchScalarGridSpec(
            num_scalar_prefetch=0,
            grid=(N,),
            in_specs=[
                pl.BlockSpec((None, HW2P, C), lambda n: (n, 0, 0)),
                pl.BlockSpec((9 * C, CP), lambda n: (0, 0)),   # weight resident
                pl.BlockSpec((1, CP), lambda n: (0, 0)),       # bias resident
            ],
            out_specs=pl.BlockSpec((None, 1, CP), lambda n: (n, 0, 0)),
        ),
        out_shape=jax.ShapeDtypeStruct((N, 1, CP), jnp.float32),
        compiler_params=pltpu.CompilerParams(
            dimension_semantics=("parallel",)),
        cost_estimate=pl.CostEstimate(
            flops=flops, transcendentals=0, bytes_accessed=bytes_accessed),
    )(x_flat, w, b)
    return out.reshape(N, CP)


# ----------------------------------------------------------------------------
# Kernel 2: fused MLP head (fc1+ReLU, fc2) + InfoNCE logits epilogue.
# Inputs: stacked features [q; k] of shape (2B, CP).  Output: (B, 2B) logits.
# ----------------------------------------------------------------------------
def _head_infonce_kernel(f_ref, w1_ref, b1_ref, w2_ref, b2_ref, o_ref, *,
                         batch, temperature):
    f = f_ref[...]
    h = jnp.dot(f, w1_ref[...], preferred_element_type=jnp.float32) + b1_ref[...]
    h = jnp.maximum(h, 0.0)
    z = jnp.dot(h, w2_ref[...], preferred_element_type=jnp.float32) + b2_ref[...]

    q = z[:batch, :]
    k = z[batch:, :]

    # F.normalize(dim=1, eps=1e-12): v / max(||v||, eps) == v * rsqrt(max(||v||^2, eps^2))
    qn = q * jax.lax.rsqrt(jnp.maximum(jnp.sum(q * q, axis=1, keepdims=True), 1e-24))
    kn = k * jax.lax.rsqrt(jnp.maximum(jnp.sum(k * k, axis=1, keepdims=True), 1e-24))

    dims = (((1,), (1,)), ((), ()))   # contract last dims -> no XLU transpose
    qq = jax.lax.dot_general(qn, qn, dims, preferred_element_type=jnp.float32)
    kk = jax.lax.dot_general(kn, kn, dims, preferred_element_type=jnp.float32)
    qk = jax.lax.dot_general(qn, kn, dims, preferred_element_type=jnp.float32)

    # pos = mean over the off-diagonal of qq; diag(qq)[i] == ||qn_i||^2.
    diag_qq = jnp.sum(qn * qn, axis=1, keepdims=True)
    pos = (jnp.sum(qq, axis=1, keepdims=True) - diag_qq) * (1.0 / (batch - 1))

    # kk with its diagonal removed, original column order preserved.
    row = jax.lax.broadcasted_iota(jnp.int32, (batch, batch - 1), 0)
    col = jax.lax.broadcasted_iota(jnp.int32, (batch, batch - 1), 1)
    kk_off = jnp.where(col < row, kk[:, :batch - 1], kk[:, 1:])

    inv_t = 1.0 / temperature
    # Direct stores into the pre-allocated logits buffer; no concatenate.
    o_ref[:, 0:1] = pos * inv_t
    o_ref[:, 1:batch] = kk_off * inv_t
    o_ref[:, batch:] = qk * inv_t


def head_and_infonce(feats, params, batch, temperature):
    CP = feats.shape[1]
    c_mid, hidden = params["fc1_w"].shape
    proj = params["fc2_w"].shape[1]
    HP = _round_up(hidden, LANE)
    PP = _round_up(proj, LANE)

    w1 = jnp.pad(params["fc1_w"], ((0, CP - c_mid), (0, HP - hidden)))
    b1 = jnp.pad(params["fc1_b"], (0, HP - hidden)).reshape(1, HP)
    w2 = jnp.pad(params["fc2_w"], ((0, HP - hidden), (0, PP - proj)))
    b2 = jnp.pad(params["fc2_b"], (0, PP - proj)).reshape(1, PP)

    return pl.pallas_call(
        functools.partial(_head_infonce_kernel, batch=batch,
                          temperature=float(temperature)),
        out_shape=jax.ShapeDtypeStruct((batch, 2 * batch), jnp.float32),
    )(feats, w1, b1, w2, b2)


# ----------------------------------------------------------------------------
# Full SimCLR_Model.forward(x_k, x_q) -> (logits, labels)
# ----------------------------------------------------------------------------
def simclr_forward(x_k, x_q, params, temperature=0.07):
    B = x_q.shape[0]
    if B < 2:
        raise ValueError("SimCLR InfoNCE requires batch size >= 2")
    # Shared encoder: run both views through one batched conv+GAP kernel call.
    x_all = jnp.concatenate([x_q, x_k], axis=0)          # rows [0:B)=q, [B:2B)=k
    feats = conv_gap_features(x_all, params)             # (2B, CP)
    logits = head_and_infonce(feats, params, B, temperature)   # (B, 2B)
    labels = jnp.zeros((logits.shape[0],), dtype=jnp.int32)    # torch.long -> int32
    return logits, labels


def init_params(key, c_in=4, c_mid=8, hidden=32, proj=16):
    ks = jax.random.split(key, 4)
    return {
        "conv_w": 0.1 * jax.random.normal(ks[0], (c_mid, c_in, 3, 3), jnp.float32),
        "conv_b": 0.01 * jax.random.normal(ks[1], (c_mid,), jnp.float32),
        "fc1_w": 0.1 * jax.random.normal(ks[2], (c_mid, hidden), jnp.float32),
        "fc1_b": jnp.zeros((hidden,), jnp.float32),
        "fc2_w": 0.1 * jax.random.normal(ks[3], (hidden, proj), jnp.float32),
        "fc2_b": jnp.zeros((proj,), jnp.float32),
    }


if __name__ == "__main__":
    key = jax.random.PRNGKey(0)
    k_params, k_xk, k_xq = jax.random.split(key, 3)

    B, C, H, W = 2, 4, 16, 16
    x_k = jax.random.normal(k_xk, (B, C, H, W), jnp.float32)
    x_q = jax.random.normal(k_xq, (B, C, H, W), jnp.float32)
    params = init_params(k_params, c_in=C)

    logits, labels = jax.jit(simclr_forward)(x_k, x_q, params)
    jax.block_until_ready((logits, labels))

    assert logits.shape == (B, 2 * B), logits.shape
    assert labels.shape == (B,), labels.shape
    assert bool(jnp.all(jnp.isfinite(logits)))
    print("KERNEL_OK")
</pallas_src>

<mosaic_0001>
module attributes {stable_mosaic.version = 11 : i64} {
  func.func @_conv_gap_kernel(%arg0: i32, %arg1: memref<1x328x4xf32, #tpu.memory_space<vmem>>, %arg2: memref<36x128xf32, #tpu.memory_space<vmem>>, %arg3: memref<1x128xf32, #tpu.memory_space<vmem>>, %arg4: memref<1x1x128xf32, #tpu.memory_space<vmem>>) attributes {dimension_semantics = [#tpu.dimension_semantics<parallel>], iteration_bounds = array<i64: 4>, scalar_prefetch = 0 : i64, scratch_operands = 0 : i64, tpu.core_type = #tpu.core_type<tc>, window_params = [{transform_indices = @transform_0, window_bounds = array<i64: 1, 328, 4>}, {pipeline_mode = #tpu.pipeline_mode<synchronous>, transform_indices = @transform_1, window_bounds = array<i64: 36, 128>}, {pipeline_mode = #tpu.pipeline_mode<synchronous>, transform_indices = @transform_2, window_bounds = array<i64: 1, 128>}, {transform_indices = @transform_3, window_bounds = array<i64: 1, 1, 128>}]} {
    %c0 = arith.constant 0 : index
    %c0_0 = arith.constant 0 : index
    %c0_1 = arith.constant 0 : index
    %0 = vector.load %arg1[%c0, %c0_0, %c0_1] : memref<1x328x4xf32, #tpu.memory_space<vmem>>, vector<1x328x4xf32>
    %1 = vector.shape_cast %0 : vector<1x328x4xf32> to vector<328x4xf32>
    %c0_2 = arith.constant 0 : index
    %c0_3 = arith.constant 0 : index
    %2 = vector.load %arg2[%c0_2, %c0_3] : memref<36x128xf32, #tpu.memory_space<vmem>>, vector<36x128xf32>
    %cst = arith.constant 0.000000e+00 : f32
    %3 = vector.broadcast %cst : f32 to vector<288x128xf32>
    %4 = vector.extract_strided_slice %1 {offsets = [0, 0], sizes = [288, 4], strides = [1, 1]} : vector<328x4xf32> to vector<288x4xf32>
    %5 = vector.extract_strided_slice %2 {offsets = [0, 0], sizes = [4, 128], strides = [1, 1]} : vector<36x128xf32> to vector<4x128xf32>
    %cst_4 = arith.constant dense<0.000000e+00> : vector<288x128xf32>
    %6 = tpu.matmul %4, %5, %cst_4 {dimension_numbers = #tpu.dot_dimension_numbers<[1], [0], [0], [1], [0, 0, 1, 1], [], []>} : vector<288x4xf32>, vector<4x128xf32>, vector<288x128xf32> -> vector<288x128xf32>
    %7 = arith.addf %3, %6 : vector<288x128xf32>
    %8 = vector.extract_strided_slice %1 {offsets = [1, 0], sizes = [288, 4], strides = [1, 1]} : vector<328x4xf32> to vector<288x4xf32>
    %9 = vector.extract_strided_slice %2 {offsets = [4, 0], sizes = [4, 128], strides = [1, 1]} : vector<36x128xf32> to vector<4x128xf32>
    %cst_5 = arith.constant dense<0.000000e+00> : vector<288x128xf32>
    %10 = tpu.matmul %8, %9, %cst_5 {dimension_numbers = #tpu.dot_dimension_numbers<[1], [0], [0], [1], [0, 0, 1, 1], [], []>} : vector<288x4xf32>, vector<4x128xf32>, vector<288x128xf32> -> vector<288x128xf32>
    %11 = arith.addf %7, %10 : vector<288x128xf32>
    %12 = vector.extract_strided_slice %1 {offsets = [2, 0], sizes = [288, 4], strides = [1, 1]} : vector<328x4xf32> to vector<288x4xf32>
    %13 = vector.extract_strided_slice %2 {offsets = [8, 0], sizes = [4, 128], strides = [1, 1]} : vector<36x128xf32> to vector<4x128xf32>
    %cst_6 = arith.constant dense<0.000000e+00> : vector<288x128xf32>
    %14 = tpu.matmul %12, %13, %cst_6 {dimension_numbers = #tpu.dot_dimension_numbers<[1], [0], [0], [1], [0, 0, 1, 1], [], []>} : vector<288x4xf32>, vector<4x128xf32>, vector<288x128xf32> -> vector<288x128xf32>
    %15 = arith.addf %11, %14 : vector<288x128xf32>
    %16 = vector.extract_strided_slice %1 {offsets = [18, 0], sizes = [288, 4], strides = [1, 1]} : vector<328x4xf32> to vector<288x4xf32>
    %17 = vector.extract_strided_slice %2 {offsets = [12, 0], sizes = [4, 128], strides = [1, 1]} : vector<36x128xf32> to vector<4x128xf32>
    %cst_7 = arith.constant dense<0.000000e+00> : vector<288x128xf32>
    %18 = tpu.matmul %16, %17, %cst_7 {dimension_numbers = #tpu.dot_dimension_numbers<[1], [0], [0], [1], [0, 0, 1, 1], [], []>} : vector<288x4xf32>, vector<4x128xf32>, vector<288x128xf32> -> vector<288x128xf32>
    %19 = arith.addf %15, %18 : vector<288x128xf32>
    %20 = vector.extract_strided_slice %1 {offsets = [19, 0], sizes = [288, 4], strides = [1, 1]} : vector<328x4xf32> to vector<288x4xf32>
    %21 = vector.extract_strided_slice %2 {offsets = [16, 0], sizes = [4, 128], strides = [1, 1]} : vector<36x128xf32> to vector<4x128xf32>
    %cst_8 = arith.constant dense<0.000000e+00> : vector<288x128xf32>
    %22 = tpu.matmul %20, %21, %cst_8 {dimension_numbers = #tpu.dot_dimension_numbers<[1], [0], [0], [1], [0, 0, 1, 1], [], []>} : vector<288x4xf32>, vector<4x128xf32>, vector<288x128xf32> -> vector<288x128xf32>
    %23 = arith.addf %19, %22 : vector<288x128xf32>
    %24 = vector.extract_strided_slice %1 {offsets = [20, 0], sizes = [288, 4], strides = [1, 1]} : vector<328x4xf32> to vector<288x4xf32>
    %25 = vector.extract_strided_slice %2 {offsets = [20, 0], sizes = [4, 128], strides = [1, 1]} : vector<36x128xf32> to vector<4x128xf32>
    %cst_9 = arith.constant dense<0.000000e+00> : vector<288x128xf32>
    %26 = tpu.matmul %24, %25, %cst_9 {dimension_numbers = #tpu.dot_dimension_numbers<[1], [0], [0], [1], [0, 0, 1, 1], [], []>} : vector<288x4xf32>, vector<4x128xf32>, vector<288x128xf32> -> vector<288x128xf32>
    %27 = arith.addf %23, %26 : vector<288x128xf32>
    %28 = vector.extract_strided_slice %1 {offsets = [36, 0], sizes = [288, 4], strides = [1, 1]} : vector<328x4xf32> to vector<288x4xf32>
    %29 = vector.extract_strided_slice %2 {offsets = [24, 0], sizes = [4, 128], strides = [1, 1]} : vector<36x128xf32> to vector<4x128xf32>
    %cst_10 = arith.constant dense<0.000000e+00> : vector<288x128xf32>
    %30 = tpu.matmul %28, %29, %cst_10 {dimension_numbers = #tpu.dot_dimension_numbers<[1], [0], [0], [1], [0, 0, 1, 1], [], []>} : vector<288x4xf32>, vector<4x128xf32>, vector<288x128xf32> -> vector<288x128xf32>
    %31 = arith.addf %27, %30 : vector<288x128xf32>
    %32 = vector.extract_strided_slice %1 {offsets = [37, 0], sizes = [288, 4], strides = [1, 1]} : vector<328x4xf32> to vector<288x4xf32>
    %33 = vector.extract_strided_slice %2 {offsets = [28, 0], sizes = [4, 128], strides = [1, 1]} : vector<36x128xf32> to vector<4x128xf32>
    %cst_11 = arith.constant dense<0.000000e+00> : vector<288x128xf32>
    %34 = tpu.matmul %32, %33, %cst_11 {dimension_numbers = #tpu.dot_dimension_numbers<[1], [0], [0], [1], [0, 0, 1, 1], [], []>} : vector<288x4xf32>, vector<4x128xf32>, vector<288x128xf32> -> vector<288x128xf32>
    %35 = arith.addf %31, %34 : vector<288x128xf32>
    %36 = vector.extract_strided_slice %1 {offsets = [38, 0], sizes = [288, 4], strides = [1, 1]} : vector<328x4xf32> to vector<288x4xf32>
    %37 = vector.extract_strided_slice %2 {offsets = [32, 0], sizes = [4, 128], strides = [1, 1]} : vector<36x128xf32> to vector<4x128xf32>
    %cst_12 = arith.constant dense<0.000000e+00> : vector<288x128xf32>
    %38 = tpu.matmul %36, %37, %cst_12 {dimension_numbers = #tpu.dot_dimension_numbers<[1], [0], [0], [1], [0, 0, 1, 1], [], []>} : vector<288x4xf32>, vector<4x128xf32>, vector<288x128xf32> -> vector<288x128xf32>
    %39 = arith.addf %35, %38 : vector<288x128xf32>
    %c0_13 = arith.constant 0 : index
    %c0_14 = arith.constant 0 : index
    %40 = vector.load %arg3[%c0_13, %c0_14] : memref<1x128xf32, #tpu.memory_space<vmem>>, vector<1x128xf32>
    %41 = vector.broadcast %40 : vector<1x128xf32> to vector<288x128xf32>
    %42 = arith.addf %39, %41 : vector<288x128xf32>
    %cst_15 = arith.constant 0.000000e+00 : f32
    %43 = vector.broadcast %cst_15 : f32 to vector<288x128xf32>
    %44 = arith.maximumf %42, %43 : vector<288x128xf32>
    %45 = tpu.iota {dimensions = array<i32: 0>} : vector<288x1xi32>
    %c18_i32 = arith.constant 18 : i32
    %c0_i32 = arith.constant 0 : i32
    %46 = arith.cmpi eq, %c18_i32, %c0_i32 : i32
    %c1_i32 = arith.constant 1 : i32
    %47 = arith.select %46, %c1_i32, %c18_i32 : i32
    %48 = vector.broadcast %47 : i32 to vector<288x1xi32>
    %49 = arith.remsi %45, %48 : vector<288x1xi32>
    %c0_i32_16 = arith.constant 0 : i32
    %50 = vector.broadcast %c0_i32_16 : i32 to vector<288x1xi32>
    %51 = arith.cmpi ne, %49, %50 : vector<288x1xi32>
    %c0_i32_17 = arith.constant 0 : i32
    %52 = vector.broadcast %c0_i32_17 : i32 to vector<288x1xi32>
    %53 = arith.cmpi slt, %49, %52 : vector<288x1xi32>
    %c0_i32_18 = arith.constant 0 : i32
    %54 = arith.cmpi slt, %47, %c0_i32_18 : i32
    %55 = vector.broadcast %54 : i1 to vector<288x1xi1>
    %56 = vector.broadcast %55 : vector<288x1xi1> to vector<288x1xi1>
    %57 = arith.xori %53, %56 : vector<288x1xi1>
    %58 = arith.andi %57, %51 : vector<288x1xi1>
    %59 = vector.broadcast %47 : i32 to vector<288x1xi32>
    %60 = arith.addi %49, %59 : vector<288x1xi32>
    %61 = arith.select %58, %60, %49 : vector<288x1xi1>, vector<288x1xi32>
    %c16_i32 = arith.constant 16 : i32
    %62 = vector.broadcast %c16_i32 : i32 to vector<288x1xi32>
    %63 = arith.cmpi slt, %61, %62 : vector<288x1xi32>
    %cst_19 = arith.constant 0.000000e+00 : f32
    %64 = vector.shape_cast %63 : vector<288x1xi1> to vector<288x1xi1>
    %65 = vector.broadcast %64 : vector<288x1xi1> to vector<288x128xi1>
    %66 = vector.broadcast %cst_19 : f32 to vector<288x128xf32>
    %67 = arith.select %65, %44, %66 : vector<288x128xi1>, vector<288x128xf32>
    %cst_20 = arith.constant dense<0.000000e+00> : vector<128xf32>
    %68 = vector.multi_reduction <add>, %67, %cst_20 [0] : vector<288x128xf32> to vector<128xf32>
    %69 = vector.shape_cast %68 : vector<128xf32> to vector<1x128xf32>
    %cst_21 = arith.constant 3.906250e-03 : f32
    %70 = vector.broadcast %cst_21 : f32 to vector<1x128xf32>
    %71 = arith.mulf %69, %70 : vector<1x128xf32>
    %c0_22 = arith.constant 0 : index
    %c0_23 = arith.constant 0 : index
    %c0_24 = arith.constant 0 : index
    %72 = vector.load %arg4[%c0_22, %c0_23, %c0_24] : memref<1x1x128xf32, #tpu.memory_space<vmem>>, vector<1x1x128xf32>
    %73 = vector.shape_cast %72 : vector<1x1x128xf32> to vector<1x128xf32>
    %74 = vector.shape_cast %71 : vector<1x128xf32> to vector<1x1x128xf32>
    tpu.vector_store %arg4[%c0_22, %c0_23, %c0_24], %74 {strides = array<i32>} : memref<1x1x128xf32, #tpu.memory_space<vmem>>, vector<1x1x128xf32>,
    return
  }
  func.func @transform_0(%arg0: i32) -> (i32, i32, i32) {
    %c0_i32 = arith.constant 0 : i32
    %c0_i32_0 = arith.constant 0 : i32
    %c0_i32_1 = arith.constant 0 : i32
    return %arg0, %c0_i32, %c0_i32_0 : i32, i32, i32
  }
  func.func @transform_1(%arg0: i32) -> (i32, i32) {
    %c0_i32 = arith.constant 0 : i32
    %c0_i32_0 = arith.constant 0 : i32
    %c0_i32_1 = arith.constant 0 : i32
    return %c0_i32, %c0_i32_0 : i32, i32
  }
  func.func @transform_2(%arg0: i32) -> (i32, i32) {
    %c0_i32 = arith.constant 0 : i32
    %c0_i32_0 = arith.constant 0 : i32
    %c0_i32_1 = arith.constant 0 : i32
    return %c0_i32, %c0_i32_0 : i32, i32
  }
  func.func @transform_3(%arg0: i32) -> (i32, i32, i32) {
    %c0_i32 = arith.constant 0 : i32
    %c0_i32_0 = arith.constant 0 : i32
    %c0_i32_1 = arith.constant 0 : i32
    return %arg0, %c0_i32, %c0_i32_0 : i32, i32, i32
  }
}

module attributes {stable_mosaic.version = 11 : i64} {
  func.func @_head_infonce_kernel(%arg0: memref<4x128xf32, #tpu.memory_space<vmem>>, %arg1: memref<128x128xf32, #tpu.memory_space<vmem>>, %arg2: memref<1x128xf32, #tpu.memory_space<vmem>>, %arg3: memref<128x128xf32, #tpu.memory_space<vmem>>, %arg4: memref<1x128xf32, #tpu.memory_space<vmem>>, %arg5: memref<2x4xf32, #tpu.memory_space<vmem>>) attributes {dimension_semantics = [], scalar_prefetch = 0 : i64, scratch_operands = 0 : i64, tpu.core_type = #tpu.core_type<tc>} {
    %c0 = arith.constant 0 : index
    %c0_0 = arith.constant 0 : index
    %0 = vector.load %arg0[%c0, %c0_0] : memref<4x128xf32, #tpu.memory_space<vmem>>, vector<4x128xf32>
    %c0_1 = arith.constant 0 : index
    %c0_2 = arith.constant 0 : index
    %1 = vector.load %arg1[%c0_1, %c0_2] : memref<128x128xf32, #tpu.memory_space<vmem>>, vector<128x128xf32>
    %cst = arith.constant dense<0.000000e+00> : vector<4x128xf32>
    %2 = tpu.matmul %0, %1, %cst {dimension_numbers = #tpu.dot_dimension_numbers<[1], [0], [0], [1], [0, 0, 1, 1], [], []>} : vector<4x128xf32>, vector<128x128xf32>, vector<4x128xf32> -> vector<4x128xf32>
    %c0_3 = arith.constant 0 : index
    %c0_4 = arith.constant 0 : index
    %3 = vector.load %arg2[%c0_3, %c0_4] : memref<1x128xf32, #tpu.memory_space<vmem>>, vector<1x128xf32>
    %4 = vector.broadcast %3 : vector<1x128xf32> to vector<4x128xf32>
    %5 = arith.addf %2, %4 : vector<4x128xf32>
    %cst_5 = arith.constant 0.000000e+00 : f32
    %6 = vector.broadcast %cst_5 : f32 to vector<4x128xf32>
    %7 = arith.maximumf %5, %6 : vector<4x128xf32>
    %c0_6 = arith.constant 0 : index
    %c0_7 = arith.constant 0 : index
    %8 = vector.load %arg3[%c0_6, %c0_7] : memref<128x128xf32, #tpu.memory_space<vmem>>, vector<128x128xf32>
    %cst_8 = arith.constant dense<0.000000e+00> : vector<4x128xf32>
    %9 = tpu.matmul %7, %8, %cst_8 {dimension_numbers = #tpu.dot_dimension_numbers<[1], [0], [0], [1], [0, 0, 1, 1], [], []>} : vector<4x128xf32>, vector<128x128xf32>, vector<4x128xf32> -> vector<4x128xf32>
    %c0_9 = arith.constant 0 : index
    %c0_10 = arith.constant 0 : index
    %10 = vector.load %arg4[%c0_9, %c0_10] : memref<1x128xf32, #tpu.memory_space<vmem>>, vector<1x128xf32>
    %11 = vector.broadcast %10 : vector<1x128xf32> to vector<4x128xf32>
    %12 = arith.addf %9, %11 : vector<4x128xf32>
    %13 = vector.extract_strided_slice %12 {offsets = [0, 0], sizes = [2, 128], strides = [1, 1]} : vector<4x128xf32> to vector<2x128xf32>
    %14 = vector.extract_strided_slice %12 {offsets = [2, 0], sizes = [2, 128], strides = [1, 1]} : vector<4x128xf32> to vector<2x128xf32>
    %15 = arith.mulf %13, %13 : vector<2x128xf32>
    %cst_11 = arith.constant dense<0.000000e+00> : vector<2xf32>
    %16 = vector.multi_reduction <add>, %15, %cst_11 [1] : vector<2x128xf32> to vector<2xf32>
    %17 = vector.shape_cast %16 : vector<2xf32> to vector<2x1xf32>
    %cst_12 = arith.constant 1.000000e-24 : f32
    %18 = vector.broadcast %cst_12 : f32 to vector<2x1xf32>
    %19 = arith.maximumf %17, %18 : vector<2x1xf32>
    %20 = math.rsqrt %19 : vector<2x1xf32>
    %21 = vector.broadcast %20 : vector<2x1xf32> to vector<2x128xf32>
    %22 = arith.mulf %13, %21 : vector<2x128xf32>
    %23 = arith.mulf %14, %14 : vector<2x128xf32>
    %cst_13 = arith.constant dense<0.000000e+00> : vector<2xf32>
    %24 = vector.multi_reduction <add>, %23, %cst_13 [1] : vector<2x128xf32> to vector<2xf32>
    %25 = vector.shape_cast %24 : vector<2xf32> to vector<2x1xf32>
    %cst_14 = arith.constant 1.000000e-24 : f32
    %26 = vector.broadcast %cst_14 : f32 to vector<2x1xf32>
    %27 = arith.maximumf %25, %26 : vector<2x1xf32>
    %28 = math.rsqrt %27 : vector<2x1xf32>
    %29 = vector.broadcast %28 : vector<2x1xf32> to vector<2x128xf32>
    %30 = arith.mulf %14, %29 : vector<2x128xf32>
    %cst_15 = arith.constant dense<0.000000e+00> : vector<2x2xf32>
    %31 = tpu.matmul %22, %22, %cst_15 {dimension_numbers = #tpu.dot_dimension_numbers<[1], [1], [0], [0], [0, 0, 1, 0], [], []>} : vector<2x128xf32>, vector<2x128xf32>, vector<2x2xf32> -> vector<2x2xf32>
    %cst_16 = arith.constant dense<0.000000e+00> : vector<2x2xf32>
    %32 = tpu.matmul %30, %30, %cst_16 {dimension_numbers = #tpu.dot_dimension_numbers<[1], [1], [0], [0], [0, 0, 1, 0], [], []>} : vector<2x128xf32>, vector<2x128xf32>, vector<2x2xf32> -> vector<2x2xf32>
    %cst_17 = arith.constant dense<0.000000e+00> : vector<2x2xf32>
    %33 = tpu.matmul %22, %30, %cst_17 {dimension_numbers = #tpu.dot_dimension_numbers<[1], [1], [0], [0], [0, 0, 1, 0], [], []>} : vector<2x128xf32>, vector<2x128xf32>, vector<2x2xf32> -> vector<2x2xf32>
    %34 = arith.mulf %22, %22 : vector<2x128xf32>
    %cst_18 = arith.constant dense<0.000000e+00> : vector<2xf32>
    %35 = vector.multi_reduction <add>, %34, %cst_18 [1] : vector<2x128xf32> to vector<2xf32>
    %36 = vector.shape_cast %35 : vector<2xf32> to vector<2x1xf32>
    %cst_19 = arith.constant dense<0.000000e+00> : vector<2xf32>
    %37 = vector.multi_reduction <add>, %31, %cst_19 [1] : vector<2x2xf32> to vector<2xf32>
    %38 = vector.shape_cast %37 : vector<2xf32> to vector<2x1xf32>
    %39 = arith.subf %38, %36 : vector<2x1xf32>
    %cst_20 = arith.constant 1.000000e+00 : f32
    %40 = vector.broadcast %cst_20 : f32 to vector<2x1xf32>
    %41 = arith.mulf %39, %40 : vector<2x1xf32>
    %42 = tpu.iota {dimensions = array<i32: 0>} : vector<2x1xi32>
    %43 = tpu.iota {dimensions = array<i32: 1>} : vector<2x1xi32>
    %44 = arith.cmpi slt, %43, %42 : vector<2x1xi32>
    %45 = vector.extract_strided_slice %32 {offsets = [0, 0], sizes = [2, 1], strides = [1, 1]} : vector<2x2xf32> to vector<2x1xf32>
    %46 = vector.extract_strided_slice %32 {offsets = [0, 1], sizes = [2, 1], strides = [1, 1]} : vector<2x2xf32> to vector<2x1xf32>
    %47 = arith.select %44, %45, %46 : vector<2x1xi1>, vector<2x1xf32>
    %cst_21 = arith.constant 14.2857141 : f32
    %48 = vector.broadcast %cst_21 : f32 to vector<2x1xf32>
    %49 = arith.mulf %41, %48 : vector<2x1xf32>
    %c0_22 = arith.constant 0 : index
    %c0_23 = arith.constant 0 : index
    %50 = vector.load %arg5[%c0_22, %c0_23] : memref<2x4xf32, #tpu.memory_space<vmem>>, vector<2x1xf32>
    tpu.vector_store %arg5[%c0_22, %c0_23], %49 {strides = array<i32>} : memref<2x4xf32, #tpu.memory_space<vmem>>, vector<2x1xf32>,
    %cst_24 = arith.constant 14.2857141 : f32
    %51 = vector.broadcast %cst_24 : f32 to vector<2x1xf32>
    %52 = arith.mulf %47, %51 : vector<2x1xf32>
    %c0_25 = arith.constant 0 : index
    %c1 = arith.constant 1 : index
    %53 = vector.load %arg5[%c0_25, %c1] : memref<2x4xf32, #tpu.memory_space<vmem>>, vector<2x1xf32>
    tpu.vector_store %arg5[%c0_25, %c1], %52 {strides = array<i32>} : memref<2x4xf32, #tpu.memory_space<vmem>>, vector<2x1xf32>,
    %cst_26 = arith.constant 14.2857141 : f32
    %54 = vector.broadcast %cst_26 : f32 to vector<2x2xf32>
    %55 = arith.mulf %33, %54 : vector<2x2xf32>
    %c0_27 = arith.constant 0 : index
    %c2 = arith.constant 2 : index
    %56 = vector.load %arg5[%c0_27, %c2] : memref<2x4xf32, #tpu.memory_space<vmem>>, vector<2x2xf32>
    tpu.vector_store %arg5[%c0_27, %c2], %55 {strides = array<i32>} : memref<2x4xf32, #tpu.memory_space<vmem>>, vector<2x2xf32>,
    return
  }
}

</mosaic_0001>

<llo_original>
// kernel: simclr_forward.3
$region0: #{simclr_forward.3}
  #allocation0 [shape = 'u32[]', space=smem, size = 0x4, offset = 0x4, fixed_abs, tag = 'smem constant byte address 0x4 - core index']
  #allocation1 [shape = 'u32[144,128]{1,0:T(1,128)}', space=vmem, size = 0x12000, scoped, tag = 'internal scratch']
  %s0 = inlined_call_operand.vmem [shape: f32[4,128], index: 0, kind: input, shape index: {}]
  %s1 = inlined_call_operand.vmem [shape: f32[128,128], index: 1, kind: input, shape index: {}]
  %s2 = inlined_call_operand.vmem [shape: f32[1,128], index: 2, kind: input, shape index: {}]
  %s3 = inlined_call_operand.vmem [shape: f32[128,128], index: 3, kind: input, shape index: {}]
  %s4 = inlined_call_operand.vmem [shape: f32[1,128], index: 4, kind: input, shape index: {}]
  %s5 = inlined_call_operand.hbm [shape: f32[2,4], index: 5, kind: output, shape index: {}]
  %s6 = sld [smem:[#allocation0]]
  $region30: #{simclr_forward.3} parent=0
    _
  %s8 = ssub.s32 1, %s6
  %s9 = scalar_select 0, %s8, %s6
  $region1: #{simclr_forward.3} parent=0
    #allocation2 [shape = 'u8[1024]{0}', space=vmem, size = 0x400, scoped, tag = 'output window, operand 0, single buffered']
    #allocation3 [shape = 's32[1]{0}', space=sflag, size = 0x4, scoped, tag = 'scoped memory for simclr_forward.3']
    %10 = vsyncpa [#allocation3], 0
    // Predicated region
    $region2: #{simclr_forward.3} parent=1 // pred_check
      _
    $region3: #{simclr_forward.3} parent=1 // pred_check_branch
      %12 = sbr.rel (0) target = $region5
    $region4: #{simclr_forward.3} parent=1 // pred_region
      _
    $region5: #{simclr_forward.3} parent=1 // pred_fallthru
      _
    // Predicated region
    $region6: #{simclr_forward.3} parent=1 // pred_check
      _
    $region7: #{simclr_forward.3} parent=1 // pred_check_branch
      %14 = sbr.rel (0) target = $region9
    $region8: #{simclr_forward.3} parent=1 // pred_region
      _
    $region9: #{simclr_forward.3} parent=1 // pred_fallthru
      _
    // Predicated region
    $region10: #{simclr_forward.3} parent=1 // pred_check
      _
    $region11: #{simclr_forward.3} parent=1 // pred_check_branch
      %16 = sbr.rel (0) target = $region13
    $region12: #{simclr_forward.3} parent=1 // pred_region
      _
    $region13: #{simclr_forward.3} parent=1 // pred_fallthru
      _
    // Predicated region
    $region14: #{simclr_forward.3} parent=1 // pred_check
      _
    $region15: #{simclr_forward.3} parent=1 // pred_check_branch
      %18 = sbr.rel (0) target = $region17
    $region16: #{simclr_forward.3} parent=1 // pred_region
      _
    $region17: #{simclr_forward.3} parent=1 // pred_fallthru
      _
    // Predicated region
    $region18: #{simclr_forward.3} parent=1 // pred_check
      _
    $region19: #{simclr_forward.3} parent=1 // pred_check_branch
      %20 = sbr.rel (0) target = $region21
    $region20: #{simclr_forward.3} parent=1 // pred_region
      _
    $region21: #{simclr_forward.3} parent=1 // pred_fallthru
      _
    %v21 = vld [vmem:[%s0] sm:$0xf]
    %v22 = vld [vmem:[%s1] sm:$0xff]
    %v23 = vld [vmem:[%s1 + $0x8] sm:$0xff]
    %v24 = vld [vmem:[%s1 + $0x10] sm:$0xff]
    %v25 = vld [vmem:[%s1 + $0x18] sm:$0xff]
    %v26 = vld [vmem:[%s1 + $0x20] sm:$0xff]
    %v27 = vld [vmem:[%s1 + $0x28] sm:$0xff]
    %v28 = vld [vmem:[%s1 + $0x30] sm:$0xff]
    %v29 = vld [vmem:[%s1 + $0x38] sm:$0xff]
    %v30 = vld [vmem:[%s1 + $0x40] sm:$0xff]
    %v31 = vld [vmem:[%s1 + $0x48] sm:$0xff]
    %v32 = vld [vmem:[%s1 + $0x50] sm:$0xff]
    %v33 = vld [vmem:[%s1 + $0x58] sm:$0xff]
    %v34 = vld [vmem:[%s1 + $0x60] sm:$0xff]
    %v35 = vld [vmem:[%s1 + $0x68] sm:$0xff]
    %v36 = vld [vmem:[%s1 + $0x70] sm:$0xff]
    %v37 = vld [vmem:[%s1 + $0x78] sm:$0xff]
    %v38 = vld [vmem:[%s2] sm:$0x1]
    %v40 = vlaneseq
    %v41 = vshrl.u32 %v40, 7
    %v42 = vsub.s32 0, %v41
    %v43 = vrot.slane %v38, %v42
    %45 = vmatprep.subr.mxu0 0.0
    %46 = vmatpush1.msra.mxu0 %v37
    %47 = vmatprep.subr.mxu0 0.0
    %48 = vmatpush1.msra.mxu0 %v36
    %49 = vmatprep.subr.mxu0 0.0
    %50 = vmatpush1.msra.mxu0 %v35
    %51 = vmatprep.subr.mxu0 0.0
    %52 = vmatpush1.msra.mxu0 %v34
    %53 = vmatprep.subr.mxu0 0.0
    %54 = vmatpush1.msra.mxu0 %v33
    %55 = vmatprep.subr.mxu0 0.0
    %56 = vmatpush1.msra.mxu0 %v32
    %57 = vmatprep.subr.mxu0 0.0
    %58 = vmatpush1.msra.mxu0 %v31
    %59 = vmatprep.subr.mxu0 0.0
    %60 = vmatpush1.msra.mxu0 %v30
    %61 = vmatprep.subr.mxu0 0.0
    %62 = vmatpush1.msra.mxu0 %v29
    %63 = vmatprep.subr.mxu0 0.0
    %64 = vmatpush1.msra.mxu0 %v28
    %65 = vmatprep.subr.mxu0 0.0
    %66 = vmatpush1.msra.mxu0 %v27
    %67 = vmatprep.subr.mxu0 0.0
    %68 = vmatpush1.msra.mxu0 %v26
    %69 = vmatprep.subr.mxu0 0.0
    %70 = vmatpush1.msra.mxu0 %v25
    %71 = vmatprep.subr.mxu0 0.0
    %72 = vmatpush1.msra.mxu0 %v24
    %73 = vmatprep.subr.mxu0 0.0
    %74 = vmatpush1.msra.mxu0 %v23
    %75 = vmatprep.subr.mxu0 0.0
    %76 = vmatpush1.msra.mxu0 %v22
    %77 = vmatprep.subr.mxu0 0.0
    %78 = vmatpush2.msra.mxu0 0.0
    %79 = vmatprep.subr.mxu0 0.0
    %80 = vmatpush2.msra.mxu0 0.0
    %81 = vmatprep.subr.mxu0 0.0
    %82 = vmatpush2.msra.mxu0 0.0
    %83 = vmatprep.subr.mxu0 0.0
    %84 = vmatpush2.msra.mxu0 0.0
    %85 = vmatprep.subr.mxu0 0.0
    %86 = vmatpush2.msra.mxu0 0.0
    %87 = vmatprep.subr.mxu0 0.0
    %88 = vmatpush2.msra.mxu0 0.0
    %89 = vmatprep.subr.mxu0 0.0
    %90 = vmatpush2.msra.mxu0 0.0
    %91 = vmatprep.subr.mxu0 0.0
    %92 = vmatpush2.msra.mxu0 0.0
    %93 = vmatprep.subr.mxu0 0.0
    %94 = vmatpush2.msra.mxu0 0.0
    %95 = vmatprep.subr.mxu0 0.0
    %96 = vmatpush2.msra.mxu0 0.0
    %97 = vmatprep.subr.mxu0 0.0
    %98 = vmatpush2.msra.mxu0 0.0
    %99 = vmatprep.subr.mxu0 0.0
    %100 = vmatpush2.msra.mxu0 0.0
    %101 = vmatprep.subr.mxu0 0.0
    %102 = vmatpush2.msra.mxu0 0.0
    %103 = vmatprep.subr.mxu0 0.0
    %104 = vmatpush2.msra.mxu0 0.0
    %105 = vmatprep.subr.mxu0 0.0
    %106 = vmatpush2.msra.mxu0 0.0
    %107 = vmatprep.subr.mxu0 0.0
    %108 = vmatpush2.msra.mxu0 0.0
    %109 = vmatprep.mubr.f32.mxu0 0.0
    %110 = vmatmul.mubr.f32.gmra.mxu0 %v21
    %v111 = vpop.f32.mrf.mxu0
    %v112 = vadd.f32 %v43, %v111
    %v113 = vpop.f32.mrf.mxu0
    %114 = vdwg.mxu0
    %v115 = vmax.f32 %v112, 0.0
    %v116 = vld [vmem:[%s3] sm:$0xff]
    %v117 = vld [vmem:[%s3 + $0x8] sm:$0xff]
    %v118 = vld [vmem:[%s3 + $0x10] sm:$0xff]
    %v119 = vld [vmem:[%s3 + $0x18] sm:$0xff]
    %v120 = vld [vmem:[%s3 + $0x20] sm:$0xff]
    %v121 = vld [vmem:[%s3 + $0x28] sm:$0xff]
    %v122 = vld [vmem:[%s3 + $0x30] sm:$0xff]
    %v123 = vld [vmem:[%s3 + $0x38] sm:$0xff]
    %v124 = vld [vmem:[%s3 + $0x40] sm:$0xff]
    %v125 = vld [vmem:[%s3 + $0x48] sm:$0xff]
    %v126 = vld [vmem:[%s3 + $0x50] sm:$0xff]
    %v127 = vld [vmem:[%s3 + $0x58] sm:$0xff]
    %v128 = vld [vmem:[%s3 + $0x60] sm:$0xff]
    %v129 = vld [vmem:[%s3 + $0x68] sm:$0xff]
    %v130 = vld [vmem:[%s3 + $0x70] sm:$0xff]
    %v131 = vld [vmem:[%s3 + $0x78] sm:$0xff]
    %v132 = vld [vmem:[%s4] sm:$0x1]
    %v134 = vlaneseq
    %v135 = vshrl.u32 %v134, 7
    %v136 = vsub.s32 0, %v135
    %v137 = vrot.slane %v132, %v136
    %139 = vmatprep.subr.mxu0 0.0
    %140 = vmatpush1.msra.mxu0 %v131
    %141 = vmatprep.subr.mxu0 0.0
    %142 = vmatpush1.msra.mxu0 %v130
    %143 = vmatprep.subr.mxu0 0.0
    %144 = vmatpush1.msra.mxu0 %v129
    %145 = vmatprep.subr.mxu0 0.0
    %146 = vmatpush1.msra.mxu0 %v128
    %147 = vmatprep.subr.mxu0 0.0
    %148 = vmatpush1.msra.mxu0 %v127
    %149 = vmatprep.subr.mxu0 0.0
    %150 = vmatpush1.msra.mxu0 %v126
    %151 = vmatprep.subr.mxu0 0.0
    %152 = vmatpush1.msra.mxu0 %v125
    %153 = vmatprep.subr.mxu0 0.0
    %154 = vmatpush1.msra.mxu0 %v124
    %155 = vmatprep.subr.mxu0 0.0
    %156 = vmatpush1.msra.mxu0 %v123
    %157 = vmatprep.subr.mxu0 0.0
    %158 = vmatpush1.msra.mxu0 %v122
    %159 = vmatprep.subr.mxu0 0.0
    %160 = vmatpush1.msra.mxu0 %v121
    %161 = vmatprep.subr.mxu0 0.0
    %162 = vmatpush1.msra.mxu0 %v120
    %163 = vmatprep.subr.mxu0 0.0
    %164 = vmatpush1.msra.mxu0 %v119
    %165 = vmatprep.subr.mxu0 0.0
    %166 = vmatpush1.msra.mxu0 %v118
    %167 = vmatprep.subr.mxu0 0.0
    %168 = vmatpush1.msra.mxu0 %v117
    %169 = vmatprep.subr.mxu0 0.0
    %170 = vmatpush1.msra.mxu0 %v116
    %171 = vmatprep.subr.mxu0 0.0
    %172 = vmatpush2.msra.mxu0 0.0
    %173 = vmatprep.subr.mxu0 0.0
    %174 = vmatpush2.msra.mxu0 0.0
    %175 = vmatprep.subr.mxu0 0.0
    %176 = vmatpush2.msra.mxu0 0.0
    %177 = vmatprep.subr.mxu0 0.0
    %178 = vmatpush2.msra.mxu0 0.0
    %179 = vmatprep.subr.mxu0 0.0
    %180 = vmatpush2.msra.mxu0 0.0
    %181 = vmatprep.subr.mxu0 0.0
    %182 = vmatpush2.msra.mxu0 0.0
    %183 = vmatprep.subr.mxu0 0.0
    %184 = vmatpush2.msra.mxu0 0.0
    %185 = vmatprep.subr.mxu0 0.0
    %186 = vmatpush2.msra.mxu0 0.0
    %187 = vmatprep.subr.mxu0 0.0
    %188 = vmatpush2.msra.mxu0 0.0
    %189 = vmatprep.subr.mxu0 0.0
    %190 = vmatpush2.msra.mxu0 0.0
    %191 = vmatprep.subr.mxu0 0.0
    %192 = vmatpush2.msra.mxu0 0.0
    %193 = vmatprep.subr.mxu0 0.0
    %194 = vmatpush2.msra.mxu0 0.0
    %195 = vmatprep.subr.mxu0 0.0
    %196 = vmatpush2.msra.mxu0 0.0
    %197 = vmatprep.subr.mxu0 0.0
    %198 = vmatpush2.msra.mxu0 0.0
    %199 = vmatprep.subr.mxu0 0.0
    %200 = vmatpush2.msra.mxu0 0.0
    %201 = vmatprep.subr.mxu0 0.0
    %202 = vmatpush2.msra.mxu0 0.0
    %203 = vmatprep.mubr.f32.mxu0 0.0
    %204 = vmatmul.mubr.f32.gmra.mxu0 %v115
    %v205 = vpop.f32.mrf.mxu0
    %v206 = vadd.f32 %v137, %v205
    %v207 = vpop.f32.mrf.mxu0
    %208 = vdwg.mxu0
    %v209 = vmul.f32 %v206, %v206
    %vm210 = vcmask 1041408
    %v211 = vsel %vm210, %v209, 0.0
    %212 = vadd.xlane.f32.xlu0 %v211
    %v213 = vpop.xlane.xlu0 %212
    %v214 = vmax.f32 %v213, 1e-24
    %v215 = vrsqrt.pop %v214
    %v216 = vmul.f32 %v206, %v215
    %vm217 = vcmask 1043458
    %v218 = vsel %vm217, %v209, 0.0
    %219 = vadd.xlane.f32.xlu0 %v218
    %v220 = vpop.xlane.xlu0 %219
    %v221 = vmax.f32 %v220, 1e-24
    %v222 = vrsqrt.pop %v221
    %v223 = vmul.f32 %v206, %v222
    %224 = vmatprep.subr.mxu0 0.0
    %225 = vmatpush1.xpose.msra.mxu0 0.0
    %226 = vmatprep.subr.mxu0 0.0
    %227 = vmatpush1.xpose.msra.mxu0 0.0
    %228 = vmatprep.subr.mxu0 0.0
    %229 = vmatpush1.xpose.msra.mxu0 0.0
    %230 = vmatprep.subr.mxu0 0.0
    %231 = vmatpush1.xpose.msra.mxu0 0.0
    %232 = vmatprep.subr.mxu0 0.0
    %233 = vmatpush1.xpose.msra.mxu0 0.0
    %234 = vmatprep.subr.mxu0 0.0
    %235 = vmatpush1.xpose.msra.mxu0 0.0
    %236 = vmatprep.subr.mxu0 0.0
    %237 = vmatpush1.xpose.msra.mxu0 0.0
    %238 = vmatprep.subr.mxu0 0.0
    %239 = vmatpush1.xpose.msra.mxu0 0.0
    %240 = vmatprep.subr.mxu0 0.0
    %241 = vmatpush1.xpose.msra.mxu0 0.0
    %242 = vmatprep.subr.mxu0 0.0
    %243 = vmatpush1.xpose.msra.mxu0 0.0
    %244 = vmatprep.subr.mxu0 0.0
    %245 = vmatpush1.xpose.msra.mxu0 0.0
    %246 = vmatprep.subr.mxu0 0.0
    %247 = vmatpush1.xpose.msra.mxu0 0.0
    %248 = vmatprep.subr.mxu0 0.0
    %249 = vmatpush1.xpose.msra.mxu0 0.0
    %250 = vmatprep.subr.mxu0 0.0
    %251 = vmatpush1.xpose.msra.mxu0 0.0
    %252 = vmatprep.subr.mxu0 0.0
    %253 = vmatpush1.xpose.msra.mxu0 0.0
    %254 = vmatprep.subr.mxu0 0.0
    %255 = vmatpush1.xpose.msra.mxu0 %v216
    %256 = vmatprep.subr.mxu0 0.0
    %257 = vmatpush2.xpose.msra.mxu0 0.0
    %258 = vmatprep.subr.mxu0 0.0
    %259 = vmatpush2.xpose.msra.mxu0 0.0
    %260 = vmatprep.subr.mxu0 0.0
    %261 = vmatpush2.xpose.msra.mxu0 0.0
    %262 = vmatprep.subr.mxu0 0.0
    %263 = vmatpush2.xpose.msra.mxu0 0.0
    %264 = vmatprep.subr.mxu0 0.0
    %265 = vmatpush2.xpose.msra.mxu0 0.0
    %266 = vmatprep.subr.mxu0 0.0
    %267 = vmatpush2.xpose.msra.mxu0 0.0
    %268 = vmatprep.subr.mxu0 0.0
    %269 = vmatpush2.xpose.msra.mxu0 0.0
    %270 = vmatprep.subr.mxu0 0.0
    %271 = vmatpush2.xpose.msra.mxu0 0.0
    %272 = vmatprep.subr.mxu0 0.0
    %273 = vmatpush2.xpose.msra.mxu0 0.0
    %274 = vmatprep.subr.mxu0 0.0
    %275 = vmatpush2.xpose.msra.mxu0 0.0
    %276 = vmatprep.subr.mxu0 0.0
    %277 = vmatpush2.xpose.msra.mxu0 0.0
    %278 = vmatprep.subr.mxu0 0.0
    %279 = vmatpush2.xpose.msra.mxu0 0.0
    %280 = vmatprep.subr.mxu0 0.0
    %281 = vmatpush2.xpose.msra.mxu0 0.0
    %282 = vmatprep.subr.mxu0 0.0
    %283 = vmatpush2.xpose.msra.mxu0 0.0
    %284 = vmatprep.subr.mxu0 0.0
    %285 = vmatpush2.xpose.msra.mxu0 0.0
    %286 = vmatprep.subr.mxu0 0.0
    %287 = vmatpush2.xpose.msra.mxu0 0.0
    %288 = vmatprep.mubr.f32.mxu0 0.0
    %289 = vmatmul.mubr.f32.gmra.mxu0 %v216
    %v290 = vpop.f32.mrf.mxu0
    %v291 = vadd.f32 0.0, %v290
    %v292 = vpop.f32.mrf.mxu0
    %293 = vdwg.mxu0
    %v295 = vrot.slane %v223, 2
    %297 = vmatprep.subr.mxu0 0.0
    %298 = vmatpush1.xpose.msra.mxu0 0.0
    %299 = vmatprep.subr.mxu0 0.0
    %300 = vmatpush1.xpose.msra.mxu0 0.0
    %301 = vmatprep.subr.mxu0 0.0
    %302 = vmatpush1.xpose.msra.mxu0 0.0
    %303 = vmatprep.subr.mxu0 0.0
    %304 = vmatpush1.xpose.msra.mxu0 0.0
    %305 = vmatprep.subr.mxu0 0.0
    %306 = vmatpush1.xpose.msra.mxu0 0.0
    %307 = vmatprep.subr.mxu0 0.0
    %308 = vmatpush1.xpose.msra.mxu0 0.0
    %309 = vmatprep.subr.mxu0 0.0
    %310 = vmatpush1.xpose.msra.mxu0 0.0
    %311 = vmatprep.subr.mxu0 0.0
    %312 = vmatpush1.xpose.msra.mxu0 0.0
    %313 = vmatprep.subr.mxu0 0.0
    %314 = vmatpush1.xpose.msra.mxu0 0.0
    %315 = vmatprep.subr.mxu0 0.0
    %316 = vmatpush1.xpose.msra.mxu0 0.0
    %317 = vmatprep.subr.mxu0 0.0
    %318 = vmatpush1.xpose.msra.mxu0 0.0
    %319 = vmatprep.subr.mxu0 0.0
    %320 = vmatpush1.xpose.msra.mxu0 0.0
    %321 = vmatprep.subr.mxu0 0.0
    %322 = vmatpush1.xpose.msra.mxu0 0.0
    %323 = vmatprep.subr.mxu0 0.0
    %324 = vmatpush1.xpose.msra.mxu0 0.0
    %325 = vmatprep.subr.mxu0 0.0
    %326 = vmatpush1.xpose.msra.mxu0 0.0
    %327 = vmatprep.subr.mxu0 0.0
    %328 = vmatpush1.xpose.msra.mxu0 %v295
    %329 = vmatprep.subr.mxu0 0.0
    %330 = vmatpush2.xpose.msra.mxu0 0.0
    %331 = vmatprep.subr.mxu0 0.0
    %332 = vmatpush2.xpose.msra.mxu0 0.0
    %333 = vmatprep.subr.mxu0 0.0
    %334 = vmatpush2.xpose.msra.mxu0 0.0
    %335 = vmatprep.subr.mxu0 0.0
    %336 = vmatpush2.xpose.msra.mxu0 0.0
    %337 = vmatprep.subr.mxu0 0.0
    %338 = vmatpush2.xpose.msra.mxu0 0.0
    %339 = vmatprep.subr.mxu0 0.0
    %340 = vmatpush2.xpose.msra.mxu0 0.0
    %341 = vmatprep.subr.mxu0 0.0
    %342 = vmatpush2.xpose.msra.mxu0 0.0
    %343 = vmatprep.subr.mxu0 0.0
    %344 = vmatpush2.xpose.msra.mxu0 0.0
    %345 = vmatprep.subr.mxu0 0.0
    %346 = vmatpush2.xpose.msra.mxu0 0.0
    %347 = vmatprep.subr.mxu0 0.0
    %348 = vmatpush2.xpose.msra.mxu0 0.0
    %349 = vmatprep.subr.mxu0 0.0
    %350 = vmatpush2.xpose.msra.mxu0 0.0
    %351 = vmatprep.subr.mxu0 0.0
    %352 = vmatpush2.xpose.msra.mxu0 0.0
    %353 = vmatprep.subr.mxu0 0.0
    %354 = vmatpush2.xpose.msra.mxu0 0.0
    %355 = vmatprep.subr.mxu0 0.0
    %356 = vmatpush2.xpose.msra.mxu0 0.0
    %357 = vmatprep.subr.mxu0 0.0
    %358 = vmatpush2.xpose.msra.mxu0 0.0
    %359 = vmatprep.subr.mxu0 0.0
    %360 = vmatpush2.xpose.msra.mxu0 0.0
    %361 = vmatprep.mubr.f32.mxu0 0.0
    %362 = vmatmul.mubr.f32.gmra.mxu0 %v295
    %v363 = vpop.f32.mrf.mxu0
    %v364 = vadd.f32 0.0, %v363
    %v365 = vpop.f32.mrf.mxu0
    %366 = vdwg.mxu0
    %367 = vmatprep.subr.mxu0 0.0
    %368 = vmatpush1.xpose.msra.mxu0 0.0
    %369 = vmatprep.subr.mxu0 0.0
    %370 = vmatpush1.xpose.msra.mxu0 0.0
    %371 = vmatprep.subr.mxu0 0.0
    %372 = vmatpush1.xpose.msra.mxu0 0.0
    %373 = vmatprep.subr.mxu0 0.0
    %374 = vmatpush1.xpose.msra.mxu0 0.0
    %375 = vmatprep.subr.mxu0 0.0
    %376 = vmatpush1.xpose.msra.mxu0 0.0
    %377 = vmatprep.subr.mxu0 0.0
    %378 = vmatpush1.xpose.msra.mxu0 0.0
    %379 = vmatprep.subr.mxu0 0.0
    %380 = vmatpush1.xpose.msra.mxu0 0.0
    %381 = vmatprep.subr.mxu0 0.0
    %382 = vmatpush1.xpose.msra.mxu0 0.0
    %383 = vmatprep.subr.mxu0 0.0
    %384 = vmatpush1.xpose.msra.mxu0 0.0
    %385 = vmatprep.subr.mxu0 0.0
    %386 = vmatpush1.xpose.msra.mxu0 0.0
    %387 = vmatprep.subr.mxu0 0.0
    %388 = vmatpush1.xpose.msra.mxu0 0.0
    %389 = vmatprep.subr.mxu0 0.0
    %390 = vmatpush1.xpose.msra.mxu0 0.0
    %391 = vmatprep.subr.mxu0 0.0
    %392 = vmatpush1.xpose.msra.mxu0 0.0
    %393 = vmatprep.subr.mxu0 0.0
    %394 = vmatpush1.xpose.msra.mxu0 0.0
    %395 = vmatprep.subr.mxu0 0.0
    %396 = vmatpush1.xpose.msra.mxu0 0.0
    %397 = vmatprep.subr.mxu0 0.0
    %398 = vmatpush1.xpose.msra.mxu0 %v295
    %399 = vmatprep.subr.mxu0 0.0
    %400 = vmatpush2.xpose.msra.mxu0 0.0
    %401 = vmatprep.subr.mxu0 0.0
    %402 = vmatpush2.xpose.msra.mxu0 0.0
    %403 = vmatprep.subr.mxu0 0.0
    %404 = vmatpush2.xpose.msra.mxu0 0.0
    %405 = vmatprep.subr.mxu0 0.0
    %406 = vmatpush2.xpose.msra.mxu0 0.0
    %407 = vmatprep.subr.mxu0 0.0
    %408 = vmatpush2.xpose.msra.mxu0 0.0
    %409 = vmatprep.subr.mxu0 0.0
    %410 = vmatpush2.xpose.msra.mxu0 0.0
    %411 = vmatprep.subr.mxu0 0.0
    %412 = vmatpush2.xpose.msra.mxu0 0.0
    %413 = vmatprep.subr.mxu0 0.0
    %414 = vmatpush2.xpose.msra.mxu0 0.0
    %415 = vmatprep.subr.mxu0 0.0
    %416 = vmatpush2.xpose.msra.mxu0 0.0
    %417 = vmatprep.subr.mxu0 0.0
    %418 = vmatpush2.xpose.msra.mxu0 0.0
    %419 = vmatprep.subr.mxu0 0.0
    %420 = vmatpush2.xpose.msra.mxu0 0.0
    %421 = vmatprep.subr.mxu0 0.0
    %422 = vmatpush2.xpose.msra.mxu0 0.0
    %423 = vmatprep.subr.mxu0 0.0
    %424 = vmatpush2.xpose.msra.mxu0 0.0
    %425 = vmatprep.subr.mxu0 0.0
    %426 = vmatpush2.xpose.msra.mxu0 0.0
    %427 = vmatprep.subr.mxu0 0.0
    %428 = vmatpush2.xpose.msra.mxu0 0.0
    %429 = vmatprep.subr.mxu0 0.0
    %430 = vmatpush2.xpose.msra.mxu0 0.0
    %431 = vmatprep.mubr.f32.mxu0 0.0
    %432 = vmatmul.mubr.f32.gmra.mxu0 %v216
    %v433 = vpop.f32.mrf.mxu0
    %v434 = vadd.f32 0.0, %v433
    %v435 = vpop.f32.mrf.mxu0
    %436 = vdwg.mxu0
    %v437 = vmul.f32 %v216, %v216
    %v438 = vsel %vm210, %v437, 0.0
    %439 = vadd.xlane.f32.xlu0 %v438
    %v440 = vpop.xlane.xlu0 %439
    %vm441 = vcmask 9216
    %v442 = vsel %vm441, %v291, 0.0
    %443 = vadd.xlane.f32.xlu0 %v442
    %v444 = vpop.xlane.xlu0 %443
    %v445 = vsub.f32 %v444, %v440
    %v446 = vlaneseq
    %v447 = vshrl.u32 %v446, 7
    %v448 = vlaneseq
    %v449 = vand.u32 %v448, 127
    %vm450 = vcmp.lt.s32.totalorder %v449, %v447
    %452 = vrot.lane.b32.xlu0 %v364, 127
    %v453 = vpop.permute.xlu0 %452
    %v455 = vsel %vm450, %v364, %v453
    %v456 = vmul.f32 %v445, 14.285714
    %vm457 = vcmask 1024
    %458 = vst.msk [vmem:[#allocation2] sm:$0x3] %vm457, %v456
    %v459 = vmul.f32 %v455, 14.285714
    %461 = vrot.lane.b32.xlu0 %v459, 1
    %v462 = vpop.permute.xlu0 %461
    %vm464 = vcmask 9224
    %465 = vst.msk [vmem:[#allocation2] sm:$0x3] %vm464, %v462
    %v466 = vmul.f32 %v434, 14.285714
    %468 = vrot.lane.b32.xlu0 %v466, 2
    %v469 = vpop.permute.xlu0 %468
    %vm471 = vcmask 25616
    %472 = vst.msk [vmem:[#allocation2] sm:$0x3] %vm471, %v469
    // Predicated region
    $region22: #{simclr_forward.3} parent=1 // pred_check
      _
    $region23: #{simclr_forward.3} parent=1 // pred_check_branch
      %474 = sbr.rel (0) target = $region25
    $region24: #{simclr_forward.3} parent=1 // pred_region
      %s476 = ssub.s32 32, 32
      %477 = vsyncadd [#allocation3], %s476
      %s479 = sshll.u32 [#allocation2], 4
      %s480 = int_to_ptr.vmem [resolvable:$true] %s479
      %482 = dma.vmem_to_hbm [thread:$0]  %s480, 32, %s5, [#allocation3]
    $region25: #{simclr_forward.3} parent=1 // pred_fallthru
      _
    // Predicated region
    $region26: #{simclr_forward.3} parent=1 // pred_check
      _
    $region27: #{simclr_forward.3} parent=1 // pred_check_branch
      %484 = sbr.rel (0) target = $region29
    $region28: #{simclr_forward.3} parent=1 // pred_region
      %485 = dma.done [#allocation3], 32
    $region29: #{simclr_forward.3} parent=1 // pred_fallthru
      _
    %486 = vsyncpa [#allocation3], 1

// kernel: simclr_forward.2
$region0: #{simclr_forward.2}
  #allocation0 [shape = 'u32[]', space=smem, size = 0x4, offset = 0x4, fixed_abs, tag = 'smem constant byte address 0x4 - core index']
  #allocation1 [shape = 'u32[144,128]{1,0:T(1,128)}', space=vmem, size = 0x12000, scoped, tag = 'internal scratch']
  %s0 = inlined_call_operand.vmem [shape: f32[4,328,4], index: 0, kind: input, shape index: {}]
  %s1 = inlined_call_operand.vmem [shape: f32[36,128], index: 1, kind: input, shape index: {}]
  %s2 = inlined_call_operand.vmem [shape: f32[1,128], index: 2, kind: input, shape index: {}]
  %s3 = inlined_call_operand.vmem [shape: f32[4,1,128], index: 3, kind: output, shape index: {}]
  %s4 = sld [smem:[#allocation0]]
  $region45: #{simclr_forward.2} parent=0
    _
  %s6 = ssub.s32 1, %s4
  %s7 = scalar_select 0, %s6, %s4
  loop: start=0, step=1, limit=6
  $region2: #{simclr_forward.2} parent=0 // loop_pre_header
    _
  $region3: #{simclr_forward.2} parent=0 // loop_header
    %s9 = sphi 0, %s13
    %p10 = scmp.ge.s32.totalorder %s9, 6
    %s19 = sphi 0, %s21
    %s22 = sphi 0, %s19
    %s23 = sphi 0, %s22
    %s39 = sphi 0, %s23
    %s43 = sphi 0, %s43
    %s45 = sphi 0, %s43
    %s46 = sphi 0, %s45
    %s60 = sphi 0, %s46
    %s64 = sphi 0, %s64
    %s66 = sphi 0, %s64
    %s67 = sphi 0, %s66
    %s81 = sphi 0, %s67
    %s87 = sphi 0, %s89
    %s90 = sphi 0, %s87
    %s91 = sphi 0, %s90
    %s107 = sphi 0, %s91
  $region4: #{simclr_forward.2} parent=0 // loop_header_branch
    %12 = sbr.rel (%p10) target = $region8
  $region5: #{simclr_forward.2} parent=0 // loop_body
    %s14 = ssub.s32 %s9, 1
    %s15 = ssub.s32 %s9, 2
    %s16 = sadd.s32 %s9, 1
    %s17 = ssub.s32 %s9, %s16
    %p18 = scmp.eq.s32.totalorder %s17, 0
    %s20 = sadd.s32 %s19, 1
    %s21 = scalar_select %p18, %s19, %s20
    %p24 = pneg %p18
    %p25 = scmp.eq.s32.totalorder %s9, 3
    %p26 = por %p24, %p25
    %p27 = scmp.ne.s32.totalorder %s19, %s22
    %p28 = scmp.eq.s32.totalorder %s9, 0
    %p29 = por %p27, %p28
    %p30 = scmp.ne.s32.totalorder %s19, %s22
    %p31 = scmp.eq.s32.totalorder %s14, 3
    %p32 = por %p30, %p31
    %p33 = scmp.ne.s32.totalorder %s22, %s23
    %p34 = scmp.eq.s32.totalorder %s14, 0
    %p35 = por %p33, %p34
    %p36 = scmp.ne.s32.totalorder %s22, %s23
    %p37 = scmp.eq.s32.totalorder %s15, 3
    %p38 = por %p36, %p37
    %p40 = scmp.ne.s32.totalorder %s23, %s39
    %p41 = scmp.eq.s32.totalorder %s15, 0
    %p42 = por %p40, %p41
    %s44 = sadd.s32 %s43, 1
    %p47 = scmp.eq.s32.totalorder %s9, 3
    %p48 = scmp.ne.s32.totalorder %s43, %s45
    %p49 = scmp.eq.s32.totalorder %s9, 0
    %p50 = por %p48, %p49
    %p51 = scmp.ne.s32.totalorder %s43, %s45
    %p52 = scmp.eq.s32.totalorder %s14, 3
    %p53 = por %p51, %p52
    %p54 = scmp.ne.s32.totalorder %s45, %s46
    %p55 = scmp.eq.s32.totalorder %s14, 0
    %p56 = por %p54, %p55
    %p57 = scmp.ne.s32.totalorder %s45, %s46
    %p58 = scmp.eq.s32.totalorder %s15, 3
    %p59 = por %p57, %p58
    %p61 = scmp.ne.s32.totalorder %s46, %s60
    %p62 = scmp.eq.s32.totalorder %s15, 0
    %p63 = por %p61, %p62
    %s65 = sadd.s32 %s64, 1
    %p68 = scmp.eq.s32.totalorder %s9, 3
    %p69 = scmp.ne.s32.totalorder %s64, %s66
    %p70 = scmp.eq.s32.totalorder %s9, 0
    %p71 = por %p69, %p70
    %p72 = scmp.ne.s32.totalorder %s64, %s66
    %p73 = scmp.eq.s32.totalorder %s14, 3
    %p74 = por %p72, %p73
    %p75 = scmp.ne.s32.totalorder %s66, %s67
    %p76 = scmp.eq.s32.totalorder %s14, 0
    %p77 = por %p75, %p76
    %p78 = scmp.ne.s32.totalorder %s66, %s67
    %p79 = scmp.eq.s32.totalorder %s15, 3
    %p80 = por %p78, %p79
    %p82 = scmp.ne.s32.totalorder %s67, %s81
    %p83 = scmp.eq.s32.totalorder %s15, 0
    %p84 = por %p82, %p83
    %s85 = ssub.s32 %s9, %s16
    %p86 = scmp.eq.s32.totalorder %s85, 0
    %s88 = sadd.s32 %s87, 1
    %s89 = scalar_select %p86, %s87, %s88
    %p92 = pneg %p86
    %p93 = scmp.eq.s32.totalorder %s9, 3
    %p94 = por %p92, %p93
    %p95 = scmp.ne.s32.totalorder %s87, %s90
    %p96 = scmp.eq.s32.totalorder %s9, 0
    %p97 = por %p95, %p96
    %p98 = scmp.ne.s32.totalorder %s87, %s90
    %p99 = scmp.eq.s32.totalorder %s14, 3
    %p100 = por %p98, %p99
    %p101 = scmp.ne.s32.totalorder %s90, %s91
    %p102 = scmp.eq.s32.totalorder %s14, 0
    %p103 = por %p101, %p102
    %p104 = scmp.ne.s32.totalorder %s90, %s91
    %p105 = scmp.eq.s32.totalorder %s15, 3
    %p106 = por %p104, %p105
    %p108 = scmp.ne.s32.totalorder %s91, %s107
    %p109 = scmp.eq.s32.totalorder %s15, 0
    %p110 = por %p108, %p109
    %p111 = scmp.le.s32.totalorder 1, %s9
    %p112 = scmp.lt.s32.totalorder %s9, 5
    %p113 = pnand %p111, %p112
    %p114 = pneg %p113
    // Predicated region
    $region9: #{simclr_forward.2} parent=5 // pred_check
      _
    $region10: #{simclr_forward.2} parent=5 // pred_check_branch
      %116 = sbr.rel (%p113) target = $region12
    $region11: #{simclr_forward.2} parent=5 // pred_region
      %s117 = ssub.s32 %s9, 1
      // Predicated region
      $region13: #{simclr_forward.2} parent=11 // pred_check
        %p118 = pneg %p56
      $region14: #{simclr_forward.2} parent=11 // pred_check_branch
        %120 = sbr.rel (%p118) target = $region16
      $region15: #{simclr_forward.2} parent=11 // pred_region
        _
      $region16: #{simclr_forward.2} parent=11 // pred_fallthru
        _
      // Predicated region
      $region17: #{simclr_forward.2} parent=11 // pred_check
        %p121 = pneg %p77
      $region18: #{simclr_forward.2} parent=11 // pred_check_branch
        %123 = sbr.rel (%p121) target = $region20
      $region19: #{simclr_forward.2} parent=11 // pred_region
        _
      $region20: #{simclr_forward.2} parent=11 // pred_fallthru
        _
    $region12: #{simclr_forward.2} parent=5 // pred_fallthru
      _
    %p124 = scmp.lt.s32.totalorder %s9, 4
    // Predicated region
    $region21: #{simclr_forward.2} parent=5 // pred_check
      %p125 = pneg %p124
    $region22: #{simclr_forward.2} parent=5 // pred_check_branch
      %127 = sbr.rel (%p125) target = $region24
    $region23: #{simclr_forward.2} parent=5 // pred_region
      // Predicated region
      $region25: #{simclr_forward.2} parent=23 // pred_check
        %p128 = pneg %p29
      $region26: #{simclr_forward.2} parent=23 // pred_check_branch
        %130 = sbr.rel (%p128) target = $region28
      $region27: #{simclr_forward.2} parent=23 // pred_region
        %p131 = scmp.lt.s32.totalorder %s9, 3
        %s132 = scalar_select %p131, %s9, 3
        %s133 = smul.addr %s132, 41
        %s134 = smul.addr %s133, 8
        %s135 = scalar_lea.vmem %s0, %s134
      $region28: #{simclr_forward.2} parent=23 // pred_fallthru
        _
    $region24: #{simclr_forward.2} parent=5 // pred_fallthru
      _
    %p136 = scmp.le.s32.totalorder 1, %s9
    %p137 = scmp.lt.s32.totalorder %s9, 5
    %p138 = pnand %p136, %p137
    %p139 = pneg %p138
    // Predicated region
    $region29: #{simclr_forward.2} parent=5 // pred_check
      _
    $region30: #{simclr_forward.2} parent=5 // pred_check_branch
      %141 = sbr.rel (%p138) target = $region32
    $region31: #{simclr_forward.2} parent=5 // pred_region
      %s142 = ssub.s32 %s9, 1
      %p143 = scmp.lt.s32.totalorder %s14, 3
      %s144 = scalar_select %p143, %s14, 3
      %s145 = smul.addr %s144, 41
      %s146 = smul.addr %s145, 8
      %s147 = scalar_lea.vmem %s0, %s146
      %p148 = pneg %p35
      %p149 = pneg %p32
      %p150 = pneg %p56
      %p151 = pneg %p53
      %p152 = pneg %p77
      %p153 = pneg %p74
      %p154 = pneg %p103
      %p155 = pneg %p100
      %p156 = scmp.lt.s32.totalorder %s14, 3
      %s157 = scalar_select %p156, %s14, 3
      %s158 = scalar_lea.vmem %s3, %s157
      %p159 = scmp.lt.s32.totalorder %s14, 3
      %s160 = scalar_select %p159, %s14, 3
      %s161 = smul.addr %s160, 41
      %s162 = smul.addr %s161, 8
      %s163 = scalar_lea.vmem %s0, %s162
      %p164 = scmp.lt.s32.totalorder %s14, 3
      %s165 = scalar_select %p164, %s14, 3
      %s166 = scalar_lea.vmem %s3, %s165
      %v167 = vld [vmem:[%s163] sm:$0xff]
      %v168 = vld [vmem:[%s163 + $0x8] sm:$0xff]
      %v169 = vld [vmem:[%s163 + $0x10] sm:$0xff]
      %v170 = vld [vmem:[%s163 + $0x18] sm:$0xff]
      %v171 = vld [vmem:[%s163 + $0x20] sm:$0xff]
      %v172 = vld [vmem:[%s163 + $0x28] sm:$0xff]
      %v173 = vld [vmem:[%s163 + $0x30] sm:$0xff]
      %v174 = vld [vmem:[%s163 + $0x38] sm:$0xff]
      %v175 = vld [vmem:[%s163 + $0x40] sm:$0xff]
      %v176 = vld [vmem:[%s163 + $0x48] sm:$0xff]
      %v177 = vld [vmem:[%s163 + $0x50] sm:$0xff]
      %v178 = vld [vmem:[%s163 + $0x58] sm:$0xff]
      %v179 = vld [vmem:[%s163 + $0x60] sm:$0xff]
      %v180 = vld [vmem:[%s163 + $0x68] sm:$0xff]
      %v181 = vld [vmem:[%s163 + $0x70] sm:$0xff]
      %v182 = vld [vmem:[%s163 + $0x78] sm:$0xff]
      %v183 = vld [vmem:[%s163 + $0x80] sm:$0xff]
      %v184 = vld [vmem:[%s163 + $0x88] sm:$0xff]
      %v185 = vld [vmem:[%s163 + $0x90] sm:$0xff]
      %v186 = vld [vmem:[%s163 + $0x98] sm:$0xff]
      %v187 = vld [vmem:[%s163 + $0xa0] sm:$0xff]
      %v188 = vld [vmem:[%s163 + $0xa8] sm:$0xff]
      %v189 = vld [vmem:[%s163 + $0xb0] sm:$0xff]
      %v190 = vld [vmem:[%s163 + $0xb8] sm:$0xff]
      %v191 = vld [vmem:[%s163 + $0xc0] sm:$0xff]
      %v192 = vld [vmem:[%s163 + $0xc8] sm:$0xff]
      %v193 = vld [vmem:[%s163 + $0xd0] sm:$0xff]
      %v194 = vld [vmem:[%s163 + $0xd8] sm:$0xff]
      %v195 = vld [vmem:[%s163 + $0xe0] sm:$0xff]
      %v196 = vld [vmem:[%s163 + $0xe8] sm:$0xff]
      %v197 = vld [vmem:[%s163 + $0xf0] sm:$0xff]
      %v198 = vld [vmem:[%s163 + $0xf8] sm:$0xff]
      %v199 = vld [vmem:[%s163 + $0x100] sm:$0xff]
      %v200 = vld [vmem:[%s163 + $0x108] sm:$0xff]
      %v201 = vld [vmem:[%s163 + $0x110] sm:$0xff]
      %v202 = vld [vmem:[%s163 + $0x118] sm:$0xff]
      %v203 = vld [vmem:[%s163 + $0x120] sm:$0xff]
      %v204 = vld [vmem:[%s163 + $0x128] sm:$0xff]
      %v205 = vld [vmem:[%s163 + $0x130] sm:$0xff]
      %v206 = vld [vmem:[%s163 + $0x138] sm:$0xff]
      %v207 = vld [vmem:[%s163 + $0x140] sm:$0xff]
      %v208 = vld [vmem:[%s1] sm:$0xff]
      %v209 = vld [vmem:[%s1 + $0x8] sm:$0xff]
      %v210 = vld [vmem:[%s1 + $0x10] sm:$0xff]
      %v211 = vld [vmem:[%s1 + $0x18] sm:$0xff]
      %v212 = vld [vmem:[%s1 + $0x20] sm:$0xf]
      %vm250 = vcmask 1046528
      %v251 = vrot.slane %v167, 1
      %v252 = vrot.slane %v168, 1
      %v253 = vsel %vm250, %v251, %v252
      %v254 = vrot.slane %v169, 1
      %v255 = vsel %vm250, %v252, %v254
      %v256 = vrot.slane %v170, 1
      %v257 = vsel %vm250, %v254, %v256
      %v258 = vrot.slane %v171, 1
      %v259 = vsel %vm250, %v256, %v258
      %v260 = vrot.slane %v172, 1
      %v261 = vsel %vm250, %v258, %v260
      %v262 = vrot.slane %v173, 1
      %v263 = vsel %vm250, %v260, %v262
      %v264 = vrot.slane %v174, 1
      %v265 = vsel %vm250, %v262, %v264
      %v266 = vrot.slane %v175, 1
      %v267 = vsel %vm250, %v264, %v266
      %v268 = vrot.slane %v176, 1
      %v269 = vsel %vm250, %v266, %v268
      %v270 = vrot.slane %v177, 1
      %v271 = vsel %vm250, %v268, %v270
      %v272 = vrot.slane %v178, 1
      %v273 = vsel %vm250, %v270, %v272
      %v274 = vrot.slane %v179, 1
      %v275 = vsel %vm250, %v272, %v274
      %v276 = vrot.slane %v180, 1
      %v277 = vsel %vm250, %v274, %v276
      %v278 = vrot.slane %v181, 1
      %v279 = vsel %vm250, %v276, %v278
      %v280 = vrot.slane %v182, 1
      %v281 = vsel %vm250, %v278, %v280
      %v282 = vrot.slane %v183, 1
      %v283 = vsel %vm250, %v280, %v282
      %v284 = vrot.slane %v184, 1
      %v285 = vsel %vm250, %v282, %v284
      %v286 = vrot.slane %v185, 1
      %v287 = vsel %vm250, %v284, %v286
      %v288 = vrot.slane %v186, 1
      %v289 = vsel %vm250, %v286, %v288
      %v290 = vrot.slane %v187, 1
      %v291 = vsel %vm250, %v288, %v290
      %v292 = vrot.slane %v188, 1
      %v293 = vsel %vm250, %v290, %v292
      %v294 = vrot.slane %v189, 1
      %v295 = vsel %vm250, %v292, %v294
      %v296 = vrot.slane %v190, 1
      %v297 = vsel %vm250, %v294, %v296
      %v298 = vrot.slane %v191, 1
      %v299 = vsel %vm250, %v296, %v298
      %v300 = vrot.slane %v192, 1
      %v301 = vsel %vm250, %v298, %v300
      %v302 = vrot.slane %v193, 1
      %v303 = vsel %vm250, %v300, %v302
      %v304 = vrot.slane %v194, 1
      %v305 = vsel %vm250, %v302, %v304
      %v306 = vrot.slane %v195, 1
      %v307 = vsel %vm250, %v304, %v306
      %v308 = vrot.slane %v196, 1
      %v309 = vsel %vm250, %v306, %v308
      %v310 = vrot.slane %v197, 1
      %v311 = vsel %vm250, %v308, %v310
      %v312 = vrot.slane %v198, 1
      %v313 = vsel %vm250, %v310, %v312
      %v314 = vrot.slane %v199, 1
      %v315 = vsel %vm250, %v312, %v314
      %v316 = vrot.slane %v200, 1
      %v317 = vsel %vm250, %v314, %v316
      %v318 = vrot.slane %v201, 1
      %v319 = vsel %vm250, %v316, %v318
      %v320 = vrot.slane %v202, 1
      %v321 = vsel %vm250, %v318, %v320
      %v322 = vrot.slane %v203, 1
      %v323 = vsel %vm250, %v320, %v322
      %v325 = vrot.slane %v208, 4
      %vm326 = vcmask 31744
      %v327 = vsel %vm326, %v253, 0
      %v329 = vsel %vm326, %v255, 0
      %v331 = vsel %vm326, %v257, 0
      %v333 = vsel %vm326, %v259, 0
      %v335 = vsel %vm326, %v261, 0
      %v337 = vsel %vm326, %v263, 0
      %v339 = vsel %vm326, %v265, 0
      %v341 = vsel %vm326, %v267, 0
      %v343 = vsel %vm326, %v269, 0
      %v345 = vsel %vm326, %v271, 0
      %v347 = vsel %vm326, %v273, 0
      %v349 = vsel %vm326, %v275, 0
      %v351 = vsel %vm326, %v277, 0
      %v353 = vsel %vm326, %v279, 0
      %v355 = vsel %vm326, %v281, 0
      %v357 = vsel %vm326, %v283, 0
      %v359 = vsel %vm326, %v285, 0
      %v361 = vsel %vm326, %v287, 0
      %v363 = vsel %vm326, %v289, 0
      %v365 = vsel %vm326, %v291, 0
      %v367 = vsel %vm326, %v293, 0
      %v369 = vsel %vm326, %v295, 0
      %v371 = vsel %vm326, %v297, 0
      %v373 = vsel %vm326, %v299, 0
      %v375 = vsel %vm326, %v301, 0
      %v377 = vsel %vm326, %v303, 0
      %v379 = vsel %vm326, %v305, 0
      %v381 = vsel %vm326, %v307, 0
      %v383 = vsel %vm326, %v309, 0
      %v385 = vsel %vm326, %v311, 0
      %v387 = vsel %vm326, %v313, 0
      %v389 = vsel %vm326, %v315, 0
      %v391 = vsel %vm326, %v317, 0
      %v393 = vsel %vm326, %v319, 0
      %v395 = vsel %vm326, %v321, 0
      %v397 = vsel %vm326, %v323, 0
      %vm399 = vcmask 1043456
      %v400 = vsel %vm399, %v325, 0
      %402 = vmatprep.subr.mxu0 0.0
      %403 = vmatpush1.msra.mxu0 0.0
      %404 = vmatprep.subr.mxu0 0.0
      %405 = vmatpush1.msra.mxu0 0.0
      %406 = vmatprep.subr.mxu0 0.0
      %407 = vmatpush1.msra.mxu0 0.0
      %408 = vmatprep.subr.mxu0 0.0
      %409 = vmatpush1.msra.mxu0 0.0
      %410 = vmatprep.subr.mxu0 0.0
      %411 = vmatpush1.msra.mxu0 0.0
      %412 = vmatprep.subr.mxu0 0.0
      %413 = vmatpush1.msra.mxu0 0.0
      %414 = vmatprep.subr.mxu0 0.0
      %415 = vmatpush1.msra.mxu0 0.0
      %416 = vmatprep.subr.mxu0 0.0
      %417 = vmatpush1.msra.mxu0 0.0
      %418 = vmatprep.subr.mxu0 0.0
      %419 = vmatpush1.msra.mxu0 0.0
      %420 = vmatprep.subr.mxu0 0.0
      %421 = vmatpush1.msra.mxu0 0.0
      %422 = vmatprep.subr.mxu0 0.0
      %423 = vmatpush1.msra.mxu0 0.0
      %424 = vmatprep.subr.mxu0 0.0
      %425 = vmatpush1.msra.mxu0 0.0
      %426 = vmatprep.subr.mxu0 0.0
      %427 = vmatpush1.msra.mxu0 0.0
      %428 = vmatprep.subr.mxu0 0.0
      %429 = vmatpush1.msra.mxu0 0.0
      %430 = vmatprep.subr.mxu0 0.0
      %431 = vmatpush1.msra.mxu0 0.0
      %432 = vmatprep.subr.mxu0 0.0
      %433 = vmatpush1.msra.mxu0 %v400
      %434 = vmatprep.subr.mxu0 0.0
      %435 = vmatpush2.msra.mxu0 0.0
      %436 = vmatprep.subr.mxu0 0.0
      %437 = vmatpush2.msra.mxu0 0.0
      %438 = vmatprep.subr.mxu0 0.0
      %439 = vmatpush2.msra.mxu0 0.0
      %440 = vmatprep.subr.mxu0 0.0
      %441 = vmatpush2.msra.mxu0 0.0
      %442 = vmatprep.subr.mxu0 0.0
      %443 = vmatpush2.msra.mxu0 0.0
      %444 = vmatprep.subr.mxu0 0.0
      %445 = vmatpush2.msra.mxu0 0.0
      %446 = vmatprep.subr.mxu0 0.0
      %447 = vmatpush2.msra.mxu0 0.0
      %448 = vmatprep.subr.mxu0 0.0
      %449 = vmatpush2.msra.mxu0 0.0
      %450 = vmatprep.subr.mxu0 0.0
      %451 = vmatpush2.msra.mxu0 0.0
      %452 = vmatprep.subr.mxu0 0.0
      %453 = vmatpush2.msra.mxu0 0.0
      %454 = vmatprep.subr.mxu0 0.0
      %455 = vmatpush2.msra.mxu0 0.0
      %456 = vmatprep.subr.mxu0 0.0
      %457 = vmatpush2.msra.mxu0 0.0
      %458 = vmatprep.subr.mxu0 0.0
      %459 = vmatpush2.msra.mxu0 0.0
      %460 = vmatprep.subr.mxu0 0.0
      %461 = vmatpush2.msra.mxu0 0.0
      %462 = vmatprep.subr.mxu0 0.0
      %463 = vmatpush2.msra.mxu0 0.0
      %464 = vmatprep.subr.mxu0 0.0
      %465 = vmatpush2.msra.mxu0 0.0
      %466 = vmatprep.mubr.f32.mxu0 0.0
      %467 = vmatmul.mubr.f32.gmra.mxu0 %v327
      %v468 = vpop.f32.mrf.mxu0
      %v469 = vadd.f32 0.0, %v468
      %v470 = vpop.f32.mrf.mxu0
      %471 = vmatprep.mubr.f32.mxu0 0.0
      %472 = vmatmul.mubr.f32.gmra.mxu0 %v329
      %v473 = vpop.f32.mrf.mxu0
      %v474 = vadd.f32 0.0, %v473
      %v475 = vpop.f32.mrf.mxu0
      %476 = vmatprep.mubr.f32.mxu0 0.0
      %477 = vmatmul.mubr.f32.gmra.mxu0 %v331
      %v478 = vpop.f32.mrf.mxu0
      %v479 = vadd.f32 0.0, %v478
      %v480 = vpop.f32.mrf.mxu0
      %481 = vmatprep.mubr.f32.mxu0 0.0
      %482 = vmatmul.mubr.f32.gmra.mxu0 %v333
      %v483 = vpop.f32.mrf.mxu0
      %v484 = vadd.f32 0.0, %v483
      %v485 = vpop.f32.mrf.mxu0
      %486 = vmatprep.mubr.f32.mxu0 0.0
      %487 = vmatmul.mubr.f32.gmra.mxu0 %v335
      %v488 = vpop.f32.mrf.mxu0
      %v489 = vadd.f32 0.0, %v488
      %v490 = vpop.f32.mrf.mxu0
      %491 = vmatprep.mubr.f32.mxu0 0.0
      %492 = vmatmul.mubr.f32.gmra.mxu0 %v337
      %v493 = vpop.f32.mrf.mxu0
      %v494 = vadd.f32 0.0, %v493
      %v495 = vpop.f32.mrf.mxu0
      %496 = vmatprep.mubr.f32.mxu0 0.0
      %497 = vmatmul.mubr.f32.gmra.mxu0 %v339
      %v498 = vpop.f32.mrf.mxu0
      %v499 = vadd.f32 0.0, %v498
      %v500 = vpop.f32.mrf.mxu0
      %501 = vmatprep.mubr.f32.mxu0 0.0
      %502 = vmatmul.mubr.f32.gmra.mxu0 %v341
      %v503 = vpop.f32.mrf.mxu0
      %v504 = vadd.f32 0.0, %v503
      %v505 = vpop.f32.mrf.mxu0
      %506 = vmatprep.mubr.f32.mxu0 0.0
      %507 = vmatmul.mubr.f32.gmra.mxu0 %v343
      %v508 = vpop.f32.mrf.mxu0
      %v509 = vadd.f32 0.0, %v508
      %v510 = vpop.f32.mrf.mxu0
      %511 = vmatprep.mubr.f32.mxu0 0.0
      %512 = vmatmul.mubr.f32.gmra.mxu0 %v345
      %v513 = vpop.f32.mrf.mxu0
      %v514 = vadd.f32 0.0, %v513
      %v515 = vpop.f32.mrf.mxu0
      %516 = vmatprep.mubr.f32.mxu0 0.0
      %517 = vmatmul.mubr.f32.gmra.mxu0 %v347
      %v518 = vpop.f32.mrf.mxu0
      %v519 = vadd.f32 0.0, %v518
      %v520 = vpop.f32.mrf.mxu0
      %521 = vmatprep.mubr.f32.mxu0 0.0
      %522 = vmatmul.mubr.f32.gmra.mxu0 %v349
      %v523 = vpop.f32.mrf.mxu0
      %v524 = vadd.f32 0.0, %v523
      %v525 = vpop.f32.mrf.mxu0
      %526 = vmatprep.mubr.f32.mxu0 0.0
      %527 = vmatmul.mubr.f32.gmra.mxu0 %v351
      %v528 = vpop.f32.mrf.mxu0
      %v529 = vadd.f32 0.0, %v528
      %v530 = vpop.f32.mrf.mxu0
      %531 = vmatprep.mubr.f32.mxu0 0.0
      %532 = vmatmul.mubr.f32.gmra.mxu0 %v353
      %v533 = vpop.f32.mrf.mxu0
      %v534 = vadd.f32 0.0, %v533
      %v535 = vpop.f32.mrf.mxu0
      %536 = vmatprep.mubr.f32.mxu0 0.0
      %537 = vmatmul.mubr.f32.gmra.mxu0 %v355
      %v538 = vpop.f32.mrf.mxu0
      %v539 = vadd.f32 0.0, %v538
      %v540 = vpop.f32.mrf.mxu0
      %541 = vmatprep.mubr.f32.mxu0 0.0
      %542 = vmatmul.mubr.f32.gmra.mxu0 %v357
      %v543 = vpop.f32.mrf.mxu0
      %v544 = vadd.f32 0.0, %v543
      %v545 = vpop.f32.mrf.mxu0
      %546 = vmatprep.mubr.f32.mxu0 0.0
      %547 = vmatmul.mubr.f32.gmra.mxu0 %v359
      %v548 = vpop.f32.mrf.mxu0
      %v549 = vadd.f32 0.0, %v548
      %v550 = vpop.f32.mrf.mxu0
      %551 = vmatprep.mubr.f32.mxu0 0.0
      %552 = vmatmul.mubr.f32.gmra.mxu0 %v361
      %v553 = vpop.f32.mrf.mxu0
      %v554 = vadd.f32 0.0, %v553
      %v555 = vpop.f32.mrf.mxu0
      %556 = vmatprep.mubr.f32.mxu0 0.0
      %557 = vmatmul.mubr.f32.gmra.mxu0 %v363
      %v558 = vpop.f32.mrf.mxu0
      %v559 = vadd.f32 0.0, %v558
      %v560 = vpop.f32.mrf.mxu0
      %561 = vmatprep.mubr.f32.mxu0 0.0
      %562 = vmatmul.mubr.f32.gmra.mxu0 %v365
      %v563 = vpop.f32.mrf.mxu0
      %v564 = vadd.f32 0.0, %v563
      %v565 = vpop.f32.mrf.mxu0
      %566 = vmatprep.mubr.f32.mxu0 0.0
      %567 = vmatmul.mubr.f32.gmra.mxu0 %v367
      %v568 = vpop.f32.mrf.mxu0
      %v569 = vadd.f32 0.0, %v568
      %v570 = vpop.f32.mrf.mxu0
      %571 = vmatprep.mubr.f32.mxu0 0.0
      %572 = vmatmul.mubr.f32.gmra.mxu0 %v369
      %v573 = vpop.f32.mrf.mxu0
      %v574 = vadd.f32 0.0, %v573
      %v575 = vpop.f32.mrf.mxu0
      %576 = vmatprep.mubr.f32.mxu0 0.0
      %577 = vmatmul.mubr.f32.gmra.mxu0 %v371
      %v578 = vpop.f32.mrf.mxu0
      %v579 = vadd.f32 0.0, %v578
      %v580 = vpop.f32.mrf.mxu0
      %581 = vmatprep.mubr.f32.mxu0 0.0
      %582 = vmatmul.mubr.f32.gmra.mxu0 %v373
      %v583 = vpop.f32.mrf.mxu0
      %v584 = vadd.f32 0.0, %v583
      %v585 = vpop.f32.mrf.mxu0
      %586 = vmatprep.mubr.f32.mxu0 0.0
      %587 = vmatmul.mubr.f32.gmra.mxu0 %v375
      %v588 = vpop.f32.mrf.mxu0
      %v589 = vadd.f32 0.0, %v588
      %v590 = vpop.f32.mrf.mxu0
      %591 = vmatprep.mubr.f32.mxu0 0.0
      %592 = vmatmul.mubr.f32.gmra.mxu0 %v377
      %v593 = vpop.f32.mrf.mxu0
      %v594 = vadd.f32 0.0, %v593
      %v595 = vpop.f32.mrf.mxu0
      %596 = vmatprep.mubr.f32.mxu0 0.0
      %597 = vmatmul.mubr.f32.gmra.mxu0 %v379
      %v598 = vpop.f32.mrf.mxu0
      %v599 = vadd.f32 0.0, %v598
      %v600 = vpop.f32.mrf.mxu0
      %601 = vmatprep.mubr.f32.mxu0 0.0
      %602 = vmatmul.mubr.f32.gmra.mxu0 %v381
      %v603 = vpop.f32.mrf.mxu0
      %v604 = vadd.f32 0.0, %v603
      %v605 = vpop.f32.mrf.mxu0
      %606 = vmatprep.mubr.f32.mxu0 0.0
      %607 = vmatmul.mubr.f32.gmra.mxu0 %v383
      %v608 = vpop.f32.mrf.mxu0
      %v609 = vadd.f32 0.0, %v608
      %v610 = vpop.f32.mrf.mxu0
      %611 = vmatprep.mubr.f32.mxu0 0.0
      %612 = vmatmul.mubr.f32.gmra.mxu0 %v385
      %v613 = vpop.f32.mrf.mxu0
      %v614 = vadd.f32 0.0, %v613
      %v615 = vpop.f32.mrf.mxu0
      %616 = vmatprep.mubr.f32.mxu0 0.0
      %617 = vmatmul.mubr.f32.gmra.mxu0 %v387
      %v618 = vpop.f32.mrf.mxu0
      %v619 = vadd.f32 0.0, %v618
      %v620 = vpop.f32.mrf.mxu0
      %621 = vmatprep.mubr.f32.mxu0 0.0
      %622 = vmatmul.mubr.f32.gmra.mxu0 %v389
      %v623 = vpop.f32.mrf.mxu0
      %v624 = vadd.f32 0.0, %v623
      %v625 = vpop.f32.mrf.mxu0
      %626 = vmatprep.mubr.f32.mxu0 0.0
      %627 = vmatmul.mubr.f32.gmra.mxu0 %v391
      %v628 = vpop.f32.mrf.mxu0
      %v629 = vadd.f32 0.0, %v628
      %v630 = vpop.f32.mrf.mxu0
      %631 = vmatprep.mubr.f32.mxu0 0.0
      %632 = vmatmul.mubr.f32.gmra.mxu0 %v393
      %v633 = vpop.f32.mrf.mxu0
      %v634 = vadd.f32 0.0, %v633
      %v635 = vpop.f32.mrf.mxu0
      %636 = vmatprep.mubr.f32.mxu0 0.0
      %637 = vmatmul.mubr.f32.gmra.mxu0 %v395
      %v638 = vpop.f32.mrf.mxu0
      %v639 = vadd.f32 0.0, %v638
      %v640 = vpop.f32.mrf.mxu0
      %641 = vmatprep.mubr.f32.mxu0 0.0
      %642 = vmatmul.mubr.f32.gmra.mxu0 %v397
      %v643 = vpop.f32.mrf.mxu0
      %v644 = vadd.f32 0.0, %v643
      %v645 = vpop.f32.mrf.mxu0
      %646 = vdwg.mxu0
      %v647 = vsel %vm326, %v167, 0
      %v649 = vsel %vm326, %v168, 0
      %v651 = vsel %vm326, %v169, 0
      %v653 = vsel %vm326, %v170, 0
      %v655 = vsel %vm326, %v171, 0
      %v657 = vsel %vm326, %v172, 0
      %v659 = vsel %vm326, %v173, 0
      %v661 = vsel %vm326, %v174, 0
      %v663 = vsel %vm326, %v175, 0
      %v665 = vsel %vm326, %v176, 0
      %v667 = vsel %vm326, %v177, 0
      %v669 = vsel %vm326, %v178, 0
      %v671 = vsel %vm326, %v179, 0
      %v673 = vsel %vm326, %v180, 0
      %v675 = vsel %vm326, %v181, 0
      %v677 = vsel %vm326, %v182, 0
      %v679 = vsel %vm326, %v183, 0
      %v681 = vsel %vm326, %v184, 0
      %v683 = vsel %vm326, %v185, 0
      %v685 = vsel %vm326, %v186, 0
      %v687 = vsel %vm326, %v187, 0
      %v689 = vsel %vm326, %v188, 0
      %v691 = vsel %vm326, %v189, 0
      %v693 = vsel %vm326, %v190, 0
      %v695 = vsel %vm326, %v191, 0
      %v697 = vsel %vm326, %v192, 0
      %v699 = vsel %vm326, %v193, 0
      %v701 = vsel %vm326, %v194, 0
      %v703 = vsel %vm326, %v195, 0
      %v705 = vsel %vm326, %v196, 0
      %v707 = vsel %vm326, %v197, 0
      %v709 = vsel %vm326, %v198, 0
      %v711 = vsel %vm326, %v199, 0
      %v713 = vsel %vm326, %v200, 0
      %v715 = vsel %vm326, %v201, 0
      %v717 = vsel %vm326, %v202, 0
      %v719 = vsel %vm399, %v208, 0
      %721 = vmatprep.subr.mxu0 0.0
      %722 = vmatpush1.msra.mxu0 0.0
      %723 = vmatprep.subr.mxu0 0.0
      %724 = vmatpush1.msra.mxu0 0.0
      %725 = vmatprep.subr.mxu0 0.0
      %726 = vmatpush1.msra.mxu0 0.0
      %727 = vmatprep.subr.mxu0 0.0
      %728 = vmatpush1.msra.mxu0 0.0
      %729 = vmatprep.subr.mxu0 0.0
      %730 = vmatpush1.msra.mxu0 0.0
      %731 = vmatprep.subr.mxu0 0.0
      %732 = vmatpush1.msra.mxu0 0.0
      %733 = vmatprep.subr.mxu0 0.0
      %734 = vmatpush1.msra.mxu0 0.0
      %735 = vmatprep.subr.mxu0 0.0
      %736 = vmatpush1.msra.mxu0 0.0
      %737 = vmatprep.subr.mxu0 0.0
      %738 = vmatpush1.msra.mxu0 0.0
      %739 = vmatprep.subr.mxu0 0.0
      %740 = vmatpush1.msra.mxu0 0.0
      %741 = vmatprep.subr.mxu0 0.0
      %742 = vmatpush1.msra.mxu0 0.0
      %743 = vmatprep.subr.mxu0 0.0
      %744 = vmatpush1.msra.mxu0 0.0
      %745 = vmatprep.subr.mxu0 0.0
      %746 = vmatpush1.msra.mxu0 0.0
      %747 = vmatprep.subr.mxu0 0.0
      %748 = vmatpush1.msra.mxu0 0.0
      %749 = vmatprep.subr.mxu0 0.0
      %750 = vmatpush1.msra.mxu0 0.0
      %751 = vmatprep.subr.mxu0 0.0
      %752 = vmatpush1.msra.mxu0 %v719
      %753 = vmatprep.subr.mxu0 0.0
      %754 = vmatpush2.msra.mxu0 0.0
      %755 = vmatprep.subr.mxu0 0.0
      %756 = vmatpush2.msra.mxu0 0.0
      %757 = vmatprep.subr.mxu0 0.0
      %758 = vmatpush2.msra.mxu0 0.0
      %759 = vmatprep.subr.mxu0 0.0
      %760 = vmatpush2.msra.mxu0 0.0
      %761 = vmatprep.subr.mxu0 0.0
      %762 = vmatpush2.msra.mxu0 0.0
      %763 = vmatprep.subr.mxu0 0.0
      %764 = vmatpush2.msra.mxu0 0.0
      %765 = vmatprep.subr.mxu0 0.0
      %766 = vmatpush2.msra.mxu0 0.0
      %767 = vmatprep.subr.mxu0 0.0
      %768 = vmatpush2.msra.mxu0 0.0
      %769 = vmatprep.subr.mxu0 0.0
      %770 = vmatpush2.msra.mxu0 0.0
      %771 = vmatprep.subr.mxu0 0.0
      %772 = vmatpush2.msra.mxu0 0.0
      %773 = vmatprep.subr.mxu0 0.0
      %774 = vmatpush2.msra.mxu0 0.0
      %775 = vmatprep.subr.mxu0 0.0
      %776 = vmatpush2.msra.mxu0 0.0
      %777 = vmatprep.subr.mxu0 0.0
      %778 = vmatpush2.msra.mxu0 0.0
      %779 = vmatprep.subr.mxu0 0.0
      %780 = vmatpush2.msra.mxu0 0.0
      %781 = vmatprep.subr.mxu0 0.0
      %782 = vmatpush2.msra.mxu0 0.0
      %783 = vmatprep.subr.mxu0 0.0
      %784 = vmatpush2.msra.mxu0 0.0
      %785 = vmatprep.mubr.f32.mxu0 0.0
      %786 = vmatmul.mubr.f32.gmra.mxu0 %v647
      %v787 = vpop.f32.mrf.mxu0
      %v788 = vadd.f32 %v469, %v787
      %v789 = vpop.f32.mrf.mxu0
      %790 = vmatprep.mubr.f32.mxu0 0.0
      %791 = vmatmul.mubr.f32.gmra.mxu0 %v649
      %v792 = vpop.f32.mrf.mxu0
      %v793 = vadd.f32 %v474, %v792
      %v794 = vpop.f32.mrf.mxu0
      %795 = vmatprep.mubr.f32.mxu0 0.0
      %796 = vmatmul.mubr.f32.gmra.mxu0 %v651
      %v797 = vpop.f32.mrf.mxu0
      %v798 = vadd.f32 %v479, %v797
      %v799 = vpop.f32.mrf.mxu0
      %800 = vmatprep.mubr.f32.mxu0 0.0
      %801 = vmatmul.mubr.f32.gmra.mxu0 %v653
      %v802 = vpop.f32.mrf.mxu0
      %v803 = vadd.f32 %v484, %v802
      %v804 = vpop.f32.mrf.mxu0
      %805 = vmatprep.mubr.f32.mxu0 0.0
      %806 = vmatmul.mubr.f32.gmra.mxu0 %v655
      %v807 = vpop.f32.mrf.mxu0
      %v808 = vadd.f32 %v489, %v807
      %v809 = vpop.f32.mrf.mxu0
      %810 = vmatprep.mubr.f32.mxu0 0.0
      %811 = vmatmul.mubr.f32.gmra.mxu0 %v657
      %v812 = vpop.f32.mrf.mxu0
      %v813 = vadd.f32 %v494, %v812
      %v814 = vpop.f32.mrf.mxu0
      %815 = vmatprep.mubr.f32.mxu0 0.0
      %816 = vmatmul.mubr.f32.gmra.mxu0 %v659
      %v817 = vpop.f32.mrf.mxu0
      %v818 = vadd.f32 %v499, %v817
      %v819 = vpop.f32.mrf.mxu0
      %820 = vmatprep.mubr.f32.mxu0 0.0
      %821 = vmatmul.mubr.f32.gmra.mxu0 %v661
      %v822 = vpop.f32.mrf.mxu0
      %v823 = vadd.f32 %v504, %v822
      %v824 = vpop.f32.mrf.mxu0
      %825 = vmatprep.mubr.f32.mxu0 0.0
      %826 = vmatmul.mubr.f32.gmra.mxu0 %v663
      %v827 = vpop.f32.mrf.mxu0
      %v828 = vadd.f32 %v509, %v827
      %v829 = vpop.f32.mrf.mxu0
      %830 = vmatprep.mubr.f32.mxu0 0.0
      %831 = vmatmul.mubr.f32.gmra.mxu0 %v665
      %v832 = vpop.f32.mrf.mxu0
      %v833 = vadd.f32 %v514, %v832
      %v834 = vpop.f32.mrf.mxu0
      %835 = vmatprep.mubr.f32.mxu0 0.0
      %836 = vmatmul.mubr.f32.gmra.mxu0 %v667
      %v837 = vpop.f32.mrf.mxu0
      %v838 = vadd.f32 %v519, %v837
      %v839 = vpop.f32.mrf.mxu0
      %840 = vmatprep.mubr.f32.mxu0 0.0
      %841 = vmatmul.mubr.f32.gmra.mxu0 %v669
      %v842 = vpop.f32.mrf.mxu0
      %v843 = vadd.f32 %v524, %v842
      %v844 = vpop.f32.mrf.mxu0
      %845 = vmatprep.mubr.f32.mxu0 0.0
      %846 = vmatmul.mubr.f32.gmra.mxu0 %v671
      %v847 = vpop.f32.mrf.mxu0
      %v848 = vadd.f32 %v529, %v847
      %v849 = vpop.f32.mrf.mxu0
      %850 = vmatprep.mubr.f32.mxu0 0.0
      %851 = vmatmul.mubr.f32.gmra.mxu0 %v673
      %v852 = vpop.f32.mrf.mxu0
      %v853 = vadd.f32 %v534, %v852
      %v854 = vpop.f32.mrf.mxu0
      %855 = vmatprep.mubr.f32.mxu0 0.0
      %856 = vmatmul.mubr.f32.gmra.mxu0 %v675
      %v857 = vpop.f32.mrf.mxu0
      %v858 = vadd.f32 %v539, %v857
      %v859 = vpop.f32.mrf.mxu0
      %860 = vmatprep.mubr.f32.mxu0 0.0
      %861 = vmatmul.mubr.f32.gmra.mxu0 %v677
      %v862 = vpop.f32.mrf.mxu0
      %v863 = vadd.f32 %v544, %v862
      %v864 = vpop.f32.mrf.mxu0
      %865 = vmatprep.mubr.f32.mxu0 0.0
      %866 = vmatmul.mubr.f32.gmra.mxu0 %v679
      %v867 = vpop.f32.mrf.mxu0
      %v868 = vadd.f32 %v549, %v867
      %v869 = vpop.f32.mrf.mxu0
      %870 = vmatprep.mubr.f32.mxu0 0.0
      %871 = vmatmul.mubr.f32.gmra.mxu0 %v681
      %v872 = vpop.f32.mrf.mxu0
      %v873 = vadd.f32 %v554, %v872
      %v874 = vpop.f32.mrf.mxu0
      %875 = vmatprep.mubr.f32.mxu0 0.0
      %876 = vmatmul.mubr.f32.gmra.mxu0 %v683
      %v877 = vpop.f32.mrf.mxu0
      %v878 = vadd.f32 %v559, %v877
      %v879 = vpop.f32.mrf.mxu0
      %880 = vmatprep.mubr.f32.mxu0 0.0
      %881 = vmatmul.mubr.f32.gmra.mxu0 %v685
      %v882 = vpop.f32.mrf.mxu0
      %v883 = vadd.f32 %v564, %v882
      %v884 = vpop.f32.mrf.mxu0
      %885 = vmatprep.mubr.f32.mxu0 0.0
      %886 = vmatmul.mubr.f32.gmra.mxu0 %v687
      %v887 = vpop.f32.mrf.mxu0
      %v888 = vadd.f32 %v569, %v887
      %v889 = vpop.f32.mrf.mxu0
      %890 = vmatprep.mubr.f32.mxu0 0.0
      %891 = vmatmul.mubr.f32.gmra.mxu0 %v689
      %v892 = vpop.f32.mrf.mxu0
      %v893 = vadd.f32 %v574, %v892
      %v894 = vpop.f32.mrf.mxu0
      %895 = vmatprep.mubr.f32.mxu0 0.0
      %896 = vmatmul.mubr.f32.gmra.mxu0 %v691
      %v897 = vpop.f32.mrf.mxu0
      %v898 = vadd.f32 %v579, %v897
      %v899 = vpop.f32.mrf.mxu0
      %900 = vmatprep.mubr.f32.mxu0 0.0
      %901 = vmatmul.mubr.f32.gmra.mxu0 %v693
      %v902 = vpop.f32.mrf.mxu0
      %v903 = vadd.f32 %v584, %v902
      %v904 = vpop.f32.mrf.mxu0
      %905 = vmatprep.mubr.f32.mxu0 0.0
      %906 = vmatmul.mubr.f32.gmra.mxu0 %v695
      %v907 = vpop.f32.mrf.mxu0
      %v908 = vadd.f32 %v589, %v907
      %v909 = vpop.f32.mrf.mxu0
      %910 = vmatprep.mubr.f32.mxu0 0.0
      %911 = vmatmul.mubr.f32.gmra.mxu0 %v697
      %v912 = vpop.f32.mrf.mxu0
      %v913 = vadd.f32 %v594, %v912
      %v914 = vpop.f32.mrf.mxu0
      %915 = vmatprep.mubr.f32.mxu0 0.0
      %916 = vmatmul.mubr.f32.gmra.mxu0 %v699
      %v917 = vpop.f32.mrf.mxu0
      %v918 = vadd.f32 %v599, %v917
      %v919 = vpop.f32.mrf.mxu0
      %920 = vmatprep.mubr.f32.mxu0 0.0
      %921 = vmatmul.mubr.f32.gmra.mxu0 %v701
      %v922 = vpop.f32.mrf.mxu0
      %v923 = vadd.f32 %v604, %v922
      %v924 = vpop.f32.mrf.mxu0
      %925 = vmatprep.mubr.f32.mxu0 0.0
      %926 = vmatmul.mubr.f32.gmra.mxu0 %v703
      %v927 = vpop.f32.mrf.mxu0
      %v928 = vadd.f32 %v609, %v927
      %v929 = vpop.f32.mrf.mxu0
      %930 = vmatprep.mubr.f32.mxu0 0.0
      %931 = vmatmul.mubr.f32.gmra.mxu0 %v705
      %v932 = vpop.f32.mrf.mxu0
      %v933 = vadd.f32 %v614, %v932
      %v934 = vpop.f32.mrf.mxu0
      %935 = vmatprep.mubr.f32.mxu0 0.0
      %936 = vmatmul.mubr.f32.gmra.mxu0 %v707
      %v937 = vpop.f32.mrf.mxu0
      %v938 = vadd.f32 %v619, %v937
      %v939 = vpop.f32.mrf.mxu0
      %940 = vmatprep.mubr.f32.mxu0 0.0
      %941 = vmatmul.mubr.f32.gmra.mxu0 %v709
      %v942 = vpop.f32.mrf.mxu0
      %v943 = vadd.f32 %v624, %v942
      %v944 = vpop.f32.mrf.mxu0
      %945 = vmatprep.mubr.f32.mxu0 0.0
      %946 = vmatmul.mubr.f32.gmra.mxu0 %v711
      %v947 = vpop.f32.mrf.mxu0
      %v948 = vadd.f32 %v629, %v947
      %v949 = vpop.f32.mrf.mxu0
      %950 = vmatprep.mubr.f32.mxu0 0.0
      %951 = vmatmul.mubr.f32.gmra.mxu0 %v713
      %v952 = vpop.f32.mrf.mxu0
      %v953 = vadd.f32 %v634, %v952
      %v954 = vpop.f32.mrf.mxu0
      %955 = vmatprep.mubr.f32.mxu0 0.0
      %956 = vmatmul.mubr.f32.gmra.mxu0 %v715
      %v957 = vpop.f32.mrf.mxu0
      %v958 = vadd.f32 %v639, %v957
      %v959 = vpop.f32.mrf.mxu0
      %960 = vmatprep.mubr.f32.mxu0 0.0
      %961 = vmatmul.mubr.f32.gmra.mxu0 %v717
      %v962 = vpop.f32.mrf.mxu0
      %v963 = vadd.f32 %v644, %v962
      %v964 = vpop.f32.mrf.mxu0
      %965 = vdwg.mxu0
      %vm966 = vcmask 1045504
      %v967 = vrot.slane %v167, 2
      %v968 = vrot.slane %v168, 2
      %v969 = vsel %vm966, %v967, %v968
      %v970 = vrot.slane %v169, 2
      %v971 = vsel %vm966, %v968, %v970
      %v972 = vrot.slane %v170, 2
      %v973 = vsel %vm966, %v970, %v972
      %v974 = vrot.slane %v171, 2
      %v975 = vsel %vm966, %v972, %v974
      %v976 = vrot.slane %v172, 2
      %v977 = vsel %vm966, %v974, %v976
      %v978 = vrot.slane %v173, 2
      %v979 = vsel %vm966, %v976, %v978
      %v980 = vrot.slane %v174, 2
      %v981 = vsel %vm966, %v978, %v980
      %v982 = vrot.slane %v175, 2
      %v983 = vsel %vm966, %v980, %v982
      %v984 = vrot.slane %v176, 2
      %v985 = vsel %vm966, %v982, %v984
      %v986 = vrot.slane %v177, 2
      %v987 = vsel %vm966, %v984, %v986
      %v988 = vrot.slane %v178, 2
      %v989 = vsel %vm966, %v986, %v988
      %v990 = vrot.slane %v179, 2
      %v991 = vsel %vm966, %v988, %v990
      %v992 = vrot.slane %v180, 2
      %v993 = vsel %vm966, %v990, %v992
      %v994 = vrot.slane %v181, 2
      %v995 = vsel %vm966, %v992, %v994
      %v996 = vrot.slane %v182, 2
      %v997 = vsel %vm966, %v994, %v996
      %v998 = vrot.slane %v183, 2
      %v999 = vsel %vm966, %v996, %v998
      %v1000 = vrot.slane %v184, 2
      %v1001 = vsel %vm966, %v998, %v1000
      %v1002 = vrot.slane %v185, 2
      %v1003 = vsel %vm966, %v1000, %v1002
      %v1004 = vrot.slane %v186, 2
      %v1005 = vsel %vm966, %v1002, %v1004
      %v1006 = vrot.slane %v187, 2
      %v1007 = vsel %vm966, %v1004, %v1006
      %v1008 = vrot.slane %v188, 2
      %v1009 = vsel %vm966, %v1006, %v1008
      %v1010 = vrot.slane %v189, 2
      %v1011 = vsel %vm966, %v1008, %v1010
      %v1012 = vrot.slane %v190, 2
      %v1013 = vsel %vm966, %v1010, %v1012
      %v1014 = vrot.slane %v191, 2
      %v1015 = vsel %vm966, %v1012, %v1014
      %v1016 = vrot.slane %v192, 2
      %v1017 = vsel %vm966, %v1014, %v1016
      %v1018 = vrot.slane %v193, 2
      %v1019 = vsel %vm966, %v1016, %v1018
      %v1020 = vrot.slane %v194, 2
      %v1021 = vsel %vm966, %v1018, %v1020
      %v1022 = vrot.slane %v195, 2
      %v1023 = vsel %vm966, %v1020, %v1022
      %v1024 = vrot.slane %v196, 2
      %v1025 = vsel %vm966, %v1022, %v1024
      %v1026 = vrot.slane %v197, 2
      %v1027 = vsel %vm966, %v1024, %v1026
      %v1028 = vrot.slane %v198, 2
      %v1029 = vsel %vm966, %v1026, %v1028
      %v1030 = vrot.slane %v199, 2
      %v1031 = vsel %vm966, %v1028, %v1030
      %v1032 = vrot.slane %v200, 2
      %v1033 = vsel %vm966, %v1030, %v1032
      %v1034 = vrot.slane %v201, 2
      %v1035 = vsel %vm966, %v1032, %v1034
      %v1036 = vrot.slane %v202, 2
      %v1037 = vsel %vm966, %v1034, %v1036
      %v1038 = vrot.slane %v203, 2
      %v1039 = vsel %vm966, %v1036, %v1038
      %v1040 = vsel %vm326, %v969, 0
      %v1042 = vsel %vm326, %v971, 0
      %v1044 = vsel %vm326, %v973, 0
      %v1046 = vsel %vm326, %v975, 0
      %v1048 = vsel %vm326, %v977, 0
      %v1050 = vsel %vm326, %v979, 0
      %v1052 = vsel %vm326, %v981, 0
      %v1054 = vsel %vm326, %v983, 0
      %v1056 = vsel %vm326, %v985, 0
      %v1058 = vsel %vm326, %v987, 0
      %v1060 = vsel %vm326, %v989, 0
      %v1062 = vsel %vm326, %v991, 0
      %v1064 = vsel %vm326, %v993, 0
      %v1066 = vsel %vm326, %v995, 0
      %v1068 = vsel %vm326, %v997, 0
      %v1070 = vsel %vm326, %v999, 0
      %v1072 = vsel %vm326, %v1001, 0
      %v1074 = vsel %vm326, %v1003, 0
      %v1076 = vsel %vm326, %v1005, 0
      %v1078 = vsel %vm326, %v1007, 0
      %v1080 = vsel %vm326, %v1009, 0
      %v1082 = vsel %vm326, %v1011, 0
      %v1084 = vsel %vm326, %v1013, 0
      %v1086 = vsel %vm326, %v1015, 0
      %v1088 = vsel %vm326, %v1017, 0
      %v1090 = vsel %vm326, %v1019, 0
      %v1092 = vsel %vm326, %v1021, 0
      %v1094 = vsel %vm326, %v1023, 0
      %v1096 = vsel %vm326, %v1025, 0
      %v1098 = vsel %vm326, %v1027, 0
      %v1100 = vsel %vm326, %v1029, 0
      %v1102 = vsel %vm326, %v1031, 0
      %v1104 = vsel %vm326, %v1033, 0
      %v1106 = vsel %vm326, %v1035, 0
      %v1108 = vsel %vm326, %v1037, 0
      %v1110 = vsel %vm326, %v1039, 0
      %v1113 = vsel %vm399, %v209, 0
      %1115 = vmatprep.subr.mxu0 0.0
      %1116 = vmatpush1.msra.mxu0 0.0
      %1117 = vmatprep.subr.mxu0 0.0
      %1118 = vmatpush1.msra.mxu0 0.0
      %1119 = vmatprep.subr.mxu0 0.0
      %1120 = vmatpush1.msra.mxu0 0.0
      %1121 = vmatprep.subr.mxu0 0.0
      %1122 = vmatpush1.msra.mxu0 0.0
      %1123 = vmatprep.subr.mxu0 0.0
      %1124 = vmatpush1.msra.mxu0 0.0
      %1125 = vmatprep.subr.mxu0 0.0
      %1126 = vmatpush1.msra.mxu0 0.0
      %1127 = vmatprep.subr.mxu0 0.0
      %1128 = vmatpush1.msra.mxu0 0.0
      %1129 = vmatprep.subr.mxu0 0.0
      %1130 = vmatpush1.msra.mxu0 0.0
      %1131 = vmatprep.subr.mxu0 0.0
      %1132 = vmatpush1.msra.mxu0 0.0
      %1133 = vmatprep.subr.mxu0 0.0
      %1134 = vmatpush1.msra.mxu0 0.0
      %1135 = vmatprep.subr.mxu0 0.0
      %1136 = vmatpush1.msra.mxu0 0.0
      %1137 = vmatprep.subr.mxu0 0.0
      %1138 = vmatpush1.msra.mxu0 0.0
      %1139 = vmatprep.subr.mxu0 0.0
      %1140 = vmatpush1.msra.mxu0 0.0
      %1141 = vmatprep.subr.mxu0 0.0
      %1142 = vmatpush1.msra.mxu0 0.0
      %1143 = vmatprep.subr.mxu0 0.0
      %1144 = vmatpush1.msra.mxu0 0.0
      %1145 = vmatprep.subr.mxu0 0.0
      %1146 = vmatpush1.msra.mxu0 %v1113
      %1147 = vmatprep.subr.mxu0 0.0
      %1148 = vmatpush2.msra.mxu0 0.0
      %1149 = vmatprep.subr.mxu0 0.0
      %1150 = vmatpush2.msra.mxu0 0.0
      %1151 = vmatprep.subr.mxu0 0.0
      %1152 = vmatpush2.msra.mxu0 0.0
      %1153 = vmatprep.subr.mxu0 0.0
      %1154 = vmatpush2.msra.mxu0 0.0
      %1155 = vmatprep.subr.mxu0 0.0
      %1156 = vmatpush2.msra.mxu0 0.0
      %1157 = vmatprep.subr.mxu0 0.0
      %1158 = vmatpush2.msra.mxu0 0.0
      %1159 = vmatprep.subr.mxu0 0.0
      %1160 = vmatpush2.msra.mxu0 0.0
      %1161 = vmatprep.subr.mxu0 0.0
      %1162 = vmatpush2.msra.mxu0 0.0
      %1163 = vmatprep.subr.mxu0 0.0
      %1164 = vmatpush2.msra.mxu0 0.0
      %1165 = vmatprep.subr.mxu0 0.0
      %1166 = vmatpush2.msra.mxu0 0.0
      %1167 = vmatprep.subr.mxu0 0.0
      %1168 = vmatpush2.msra.mxu0 0.0
      %1169 = vmatprep.subr.mxu0 0.0
      %1170 = vmatpush2.msra.mxu0 0.0
      %1171 = vmatprep.subr.mxu0 0.0
      %1172 = vmatpush2.msra.mxu0 0.0
      %1173 = vmatprep.subr.mxu0 0.0
      %1174 = vmatpush2.msra.mxu0 0.0
      %1175 = vmatprep.subr.mxu0 0.0
      %1176 = vmatpush2.msra.mxu0 0.0
      %1177 = vmatprep.subr.mxu0 0.0
      %1178 = vmatpush2.msra.mxu0 0.0
      %1179 = vmatprep.mubr.f32.mxu0 0.0
      %1180 = vmatmul.mubr.f32.gmra.mxu0 %v1040
      %v1181 = vpop.f32.mrf.mxu0
      %v1182 = vadd.f32 0.0, %v1181
      %v1183 = vpop.f32.mrf.mxu0
      %1184 = vmatprep.mubr.f32.mxu0 0.0
      %1185 = vmatmul.mubr.f32.gmra.mxu0 %v1042
      %v1186 = vpop.f32.mrf.mxu0
      %v1187 = vadd.f32 0.0, %v1186
      %v1188 = vpop.f32.mrf.mxu0
      %1189 = vmatprep.mubr.f32.mxu0 0.0
      %1190 = vmatmul.mubr.f32.gmra.mxu0 %v1044
      %v1191 = vpop.f32.mrf.mxu0
      %v1192 = vadd.f32 0.0, %v1191
      %v1193 = vpop.f32.mrf.mxu0
      %1194 = vmatprep.mubr.f32.mxu0 0.0
      %1195 = vmatmul.mubr.f32.gmra.mxu0 %v1046
      %v1196 = vpop.f32.mrf.mxu0
      %v1197 = vadd.f32 0.0, %v1196
      %v1198 = vpop.f32.mrf.mxu0
      %1199 = vmatprep.mubr.f32.mxu0 0.0
      %1200 = vmatmul.mubr.f32.gmra.mxu0 %v1048
      %v1201 = vpop.f32.mrf.mxu0
      %v1202 = vadd.f32 0.0, %v1201
      %v1203 = vpop.f32.mrf.mxu0
      %1204 = vmatprep.mubr.f32.mxu0 0.0
      %1205 = vmatmul.mubr.f32.gmra.mxu0 %v1050
      %v1206 = vpop.f32.mrf.mxu0
      %v1207 = vadd.f32 0.0, %v1206
      %v1208 = vpop.f32.mrf.mxu0
      %1209 = vmatprep.mubr.f32.mxu0 0.0
      %1210 = vmatmul.mubr.f32.gmra.mxu0 %v1052
      %v1211 = vpop.f32.mrf.mxu0
      %v1212 = vadd.f32 0.0, %v1211
      %v1213 = vpop.f32.mrf.mxu0
      %1214 = vmatprep.mubr.f32.mxu0 0.0
      %1215 = vmatmul.mubr.f32.gmra.mxu0 %v1054
      %v1216 = vpop.f32.mrf.mxu0
      %v1217 = vadd.f32 0.0, %v1216
      %v1218 = vpop.f32.mrf.mxu0
      %1219 = vmatprep.mubr.f32.mxu0 0.0
      %1220 = vmatmul.mubr.f32.gmra.mxu0 %v1056
      %v1221 = vpop.f32.mrf.mxu0
      %v1222 = vadd.f32 0.0, %v1221
      %v1223 = vpop.f32.mrf.mxu0
      %1224 = vmatprep.mubr.f32.mxu0 0.0
      %1225 = vmatmul.mubr.f32.gmra.mxu0 %v1058
      %v1226 = vpop.f32.mrf.mxu0
      %v1227 = vadd.f32 0.0, %v1226
      %v1228 = vpop.f32.mrf.mxu0
      %1229 = vmatprep.mubr.f32.mxu0 0.0
      %1230 = vmatmul.mubr.f32.gmra.mxu0 %v1060
      %v1231 = vpop.f32.mrf.mxu0
      %v1232 = vadd.f32 0.0, %v1231
      %v1233 = vpop.f32.mrf.mxu0
      %1234 = vmatprep.mubr.f32.mxu0 0.0
      %1235 = vmatmul.mubr.f32.gmra.mxu0 %v1062
      %v1236 = vpop.f32.mrf.mxu0
      %v1237 = vadd.f32 0.0, %v1236
      %v1238 = vpop.f32.mrf.mxu0
      %1239 = vmatprep.mubr.f32.mxu0 0.0
      %1240 = vmatmul.mubr.f32.gmra.mxu0 %v1064
      %v1241 = vpop.f32.mrf.mxu0
      %v1242 = vadd.f32 0.0, %v1241
      %v1243 = vpop.f32.mrf.mxu0
      %1244 = vmatprep.mubr.f32.mxu0 0.0
      %1245 = vmatmul.mubr.f32.gmra.mxu0 %v1066
      %v1246 = vpop.f32.mrf.mxu0
      %v1247 = vadd.f32 0.0, %v1246
      %v1248 = vpop.f32.mrf.mxu0
      %1249 = vmatprep.mubr.f32.mxu0 0.0
      %1250 = vmatmul.mubr.f32.gmra.mxu0 %v1068
      %v1251 = vpop.f32.mrf.mxu0
      %v1252 = vadd.f32 0.0, %v1251
      %v1253 = vpop.f32.mrf.mxu0
      %1254 = vmatprep.mubr.f32.mxu0 0.0
      %1255 = vmatmul.mubr.f32.gmra.mxu0 %v1070
      %v1256 = vpop.f32.mrf.mxu0
      %v1257 = vadd.f32 0.0, %v1256
      %v1258 = vpop.f32.mrf.mxu0
      %1259 = vmatprep.mubr.f32.mxu0 0.0
      %1260 = vmatmul.mubr.f32.gmra.mxu0 %v1072
      %v1261 = vpop.f32.mrf.mxu0
      %v1262 = vadd.f32 0.0, %v1261
      %v1263 = vpop.f32.mrf.mxu0
      %1264 = vmatprep.mubr.f32.mxu0 0.0
      %1265 = vmatmul.mubr.f32.gmra.mxu0 %v1074
      %v1266 = vpop.f32.mrf.mxu0
      %v1267 = vadd.f32 0.0, %v1266
      %v1268 = vpop.f32.mrf.mxu0
      %1269 = vmatprep.mubr.f32.mxu0 0.0
      %1270 = vmatmul.mubr.f32.gmra.mxu0 %v1076
      %v1271 = vpop.f32.mrf.mxu0
      %v1272 = vadd.f32 0.0, %v1271
      %v1273 = vpop.f32.mrf.mxu0
      %1274 = vmatprep.mubr.f32.mxu0 0.0
      %1275 = vmatmul.mubr.f32.gmra.mxu0 %v1078
      %v1276 = vpop.f32.mrf.mxu0
      %v1277 = vadd.f32 0.0, %v1276
      %v1278 = vpop.f32.mrf.mxu0
      %1279 = vmatprep.mubr.f32.mxu0 0.0
      %1280 = vmatmul.mubr.f32.gmra.mxu0 %v1080
      %v1281 = vpop.f32.mrf.mxu0
      %v1282 = vadd.f32 0.0, %v1281
      %v1283 = vpop.f32.mrf.mxu0
      %1284 = vmatprep.mubr.f32.mxu0 0.0
      %1285 = vmatmul.mubr.f32.gmra.mxu0 %v1082
      %v1286 = vpop.f32.mrf.mxu0
      %v1287 = vadd.f32 0.0, %v1286
      %v1288 = vpop.f32.mrf.mxu0
      %1289 = vmatprep.mubr.f32.mxu0 0.0
      %1290 = vmatmul.mubr.f32.gmra.mxu0 %v1084
      %v1291 = vpop.f32.mrf.mxu0
      %v1292 = vadd.f32 0.0, %v1291
      %v1293 = vpop.f32.mrf.mxu0
      %1294 = vmatprep.mubr.f32.mxu0 0.0
      %1295 = vmatmul.mubr.f32.gmra.mxu0 %v1086
      %v1296 = vpop.f32.mrf.mxu0
      %v1297 = vadd.f32 0.0, %v1296
      %v1298 = vpop.f32.mrf.mxu0
      %1299 = vmatprep.mubr.f32.mxu0 0.0
      %1300 = vmatmul.mubr.f32.gmra.mxu0 %v1088
      %v1301 = vpop.f32.mrf.mxu0
      %v1302 = vadd.f32 0.0, %v1301
      %v1303 = vpop.f32.mrf.mxu0
      %1304 = vmatprep.mubr.f32.mxu0 0.0
      %1305 = vmatmul.mubr.f32.gmra.mxu0 %v1090
      %v1306 = vpop.f32.mrf.mxu0
      %v1307 = vadd.f32 0.0, %v1306
      %v1308 = vpop.f32.mrf.mxu0
      %1309 = vmatprep.mubr.f32.mxu0 0.0
      %1310 = vmatmul.mubr.f32.gmra.mxu0 %v1092
      %v1311 = vpop.f32.mrf.mxu0
      %v1312 = vadd.f32 0.0, %v1311
      %v1313 = vpop.f32.mrf.mxu0
      %1314 = vmatprep.mubr.f32.mxu0 0.0
      %1315 = vmatmul.mubr.f32.gmra.mxu0 %v1094
      %v1316 = vpop.f32.mrf.mxu0
      %v1317 = vadd.f32 0.0, %v1316
      %v1318 = vpop.f32.mrf.mxu0
      %1319 = vmatprep.mubr.f32.mxu0 0.0
      %1320 = vmatmul.mubr.f32.gmra.mxu0 %v1096
      %v1321 = vpop.f32.mrf.mxu0
      %v1322 = vadd.f32 0.0, %v1321
      %v1323 = vpop.f32.mrf.mxu0
      %1324 = vmatprep.mubr.f32.mxu0 0.0
      %1325 = vmatmul.mubr.f32.gmra.mxu0 %v1098
      %v1326 = vpop.f32.mrf.mxu0
      %v1327 = vadd.f32 0.0, %v1326
      %v1328 = vpop.f32.mrf.mxu0
      %1329 = vmatprep.mubr.f32.mxu0 0.0
      %1330 = vmatmul.mubr.f32.gmra.mxu0 %v1100
      %v1331 = vpop.f32.mrf.mxu0
      %v1332 = vadd.f32 0.0, %v1331
      %v1333 = vpop.f32.mrf.mxu0
      %1334 = vmatprep.mubr.f32.mxu0 0.0
      %1335 = vmatmul.mubr.f32.gmra.mxu0 %v1102
      %v1336 = vpop.f32.mrf.mxu0
      %v1337 = vadd.f32 0.0, %v1336
      %v1338 = vpop.f32.mrf.mxu0
      %1339 = vmatprep.mubr.f32.mxu0 0.0
      %1340 = vmatmul.mubr.f32.gmra.mxu0 %v1104
      %v1341 = vpop.f32.mrf.mxu0
      %v1342 = vadd.f32 0.0, %v1341
      %v1343 = vpop.f32.mrf.mxu0
      %1344 = vmatprep.mubr.f32.mxu0 0.0
      %1345 = vmatmul.mubr.f32.gmra.mxu0 %v1106
      %v1346 = vpop.f32.mrf.mxu0
      %v1347 = vadd.f32 0.0, %v1346
      %v1348 = vpop.f32.mrf.mxu0
      %1349 = vmatprep.mubr.f32.mxu0 0.0
      %1350 = vmatmul.mubr.f32.gmra.mxu0 %v1108
      %v1351 = vpop.f32.mrf.mxu0
      %v1352 = vadd.f32 0.0, %v1351
      %v1353 = vpop.f32.mrf.mxu0
      %1354 = vmatprep.mubr.f32.mxu0 0.0
      %1355 = vmatmul.mubr.f32.gmra.mxu0 %v1110
      %v1356 = vpop.f32.mrf.mxu0
      %v1357 = vadd.f32 0.0, %v1356
      %v1358 = vpop.f32.mrf.mxu0
      %1359 = vdwg.mxu0
      %v1360 = vadd.f32 %v788, %v1182
      %v1361 = vadd.f32 %v793, %v1187
      %v1362 = vadd.f32 %v798, %v1192
      %v1363 = vadd.f32 %v803, %v1197
      %v1364 = vadd.f32 %v808, %v1202
      %v1365 = vadd.f32 %v813, %v1207
      %v1366 = vadd.f32 %v818, %v1212
      %v1367 = vadd.f32 %v823, %v1217
      %v1368 = vadd.f32 %v828, %v1222
      %v1369 = vadd.f32 %v833, %v1227
      %v1370 = vadd.f32 %v838, %v1232
      %v1371 = vadd.f32 %v843, %v1237
      %v1372 = vadd.f32 %v848, %v1242
      %v1373 = vadd.f32 %v853, %v1247
      %v1374 = vadd.f32 %v858, %v1252
      %v1375 = vadd.f32 %v863, %v1257
      %v1376 = vadd.f32 %v868, %v1262
      %v1377 = vadd.f32 %v873, %v1267
      %v1378 = vadd.f32 %v878, %v1272
      %v1379 = vadd.f32 %v883, %v1277
      %v1380 = vadd.f32 %v888, %v1282
      %v1381 = vadd.f32 %v893, %v1287
      %v1382 = vadd.f32 %v898, %v1292
      %v1383 = vadd.f32 %v903, %v1297
      %v1384 = vadd.f32 %v908, %v1302
      %v1385 = vadd.f32 %v913, %v1307
      %v1386 = vadd.f32 %v918, %v1312
      %v1387 = vadd.f32 %v923, %v1317
      %v1388 = vadd.f32 %v928, %v1322
      %v1389 = vadd.f32 %v933, %v1327
      %v1390 = vadd.f32 %v938, %v1332
      %v1391 = vadd.f32 %v943, %v1337
      %v1392 = vadd.f32 %v948, %v1342
      %v1393 = vadd.f32 %v953, %v1347
      %v1394 = vadd.f32 %v958, %v1352
      %v1395 = vadd.f32 %v963, %v1357
      %v1398 = vrot.slane %v204, 2
      %v1399 = vsel %vm966, %v1038, %v1398
      %v1400 = vrot.slane %v205, 2
      %v1401 = vsel %vm966, %v1398, %v1400
      %v1402 = vrot.slane %v209, 4
      %v1403 = vsel %vm326, %v1399, 0
      %v1405 = vsel %vm326, %v1401, 0
      %v1407 = vsel %vm399, %v1402, 0
      %1409 = vmatprep.subr.mxu0 0.0
      %1410 = vmatpush1.msra.mxu0 0.0
      %1411 = vmatprep.subr.mxu0 0.0
      %1412 = vmatpush1.msra.mxu0 0.0
      %1413 = vmatprep.subr.mxu0 0.0
      %1414 = vmatpush1.msra.mxu0 0.0
      %1415 = vmatprep.subr.mxu0 0.0
      %1416 = vmatpush1.msra.mxu0 0.0
      %1417 = vmatprep.subr.mxu0 0.0
      %1418 = vmatpush1.msra.mxu0 0.0
      %1419 = vmatprep.subr.mxu0 0.0
      %1420 = vmatpush1.msra.mxu0 0.0
      %1421 = vmatprep.subr.mxu0 0.0
      %1422 = vmatpush1.msra.mxu0 0.0
      %1423 = vmatprep.subr.mxu0 0.0
      %1424 = vmatpush1.msra.mxu0 0.0
      %1425 = vmatprep.subr.mxu0 0.0
      %1426 = vmatpush1.msra.mxu0 0.0
      %1427 = vmatprep.subr.mxu0 0.0
      %1428 = vmatpush1.msra.mxu0 0.0
      %1429 = vmatprep.subr.mxu0 0.0
      %1430 = vmatpush1.msra.mxu0 0.0
      %1431 = vmatprep.subr.mxu0 0.0
      %1432 = vmatpush1.msra.mxu0 0.0
      %1433 = vmatprep.subr.mxu0 0.0
      %1434 = vmatpush1.msra.mxu0 0.0
      %1435 = vmatprep.subr.mxu0 0.0
      %1436 = vmatpush1.msra.mxu0 0.0
      %1437 = vmatprep.subr.mxu0 0.0
      %1438 = vmatpush1.msra.mxu0 0.0
      %1439 = vmatprep.subr.mxu0 0.0
      %1440 = vmatpush1.msra.mxu0 %v1407
      %1441 = vmatprep.subr.mxu0 0.0
      %1442 = vmatpush2.msra.mxu0 0.0
      %1443 = vmatprep.subr.mxu0 0.0
      %1444 = vmatpush2.msra.mxu0 0.0
      %1445 = vmatprep.subr.mxu0 0.0
      %1446 = vmatpush2.msra.mxu0 0.0
      %1447 = vmatprep.subr.mxu0 0.0
      %1448 = vmatpush2.msra.mxu0 0.0
      %1449 = vmatprep.subr.mxu0 0.0
      %1450 = vmatpush2.msra.mxu0 0.0
      %1451 = vmatprep.subr.mxu0 0.0
      %1452 = vmatpush2.msra.mxu0 0.0
      %1453 = vmatprep.subr.mxu0 0.0
      %1454 = vmatpush2.msra.mxu0 0.0
      %1455 = vmatprep.subr.mxu0 0.0
      %1456 = vmatpush2.msra.mxu0 0.0
      %1457 = vmatprep.subr.mxu0 0.0
      %1458 = vmatpush2.msra.mxu0 0.0
      %1459 = vmatprep.subr.mxu0 0.0
      %1460 = vmatpush2.msra.mxu0 0.0
      %1461 = vmatprep.subr.mxu0 0.0
      %1462 = vmatpush2.msra.mxu0 0.0
      %1463 = vmatprep.subr.mxu0 0.0
      %1464 = vmatpush2.msra.mxu0 0.0
      %1465 = vmatprep.subr.mxu0 0.0
      %1466 = vmatpush2.msra.mxu0 0.0
      %1467 = vmatprep.subr.mxu0 0.0
      %1468 = vmatpush2.msra.mxu0 0.0
      %1469 = vmatprep.subr.mxu0 0.0
      %1470 = vmatpush2.msra.mxu0 0.0
      %1471 = vmatprep.subr.mxu0 0.0
      %1472 = vmatpush2.msra.mxu0 0.0
      %1473 = vmatprep.mubr.f32.mxu0 0.0
      %1474 = vmatmul.mubr.f32.gmra.mxu0 %v1044
      %v1475 = vpop.f32.mrf.mxu0
      %v1476 = vadd.f32 0.0, %v1475
      %v1477 = vpop.f32.mrf.mxu0
      %1478 = vmatprep.mubr.f32.mxu0 0.0
      %1479 = vmatmul.mubr.f32.gmra.mxu0 %v1046
      %v1480 = vpop.f32.mrf.mxu0
      %v1481 = vadd.f32 0.0, %v1480
      %v1482 = vpop.f32.mrf.mxu0
      %1483 = vmatprep.mubr.f32.mxu0 0.0
      %1484 = vmatmul.mubr.f32.gmra.mxu0 %v1048
      %v1485 = vpop.f32.mrf.mxu0
      %v1486 = vadd.f32 0.0, %v1485
      %v1487 = vpop.f32.mrf.mxu0
      %1488 = vmatprep.mubr.f32.mxu0 0.0
      %1489 = vmatmul.mubr.f32.gmra.mxu0 %v1050
      %v1490 = vpop.f32.mrf.mxu0
      %v1491 = vadd.f32 0.0, %v1490
      %v1492 = vpop.f32.mrf.mxu0
      %1493 = vmatprep.mubr.f32.mxu0 0.0
      %1494 = vmatmul.mubr.f32.gmra.mxu0 %v1052
      %v1495 = vpop.f32.mrf.mxu0
      %v1496 = vadd.f32 0.0, %v1495
      %v1497 = vpop.f32.mrf.mxu0
      %1498 = vmatprep.mubr.f32.mxu0 0.0
      %1499 = vmatmul.mubr.f32.gmra.mxu0 %v1054
      %v1500 = vpop.f32.mrf.mxu0
      %v1501 = vadd.f32 0.0, %v1500
      %v1502 = vpop.f32.mrf.mxu0
      %1503 = vmatprep.mubr.f32.mxu0 0.0
      %1504 = vmatmul.mubr.f32.gmra.mxu0 %v1056
      %v1505 = vpop.f32.mrf.mxu0
      %v1506 = vadd.f32 0.0, %v1505
      %v1507 = vpop.f32.mrf.mxu0
      %1508 = vmatprep.mubr.f32.mxu0 0.0
      %1509 = vmatmul.mubr.f32.gmra.mxu0 %v1058
      %v1510 = vpop.f32.mrf.mxu0
      %v1511 = vadd.f32 0.0, %v1510
      %v1512 = vpop.f32.mrf.mxu0
      %1513 = vmatprep.mubr.f32.mxu0 0.0
      %1514 = vmatmul.mubr.f32.gmra.mxu0 %v1060
      %v1515 = vpop.f32.mrf.mxu0
      %v1516 = vadd.f32 0.0, %v1515
      %v1517 = vpop.f32.mrf.mxu0
      %1518 = vmatprep.mubr.f32.mxu0 0.0
      %1519 = vmatmul.mubr.f32.gmra.mxu0 %v1062
      %v1520 = vpop.f32.mrf.mxu0
      %v1521 = vadd.f32 0.0, %v1520
      %v1522 = vpop.f32.mrf.mxu0
      %1523 = vmatprep.mubr.f32.mxu0 0.0
      %1524 = vmatmul.mubr.f32.gmra.mxu0 %v1064
      %v1525 = vpop.f32.mrf.mxu0
      %v1526 = vadd.f32 0.0, %v1525
      %v1527 = vpop.f32.mrf.mxu0
      %1528 = vmatprep.mubr.f32.mxu0 0.0
      %1529 = vmatmul.mubr.f32.gmra.mxu0 %v1066
      %v1530 = vpop.f32.mrf.mxu0
      %v1531 = vadd.f32 0.0, %v1530
      %v1532 = vpop.f32.mrf.mxu0
      %1533 = vmatprep.mubr.f32.mxu0 0.0
      %1534 = vmatmul.mubr.f32.gmra.mxu0 %v1068
      %v1535 = vpop.f32.mrf.mxu0
      %v1536 = vadd.f32 0.0, %v1535
      %v1537 = vpop.f32.mrf.mxu0
      %1538 = vmatprep.mubr.f32.mxu0 0.0
      %1539 = vmatmul.mubr.f32.gmra.mxu0 %v1070
      %v1540 = vpop.f32.mrf.mxu0
      %v1541 = vadd.f32 0.0, %v1540
      %v1542 = vpop.f32.mrf.mxu0
      %1543 = vmatprep.mubr.f32.mxu0 0.0
      %1544 = vmatmul.mubr.f32.gmra.mxu0 %v1072
      %v1545 = vpop.f32.mrf.mxu0
      %v1546 = vadd.f32 0.0, %v1545
      %v1547 = vpop.f32.mrf.mxu0
      %1548 = vmatprep.mubr.f32.mxu0 0.0
      %1549 = vmatmul.mubr.f32.gmra.mxu0 %v1074
      %v1550 = vpop.f32.mrf.mxu0
      %v1551 = vadd.f32 0.0, %v1550
      %v1552 = vpop.f32.mrf.mxu0
      %1553 = vmatprep.mubr.f32.mxu0 0.0
      %1554 = vmatmul.mubr.f32.gmra.mxu0 %v1076
      %v1555 = vpop.f32.mrf.mxu0
      %v1556 = vadd.f32 0.0, %v1555
      %v1557 = vpop.f32.mrf.mxu0
      %1558 = vmatprep.mubr.f32.mxu0 0.0
      %1559 = vmatmul.mubr.f32.gmra.mxu0 %v1078
      %v1560 = vpop.f32.mrf.mxu0
      %v1561 = vadd.f32 0.0, %v1560
      %v1562 = vpop.f32.mrf.mxu0
      %1563 = vmatprep.mubr.f32.mxu0 0.0
      %1564 = vmatmul.mubr.f32.gmra.mxu0 %v1080
      %v1565 = vpop.f32.mrf.mxu0
      %v1566 = vadd.f32 0.0, %v1565
      %v1567 = vpop.f32.mrf.mxu0
      %1568 = vmatprep.mubr.f32.mxu0 0.0
      %1569 = vmatmul.mubr.f32.gmra.mxu0 %v1082
      %v1570 = vpop.f32.mrf.mxu0
      %v1571 = vadd.f32 0.0, %v1570
      %v1572 = vpop.f32.mrf.mxu0
      %1573 = vmatprep.mubr.f32.mxu0 0.0
      %1574 = vmatmul.mubr.f32.gmra.mxu0 %v1084
      %v1575 = vpop.f32.mrf.mxu0
      %v1576 = vadd.f32 0.0, %v1575
      %v1577 = vpop.f32.mrf.mxu0
      %1578 = vmatprep.mubr.f32.mxu0 0.0
      %1579 = vmatmul.mubr.f32.gmra.mxu0 %v1086
      %v1580 = vpop.f32.mrf.mxu0
      %v1581 = vadd.f32 0.0, %v1580
      %v1582 = vpop.f32.mrf.mxu0
      %1583 = vmatprep.mubr.f32.mxu0 0.0
      %1584 = vmatmul.mubr.f32.gmra.mxu0 %v1088
      %v1585 = vpop.f32.mrf.mxu0
      %v1586 = vadd.f32 0.0, %v1585
      %v1587 = vpop.f32.mrf.mxu0
      %1588 = vmatprep.mubr.f32.mxu0 0.0
      %1589 = vmatmul.mubr.f32.gmra.mxu0 %v1090
      %v1590 = vpop.f32.mrf.mxu0
      %v1591 = vadd.f32 0.0, %v1590
      %v1592 = vpop.f32.mrf.mxu0
      %1593 = vmatprep.mubr.f32.mxu0 0.0
      %1594 = vmatmul.mubr.f32.gmra.mxu0 %v1092
      %v1595 = vpop.f32.mrf.mxu0
      %v1596 = vadd.f32 0.0, %v1595
      %v1597 = vpop.f32.mrf.mxu0
      %1598 = vmatprep.mubr.f32.mxu0 0.0
      %1599 = vmatmul.mubr.f32.gmra.mxu0 %v1094
      %v1600 = vpop.f32.mrf.mxu0
      %v1601 = vadd.f32 0.0, %v1600
      %v1602 = vpop.f32.mrf.mxu0
      %1603 = vmatprep.mubr.f32.mxu0 0.0
      %1604 = vmatmul.mubr.f32.gmra.mxu0 %v1096
      %v1605 = vpop.f32.mrf.mxu0
      %v1606 = vadd.f32 0.0, %v1605
      %v1607 = vpop.f32.mrf.mxu0
      %1608 = vmatprep.mubr.f32.mxu0 0.0
      %1609 = vmatmul.mubr.f32.gmra.mxu0 %v1098
      %v1610 = vpop.f32.mrf.mxu0
      %v1611 = vadd.f32 0.0, %v1610
      %v1612 = vpop.f32.mrf.mxu0
      %1613 = vmatprep.mubr.f32.mxu0 0.0
      %1614 = vmatmul.mubr.f32.gmra.mxu0 %v1100
      %v1615 = vpop.f32.mrf.mxu0
      %v1616 = vadd.f32 0.0, %v1615
      %v1617 = vpop.f32.mrf.mxu0
      %1618 = vmatprep.mubr.f32.mxu0 0.0
      %1619 = vmatmul.mubr.f32.gmra.mxu0 %v1102
      %v1620 = vpop.f32.mrf.mxu0
      %v1621 = vadd.f32 0.0, %v1620
      %v1622 = vpop.f32.mrf.mxu0
      %1623 = vmatprep.mubr.f32.mxu0 0.0
      %1624 = vmatmul.mubr.f32.gmra.mxu0 %v1104
      %v1625 = vpop.f32.mrf.mxu0
      %v1626 = vadd.f32 0.0, %v1625
      %v1627 = vpop.f32.mrf.mxu0
      %1628 = vmatprep.mubr.f32.mxu0 0.0
      %1629 = vmatmul.mubr.f32.gmra.mxu0 %v1106
      %v1630 = vpop.f32.mrf.mxu0
      %v1631 = vadd.f32 0.0, %v1630
      %v1632 = vpop.f32.mrf.mxu0
      %1633 = vmatprep.mubr.f32.mxu0 0.0
      %1634 = vmatmul.mubr.f32.gmra.mxu0 %v1108
      %v1635 = vpop.f32.mrf.mxu0
      %v1636 = vadd.f32 0.0, %v1635
      %v1637 = vpop.f32.mrf.mxu0
      %1638 = vmatprep.mubr.f32.mxu0 0.0
      %1639 = vmatmul.mubr.f32.gmra.mxu0 %v1110
      %v1640 = vpop.f32.mrf.mxu0
      %v1641 = vadd.f32 0.0, %v1640
      %v1642 = vpop.f32.mrf.mxu0
      %1643 = vmatprep.mubr.f32.mxu0 0.0
      %1644 = vmatmul.mubr.f32.gmra.mxu0 %v1403
      %v1645 = vpop.f32.mrf.mxu0
      %v1646 = vadd.f32 0.0, %v1645
      %v1647 = vpop.f32.mrf.mxu0
      %1648 = vmatprep.mubr.f32.mxu0 0.0
      %1649 = vmatmul.mubr.f32.gmra.mxu0 %v1405
      %v1650 = vpop.f32.mrf.mxu0
      %v1651 = vadd.f32 0.0, %v1650
      %v1652 = vpop.f32.mrf.mxu0
      %1653 = vdwg.mxu0
      %v1654 = vadd.f32 %v1360, %v1476
      %v1655 = vadd.f32 %v1361, %v1481
      %v1656 = vadd.f32 %v1362, %v1486
      %v1657 = vadd.f32 %v1363, %v1491
      %v1658 = vadd.f32 %v1364, %v1496
      %v1659 = vadd.f32 %v1365, %v1501
      %v1660 = vadd.f32 %v1366, %v1506
      %v1661 = vadd.f32 %v1367, %v1511
      %v1662 = vadd.f32 %v1368, %v1516
      %v1663 = vadd.f32 %v1369, %v1521
      %v1664 = vadd.f32 %v1370, %v1526
      %v1665 = vadd.f32 %v1371, %v1531
      %v1666 = vadd.f32 %v1372, %v1536
      %v1667 = vadd.f32 %v1373, %v1541
      %v1668 = vadd.f32 %v1374, %v1546
      %v1669 = vadd.f32 %v1375, %v1551
      %v1670 = vadd.f32 %v1376, %v1556
      %v1671 = vadd.f32 %v1377, %v1561
      %v1672 = vadd.f32 %v1378, %v1566
      %v1673 = vadd.f32 %v1379, %v1571
      %v1674 = vadd.f32 %v1380, %v1576
      %v1675 = vadd.f32 %v1381, %v1581
      %v1676 = vadd.f32 %v1382, %v1586
      %v1677 = vadd.f32 %v1383, %v1591
      %v1678 = vadd.f32 %v1384, %v1596
      %v1679 = vadd.f32 %v1385, %v1601
      %v1680 = vadd.f32 %v1386, %v1606
      %v1681 = vadd.f32 %v1387, %v1611
      %v1682 = vadd.f32 %v1388, %v1616
      %v1683 = vadd.f32 %v1389, %v1621
      %v1684 = vadd.f32 %v1390, %v1626
      %v1685 = vadd.f32 %v1391, %v1631
      %v1686 = vadd.f32 %v1392, %v1636
      %v1687 = vadd.f32 %v1393, %v1641
      %v1688 = vadd.f32 %v1394, %v1646
      %v1689 = vadd.f32 %v1395, %v1651
      %vm1690 = vcmask 1044480
      %v1691 = vrot.slane %v169, 3
      %v1692 = vrot.slane %v170, 3
      %v1693 = vsel %vm1690, %v1691, %v1692
      %v1694 = vrot.slane %v171, 3
      %v1695 = vsel %vm1690, %v1692, %v1694
      %v1696 = vrot.slane %v172, 3
      %v1697 = vsel %vm1690, %v1694, %v1696
      %v1698 = vrot.slane %v173, 3
      %v1699 = vsel %vm1690, %v1696, %v1698
      %v1700 = vrot.slane %v174, 3
      %v1701 = vsel %vm1690, %v1698, %v1700
      %v1702 = vrot.slane %v175, 3
      %v1703 = vsel %vm1690, %v1700, %v1702
      %v1704 = vrot.slane %v176, 3
      %v1705 = vsel %vm1690, %v1702, %v1704
      %v1706 = vrot.slane %v177, 3
      %v1707 = vsel %vm1690, %v1704, %v1706
      %v1708 = vrot.slane %v178, 3
      %v1709 = vsel %vm1690, %v1706, %v1708
      %v1710 = vrot.slane %v179, 3
      %v1711 = vsel %vm1690, %v1708, %v1710
      %v1712 = vrot.slane %v180, 3
      %v1713 = vsel %vm1690, %v1710, %v1712
      %v1714 = vrot.slane %v181, 3
      %v1715 = vsel %vm1690, %v1712, %v1714
      %v1716 = vrot.slane %v182, 3
      %v1717 = vsel %vm1690, %v1714, %v1716
      %v1718 = vrot.slane %v183, 3
      %v1719 = vsel %vm1690, %v1716, %v1718
      %v1720 = vrot.slane %v184, 3
      %v1721 = vsel %vm1690, %v1718, %v1720
      %v1722 = vrot.slane %v185, 3
      %v1723 = vsel %vm1690, %v1720, %v1722
      %v1724 = vrot.slane %v186, 3
      %v1725 = vsel %vm1690, %v1722, %v1724
      %v1726 = vrot.slane %v187, 3
      %v1727 = vsel %vm1690, %v1724, %v1726
      %v1728 = vrot.slane %v188, 3
      %v1729 = vsel %vm1690, %v1726, %v1728
      %v1730 = vrot.slane %v189, 3
      %v1731 = vsel %vm1690, %v1728, %v1730
      %v1732 = vrot.slane %v190, 3
      %v1733 = vsel %vm1690, %v1730, %v1732
      %v1734 = vrot.slane %v191, 3
      %v1735 = vsel %vm1690, %v1732, %v1734
      %v1736 = vrot.slane %v192, 3
      %v1737 = vsel %vm1690, %v1734, %v1736
      %v1738 = vrot.slane %v193, 3
      %v1739 = vsel %vm1690, %v1736, %v1738
      %v1740 = vrot.slane %v194, 3
      %v1741 = vsel %vm1690, %v1738, %v1740
      %v1742 = vrot.slane %v195, 3
      %v1743 = vsel %vm1690, %v1740, %v1742
      %v1744 = vrot.slane %v196, 3
      %v1745 = vsel %vm1690, %v1742, %v1744
      %v1746 = vrot.slane %v197, 3
      %v1747 = vsel %vm1690, %v1744, %v1746
      %v1748 = vrot.slane %v198, 3
      %v1749 = vsel %vm1690, %v1746, %v1748
      %v1750 = vrot.slane %v199, 3
      %v1751 = vsel %vm1690, %v1748, %v1750
      %v1752 = vrot.slane %v200, 3
      %v1753 = vsel %vm1690, %v1750, %v1752
      %v1754 = vrot.slane %v201, 3
      %v1755 = vsel %vm1690, %v1752, %v1754
      %v1756 = vrot.slane %v202, 3
      %v1757 = vsel %vm1690, %v1754, %v1756
      %v1758 = vrot.slane %v203, 3
      %v1759 = vsel %vm1690, %v1756, %v1758
      %v1760 = vrot.slane %v204, 3
      %v1761 = vsel %vm1690, %v1758, %v1760
      %v1762 = vrot.slane %v205, 3
      %v1763 = vsel %vm1690, %v1760, %v1762
      %v1764 = vsel %vm326, %v1693, 0
      %v1766 = vsel %vm326, %v1695, 0
      %v1768 = vsel %vm326, %v1697, 0
      %v1770 = vsel %vm326, %v1699, 0
      %v1772 = vsel %vm326, %v1701, 0
      %v1774 = vsel %vm326, %v1703, 0
      %v1776 = vsel %vm326, %v1705, 0
      %v1778 = vsel %vm326, %v1707, 0
      %v1780 = vsel %vm326, %v1709, 0
      %v1782 = vsel %vm326, %v1711, 0
      %v1784 = vsel %vm326, %v1713, 0
      %v1786 = vsel %vm326, %v1715, 0
      %v1788 = vsel %vm326, %v1717, 0
      %v1790 = vsel %vm326, %v1719, 0
      %v1792 = vsel %vm326, %v1721, 0
      %v1794 = vsel %vm326, %v1723, 0
      %v1796 = vsel %vm326, %v1725, 0
      %v1798 = vsel %vm326, %v1727, 0
      %v1800 = vsel %vm326, %v1729, 0
      %v1802 = vsel %vm326, %v1731, 0
      %v1804 = vsel %vm326, %v1733, 0
      %v1806 = vsel %vm326, %v1735, 0
      %v1808 = vsel %vm326, %v1737, 0
      %v1810 = vsel %vm326, %v1739, 0
      %v1812 = vsel %vm326, %v1741, 0
      %v1814 = vsel %vm326, %v1743, 0
      %v1816 = vsel %vm326, %v1745, 0
      %v1818 = vsel %vm326, %v1747, 0
      %v1820 = vsel %vm326, %v1749, 0
      %v1822 = vsel %vm326, %v1751, 0
      %v1824 = vsel %vm326, %v1753, 0
      %v1826 = vsel %vm326, %v1755, 0
      %v1828 = vsel %vm326, %v1757, 0
      %v1830 = vsel %vm326, %v1759, 0
      %v1832 = vsel %vm326, %v1761, 0
      %v1834 = vsel %vm326, %v1763, 0
      %v1837 = vsel %vm399, %v210, 0
      %1839 = vmatprep.subr.mxu0 0.0
      %1840 = vmatpush1.msra.mxu0 0.0
      %1841 = vmatprep.subr.mxu0 0.0
      %1842 = vmatpush1.msra.mxu0 0.0
      %1843 = vmatprep.subr.mxu0 0.0
      %1844 = vmatpush1.msra.mxu0 0.0
      %1845 = vmatprep.subr.mxu0 0.0
      %1846 = vmatpush1.msra.mxu0 0.0
      %1847 = vmatprep.subr.mxu0 0.0
      %1848 = vmatpush1.msra.mxu0 0.0
      %1849 = vmatprep.subr.mxu0 0.0
      %1850 = vmatpush1.msra.mxu0 0.0
      %1851 = vmatprep.subr.mxu0 0.0
      %1852 = vmatpush1.msra.mxu0 0.0
      %1853 = vmatprep.subr.mxu0 0.0
      %1854 = vmatpush1.msra.mxu0 0.0
      %1855 = vmatprep.subr.mxu0 0.0
      %1856 = vmatpush1.msra.mxu0 0.0
      %1857 = vmatprep.subr.mxu0 0.0
      %1858 = vmatpush1.msra.mxu0 0.0
      %1859 = vmatprep.subr.mxu0 0.0
      %1860 = vmatpush1.msra.mxu0 0.0
      %1861 = vmatprep.subr.mxu0 0.0
      %1862 = vmatpush1.msra.mxu0 0.0
      %1863 = vmatprep.subr.mxu0 0.0
      %1864 = vmatpush1.msra.mxu0 0.0
      %1865 = vmatprep.subr.mxu0 0.0
      %1866 = vmatpush1.msra.mxu0 0.0
      %1867 = vmatprep.subr.mxu0 0.0
      %1868 = vmatpush1.msra.mxu0 0.0
      %1869 = vmatprep.subr.mxu0 0.0
      %1870 = vmatpush1.msra.mxu0 %v1837
      %1871 = vmatprep.subr.mxu0 0.0
      %1872 = vmatpush2.msra.mxu0 0.0
      %1873 = vmatprep.subr.mxu0 0.0
      %1874 = vmatpush2.msra.mxu0 0.0
      %1875 = vmatprep.subr.mxu0 0.0
      %1876 = vmatpush2.msra.mxu0 0.0
      %1877 = vmatprep.subr.mxu0 0.0
      %1878 = vmatpush2.msra.mxu0 0.0
      %1879 = vmatprep.subr.mxu0 0.0
      %1880 = vmatpush2.msra.mxu0 0.0
      %1881 = vmatprep.subr.mxu0 0.0
      %1882 = vmatpush2.msra.mxu0 0.0
      %1883 = vmatprep.subr.mxu0 0.0
      %1884 = vmatpush2.msra.mxu0 0.0
      %1885 = vmatprep.subr.mxu0 0.0
      %1886 = vmatpush2.msra.mxu0 0.0
      %1887 = vmatprep.subr.mxu0 0.0
      %1888 = vmatpush2.msra.mxu0 0.0
      %1889 = vmatprep.subr.mxu0 0.0
      %1890 = vmatpush2.msra.mxu0 0.0
      %1891 = vmatprep.subr.mxu0 0.0
      %1892 = vmatpush2.msra.mxu0 0.0
      %1893 = vmatprep.subr.mxu0 0.0
      %1894 = vmatpush2.msra.mxu0 0.0
      %1895 = vmatprep.subr.mxu0 0.0
      %1896 = vmatpush2.msra.mxu0 0.0
      %1897 = vmatprep.subr.mxu0 0.0
      %1898 = vmatpush2.msra.mxu0 0.0
      %1899 = vmatprep.subr.mxu0 0.0
      %1900 = vmatpush2.msra.mxu0 0.0
      %1901 = vmatprep.subr.mxu0 0.0
      %1902 = vmatpush2.msra.mxu0 0.0
      %1903 = vmatprep.mubr.f32.mxu0 0.0
      %1904 = vmatmul.mubr.f32.gmra.mxu0 %v1764
      %v1905 = vpop.f32.mrf.mxu0
      %v1906 = vadd.f32 0.0, %v1905
      %v1907 = vpop.f32.mrf.mxu0
      %1908 = vmatprep.mubr.f32.mxu0 0.0
      %1909 = vmatmul.mubr.f32.gmra.mxu0 %v1766
      %v1910 = vpop.f32.mrf.mxu0
      %v1911 = vadd.f32 0.0, %v1910
      %v1912 = vpop.f32.mrf.mxu0
      %1913 = vmatprep.mubr.f32.mxu0 0.0
      %1914 = vmatmul.mubr.f32.gmra.mxu0 %v1768
      %v1915 = vpop.f32.mrf.mxu0
      %v1916 = vadd.f32 0.0, %v1915
      %v1917 = vpop.f32.mrf.mxu0
      %1918 = vmatprep.mubr.f32.mxu0 0.0
      %1919 = vmatmul.mubr.f32.gmra.mxu0 %v1770
      %v1920 = vpop.f32.mrf.mxu0
      %v1921 = vadd.f32 0.0, %v1920
      %v1922 = vpop.f32.mrf.mxu0
      %1923 = vmatprep.mubr.f32.mxu0 0.0
      %1924 = vmatmul.mubr.f32.gmra.mxu0 %v1772
      %v1925 = vpop.f32.mrf.mxu0
      %v1926 = vadd.f32 0.0, %v1925
      %v1927 = vpop.f32.mrf.mxu0
      %1928 = vmatprep.mubr.f32.mxu0 0.0
      %1929 = vmatmul.mubr.f32.gmra.mxu0 %v1774
      %v1930 = vpop.f32.mrf.mxu0
      %v1931 = vadd.f32 0.0, %v1930
      %v1932 = vpop.f32.mrf.mxu0
      %1933 = vmatprep.mubr.f32.mxu0 0.0
      %1934 = vmatmul.mubr.f32.gmra.mxu0 %v1776
      %v1935 = vpop.f32.mrf.mxu0
      %v1936 = vadd.f32 0.0, %v1935
      %v1937 = vpop.f32.mrf.mxu0
      %1938 = vmatprep.mubr.f32.mxu0 0.0
      %1939 = vmatmul.mubr.f32.gmra.mxu0 %v1778
      %v1940 = vpop.f32.mrf.mxu0
      %v1941 = vadd.f32 0.0, %v1940
      %v1942 = vpop.f32.mrf.mxu0
      %1943 = vmatprep.mubr.f32.mxu0 0.0
      %1944 = vmatmul.mubr.f32.gmra.mxu0 %v1780
      %v1945 = vpop.f32.mrf.mxu0
      %v1946 = vadd.f32 0.0, %v1945
      %v1947 = vpop.f32.mrf.mxu0
      %1948 = vmatprep.mubr.f32.mxu0 0.0
      %1949 = vmatmul.mubr.f32.gmra.mxu0 %v1782
      %v1950 = vpop.f32.mrf.mxu0
      %v1951 = vadd.f32 0.0, %v1950
      %v1952 = vpop.f32.mrf.mxu0
      %1953 = vmatprep.mubr.f32.mxu0 0.0
      %1954 = vmatmul.mubr.f32.gmra.mxu0 %v1784
      %v1955 = vpop.f32.mrf.mxu0
      %v1956 = vadd.f32 0.0, %v1955
      %v1957 = vpop.f32.mrf.mxu0
      %1958 = vmatprep.mubr.f32.mxu0 0.0
      %1959 = vmatmul.mubr.f32.gmra.mxu0 %v1786
      %v1960 = vpop.f32.mrf.mxu0
      %v1961 = vadd.f32 0.0, %v1960
      %v1962 = vpop.f32.mrf.mxu0
      %1963 = vmatprep.mubr.f32.mxu0 0.0
      %1964 = vmatmul.mubr.f32.gmra.mxu0 %v1788
      %v1965 = vpop.f32.mrf.mxu0
      %v1966 = vadd.f32 0.0, %v1965
      %v1967 = vpop.f32.mrf.mxu0
      %1968 = vmatprep.mubr.f32.mxu0 0.0
      %1969 = vmatmul.mubr.f32.gmra.mxu0 %v1790
      %v1970 = vpop.f32.mrf.mxu0
      %v1971 = vadd.f32 0.0, %v1970
      %v1972 = vpop.f32.mrf.mxu0
      %1973 = vmatprep.mubr.f32.mxu0 0.0
      %1974 = vmatmul.mubr.f32.gmra.mxu0 %v1792
      %v1975 = vpop.f32.mrf.mxu0
      %v1976 = vadd.f32 0.0, %v1975
      %v1977 = vpop.f32.mrf.mxu0
      %1978 = vmatprep.mubr.f32.mxu0 0.0
      %1979 = vmatmul.mubr.f32.gmra.mxu0 %v1794
      %v1980 = vpop.f32.mrf.mxu0
      %v1981 = vadd.f32 0.0, %v1980
      %v1982 = vpop.f32.mrf.mxu0
      %1983 = vmatprep.mubr.f32.mxu0 0.0
      %1984 = vmatmul.mubr.f32.gmra.mxu0 %v1796
      %v1985 = vpop.f32.mrf.mxu0
      %v1986 = vadd.f32 0.0, %v1985
      %v1987 = vpop.f32.mrf.mxu0
      %1988 = vmatprep.mubr.f32.mxu0 0.0
      %1989 = vmatmul.mubr.f32.gmra.mxu0 %v1798
      %v1990 = vpop.f32.mrf.mxu0
      %v1991 = vadd.f32 0.0, %v1990
      %v1992 = vpop.f32.mrf.mxu0
      %1993 = vmatprep.mubr.f32.mxu0 0.0
      %1994 = vmatmul.mubr.f32.gmra.mxu0 %v1800
      %v1995 = vpop.f32.mrf.mxu0
      %v1996 = vadd.f32 0.0, %v1995
      %v1997 = vpop.f32.mrf.mxu0
      %1998 = vmatprep.mubr.f32.mxu0 0.0
      %1999 = vmatmul.mubr.f32.gmra.mxu0 %v1802
      %v2000 = vpop.f32.mrf.mxu0
      %v2001 = vadd.f32 0.0, %v2000
      %v2002 = vpop.f32.mrf.mxu0
      %2003 = vmatprep.mubr.f32.mxu0 0.0
      %2004 = vmatmul.mubr.f32.gmra.mxu0 %v1804
      %v2005 = vpop.f32.mrf.mxu0
      %v2006 = vadd.f32 0.0, %v2005
      %v2007 = vpop.f32.mrf.mxu0
      %2008 = vmatprep.mubr.f32.mxu0 0.0
      %2009 = vmatmul.mubr.f32.gmra.mxu0 %v1806
      %v2010 = vpop.f32.mrf.mxu0
      %v2011 = vadd.f32 0.0, %v2010
      %v2012 = vpop.f32.mrf.mxu0
      %2013 = vmatprep.mubr.f32.mxu0 0.0
      %2014 = vmatmul.mubr.f32.gmra.mxu0 %v1808
      %v2015 = vpop.f32.mrf.mxu0
      %v2016 = vadd.f32 0.0, %v2015
      %v2017 = vpop.f32.mrf.mxu0
      %2018 = vmatprep.mubr.f32.mxu0 0.0
      %2019 = vmatmul.mubr.f32.gmra.mxu0 %v1810
      %v2020 = vpop.f32.mrf.mxu0
      %v2021 = vadd.f32 0.0, %v2020
      %v2022 = vpop.f32.mrf.mxu0
      %2023 = vmatprep.mubr.f32.mxu0 0.0
      %2024 = vmatmul.mubr.f32.gmra.mxu0 %v1812
      %v2025 = vpop.f32.mrf.mxu0
      %v2026 = vadd.f32 0.0, %v2025
      %v2027 = vpop.f32.mrf.mxu0
      %2028 = vmatprep.mubr.f32.mxu0 0.0
      %2029 = vmatmul.mubr.f32.gmra.mxu0 %v1814
      %v2030 = vpop.f32.mrf.mxu0
      %v2031 = vadd.f32 0.0, %v2030
      %v2032 = vpop.f32.mrf.mxu0
      %2033 = vmatprep.mubr.f32.mxu0 0.0
      %2034 = vmatmul.mubr.f32.gmra.mxu0 %v1816
      %v2035 = vpop.f32.mrf.mxu0
      %v2036 = vadd.f32 0.0, %v2035
      %v2037 = vpop.f32.mrf.mxu0
      %2038 = vmatprep.mubr.f32.mxu0 0.0
      %2039 = vmatmul.mubr.f32.gmra.mxu0 %v1818
      %v2040 = vpop.f32.mrf.mxu0
      %v2041 = vadd.f32 0.0, %v2040
      %v2042 = vpop.f32.mrf.mxu0
      %2043 = vmatprep.mubr.f32.mxu0 0.0
      %2044 = vmatmul.mubr.f32.gmra.mxu0 %v1820
      %v2045 = vpop.f32.mrf.mxu0
      %v2046 = vadd.f32 0.0, %v2045
      %v2047 = vpop.f32.mrf.mxu0
      %2048 = vmatprep.mubr.f32.mxu0 0.0
      %2049 = vmatmul.mubr.f32.gmra.mxu0 %v1822
      %v2050 = vpop.f32.mrf.mxu0
      %v2051 = vadd.f32 0.0, %v2050
      %v2052 = vpop.f32.mrf.mxu0
      %2053 = vmatprep.mubr.f32.mxu0 0.0
      %2054 = vmatmul.mubr.f32.gmra.mxu0 %v1824
      %v2055 = vpop.f32.mrf.mxu0
      %v2056 = vadd.f32 0.0, %v2055
      %v2057 = vpop.f32.mrf.mxu0
      %2058 = vmatprep.mubr.f32.mxu0 0.0
      %2059 = vmatmul.mubr.f32.gmra.mxu0 %v1826
      %v2060 = vpop.f32.mrf.mxu0
      %v2061 = vadd.f32 0.0, %v2060
      %v2062 = vpop.f32.mrf.mxu0
      %2063 = vmatprep.mubr.f32.mxu0 0.0
      %2064 = vmatmul.mubr.f32.gmra.mxu0 %v1828
      %v2065 = vpop.f32.mrf.mxu0
      %v2066 = vadd.f32 0.0, %v2065
      %v2067 = vpop.f32.mrf.mxu0
      %2068 = vmatprep.mubr.f32.mxu0 0.0
      %2069 = vmatmul.mubr.f32.gmra.mxu0 %v1830
      %v2070 = vpop.f32.mrf.mxu0
      %v2071 = vadd.f32 0.0, %v2070
      %v2072 = vpop.f32.mrf.mxu0
      %2073 = vmatprep.mubr.f32.mxu0 0.0
      %2074 = vmatmul.mubr.f32.gmra.mxu0 %v1832
      %v2075 = vpop.f32.mrf.mxu0
      %v2076 = vadd.f32 0.0, %v2075
      %v2077 = vpop.f32.mrf.mxu0
      %2078 = vmatprep.mubr.f32.mxu0 0.0
      %2079 = vmatmul.mubr.f32.gmra.mxu0 %v1834
      %v2080 = vpop.f32.mrf.mxu0
      %v2081 = vadd.f32 0.0, %v2080
      %v2082 = vpop.f32.mrf.mxu0
      %2083 = vdwg.mxu0
      %v2084 = vadd.f32 %v1654, %v1906
      %v2085 = vadd.f32 %v1655, %v1911
      %v2086 = vadd.f32 %v1656, %v1916
      %v2087 = vadd.f32 %v1657, %v1921
      %v2088 = vadd.f32 %v1658, %v1926
      %v2089 = vadd.f32 %v1659, %v1931
      %v2090 = vadd.f32 %v1660, %v1936
      %v2091 = vadd.f32 %v1661, %v1941
      %v2092 = vadd.f32 %v1662, %v1946
      %v2093 = vadd.f32 %v1663, %v1951
      %v2094 = vadd.f32 %v1664, %v1956
      %v2095 = vadd.f32 %v1665, %v1961
      %v2096 = vadd.f32 %v1666, %v1966
      %v2097 = vadd.f32 %v1667, %v1971
      %v2098 = vadd.f32 %v1668, %v1976
      %v2099 = vadd.f32 %v1669, %v1981
      %v2100 = vadd.f32 %v1670, %v1986
      %v2101 = vadd.f32 %v1671, %v1991
      %v2102 = vadd.f32 %v1672, %v1996
      %v2103 = vadd.f32 %v1673, %v2001
      %v2104 = vadd.f32 %v1674, %v2006
      %v2105 = vadd.f32 %v1675, %v2011
      %v2106 = vadd.f32 %v1676, %v2016
      %v2107 = vadd.f32 %v1677, %v2021
      %v2108 = vadd.f32 %v1678, %v2026
      %v2109 = vadd.f32 %v1679, %v2031
      %v2110 = vadd.f32 %v1680, %v2036
      %v2111 = vadd.f32 %v1681, %v2041
      %v2112 = vadd.f32 %v1682, %v2046
      %v2113 = vadd.f32 %v1683, %v2051
      %v2114 = vadd.f32 %v1684, %v2056
      %v2115 = vadd.f32 %v1685, %v2061
      %v2116 = vadd.f32 %v1686, %v2066
      %v2117 = vadd.f32 %v1687, %v2071
      %v2118 = vadd.f32 %v1688, %v2076
      %v2119 = vadd.f32 %v1689, %v2081
      %v2120 = vrot.slane %v169, 4
      %v2121 = vrot.slane %v170, 4
      %v2122 = vsel %vm399, %v2120, %v2121
      %v2123 = vrot.slane %v171, 4
      %v2124 = vsel %vm399, %v2121, %v2123
      %v2125 = vrot.slane %v172, 4
      %v2126 = vsel %vm399, %v2123, %v2125
      %v2127 = vrot.slane %v173, 4
      %v2128 = vsel %vm399, %v2125, %v2127
      %v2129 = vrot.slane %v174, 4
      %v2130 = vsel %vm399, %v2127, %v2129
      %v2131 = vrot.slane %v175, 4
      %v2132 = vsel %vm399, %v2129, %v2131
      %v2133 = vrot.slane %v176, 4
      %v2134 = vsel %vm399, %v2131, %v2133
      %v2135 = vrot.slane %v177, 4
      %v2136 = vsel %vm399, %v2133, %v2135
      %v2137 = vrot.slane %v178, 4
      %v2138 = vsel %vm399, %v2135, %v2137
      %v2139 = vrot.slane %v179, 4
      %v2140 = vsel %vm399, %v2137, %v2139
      %v2141 = vrot.slane %v180, 4
      %v2142 = vsel %vm399, %v2139, %v2141
      %v2143 = vrot.slane %v181, 4
      %v2144 = vsel %vm399, %v2141, %v2143
      %v2145 = vrot.slane %v182, 4
      %v2146 = vsel %vm399, %v2143, %v2145
      %v2147 = vrot.slane %v183, 4
      %v2148 = vsel %vm399, %v2145, %v2147
      %v2149 = vrot.slane %v184, 4
      %v2150 = vsel %vm399, %v2147, %v2149
      %v2151 = vrot.slane %v185, 4
      %v2152 = vsel %vm399, %v2149, %v2151
      %v2153 = vrot.slane %v186, 4
      %v2154 = vsel %vm399, %v2151, %v2153
      %v2155 = vrot.slane %v187, 4
      %v2156 = vsel %vm399, %v2153, %v2155
      %v2157 = vrot.slane %v188, 4
      %v2158 = vsel %vm399, %v2155, %v2157
      %v2159 = vrot.slane %v189, 4
      %v2160 = vsel %vm399, %v2157, %v2159
      %v2161 = vrot.slane %v190, 4
      %v2162 = vsel %vm399, %v2159, %v2161
      %v2163 = vrot.slane %v191, 4
      %v2164 = vsel %vm399, %v2161, %v2163
      %v2165 = vrot.slane %v192, 4
      %v2166 = vsel %vm399, %v2163, %v2165
      %v2167 = vrot.slane %v193, 4
      %v2168 = vsel %vm399, %v2165, %v2167
      %v2169 = vrot.slane %v194, 4
      %v2170 = vsel %vm399, %v2167, %v2169
      %v2171 = vrot.slane %v195, 4
      %v2172 = vsel %vm399, %v2169, %v2171
      %v2173 = vrot.slane %v196, 4
      %v2174 = vsel %vm399, %v2171, %v2173
      %v2175 = vrot.slane %v197, 4
      %v2176 = vsel %vm399, %v2173, %v2175
      %v2177 = vrot.slane %v198, 4
      %v2178 = vsel %vm399, %v2175, %v2177
      %v2179 = vrot.slane %v199, 4
      %v2180 = vsel %vm399, %v2177, %v2179
      %v2181 = vrot.slane %v200, 4
      %v2182 = vsel %vm399, %v2179, %v2181
      %v2183 = vrot.slane %v201, 4
      %v2184 = vsel %vm399, %v2181, %v2183
      %v2185 = vrot.slane %v202, 4
      %v2186 = vsel %vm399, %v2183, %v2185
      %v2187 = vrot.slane %v203, 4
      %v2188 = vsel %vm399, %v2185, %v2187
      %v2189 = vrot.slane %v204, 4
      %v2190 = vsel %vm399, %v2187, %v2189
      %v2191 = vrot.slane %v205, 4
      %v2192 = vsel %vm399, %v2189, %v2191
      %v2193 = vrot.slane %v210, 4
      %v2194 = vsel %vm326, %v2122, 0
      %v2196 = vsel %vm326, %v2124, 0
      %v2198 = vsel %vm326, %v2126, 0
      %v2200 = vsel %vm326, %v2128, 0
      %v2202 = vsel %vm326, %v2130, 0
      %v2204 = vsel %vm326, %v2132, 0
      %v2206 = vsel %vm326, %v2134, 0
      %v2208 = vsel %vm326, %v2136, 0
      %v2210 = vsel %vm326, %v2138, 0
      %v2212 = vsel %vm326, %v2140, 0
      %v2214 = vsel %vm326, %v2142, 0
      %v2216 = vsel %vm326, %v2144, 0
      %v2218 = vsel %vm326, %v2146, 0
      %v2220 = vsel %vm326, %v2148, 0
      %v2222 = vsel %vm326, %v2150, 0
      %v2224 = vsel %vm326, %v2152, 0
      %v2226 = vsel %vm326, %v2154, 0
      %v2228 = vsel %vm326, %v2156, 0
      %v2230 = vsel %vm326, %v2158, 0
      %v2232 = vsel %vm326, %v2160, 0
      %v2234 = vsel %vm326, %v2162, 0
      %v2236 = vsel %vm326, %v2164, 0
      %v2238 = vsel %vm326, %v2166, 0
      %v2240 = vsel %vm326, %v2168, 0
      %v2242 = vsel %vm326, %v2170, 0
      %v2244 = vsel %vm326, %v2172, 0
      %v2246 = vsel %vm326, %v2174, 0
      %v2248 = vsel %vm326, %v2176, 0
      %v2250 = vsel %vm326, %v2178, 0
      %v2252 = vsel %vm326, %v2180, 0
      %v2254 = vsel %vm326, %v2182, 0
      %v2256 = vsel %vm326, %v2184, 0
      %v2258 = vsel %vm326, %v2186, 0
      %v2260 = vsel %vm326, %v2188, 0
      %v2262 = vsel %vm326, %v2190, 0
      %v2264 = vsel %vm326, %v2192, 0
      %v2266 = vsel %vm399, %v2193, 0
      %2268 = vmatprep.subr.mxu0 0.0
      %2269 = vmatpush1.msra.mxu0 0.0
      %2270 = vmatprep.subr.mxu0 0.0
      %2271 = vmatpush1.msra.mxu0 0.0
      %2272 = vmatprep.subr.mxu0 0.0
      %2273 = vmatpush1.msra.mxu0 0.0
      %2274 = vmatprep.subr.mxu0 0.0
      %2275 = vmatpush1.msra.mxu0 0.0
      %2276 = vmatprep.subr.mxu0 0.0
      %2277 = vmatpush1.msra.mxu0 0.0
      %2278 = vmatprep.subr.mxu0 0.0
      %2279 = vmatpush1.msra.mxu0 0.0
      %2280 = vmatprep.subr.mxu0 0.0
      %2281 = vmatpush1.msra.mxu0 0.0
      %2282 = vmatprep.subr.mxu0 0.0
      %2283 = vmatpush1.msra.mxu0 0.0
      %2284 = vmatprep.subr.mxu0 0.0
      %2285 = vmatpush1.msra.mxu0 0.0
      %2286 = vmatprep.subr.mxu0 0.0
      %2287 = vmatpush1.msra.mxu0 0.0
      %2288 = vmatprep.subr.mxu0 0.0
      %2289 = vmatpush1.msra.mxu0 0.0
      %2290 = vmatprep.subr.mxu0 0.0
      %2291 = vmatpush1.msra.mxu0 0.0
      %2292 = vmatprep.subr.mxu0 0.0
      %2293 = vmatpush1.msra.mxu0 0.0
      %2294 = vmatprep.subr.mxu0 0.0
      %2295 = vmatpush1.msra.mxu0 0.0
      %2296 = vmatprep.subr.mxu0 0.0
      %2297 = vmatpush1.msra.mxu0 0.0
      %2298 = vmatprep.subr.mxu0 0.0
      %2299 = vmatpush1.msra.mxu0 %v2266
      %2300 = vmatprep.subr.mxu0 0.0
      %2301 = vmatpush2.msra.mxu0 0.0
      %2302 = vmatprep.subr.mxu0 0.0
      %2303 = vmatpush2.msra.mxu0 0.0
      %2304 = vmatprep.subr.mxu0 0.0
      %2305 = vmatpush2.msra.mxu0 0.0
      %2306 = vmatprep.subr.mxu0 0.0
      %2307 = vmatpush2.msra.mxu0 0.0
      %2308 = vmatprep.subr.mxu0 0.0
      %2309 = vmatpush2.msra.mxu0 0.0
      %2310 = vmatprep.subr.mxu0 0.0
      %2311 = vmatpush2.msra.mxu0 0.0
      %2312 = vmatprep.subr.mxu0 0.0
      %2313 = vmatpush2.msra.mxu0 0.0
      %2314 = vmatprep.subr.mxu0 0.0
      %2315 = vmatpush2.msra.mxu0 0.0
      %2316 = vmatprep.subr.mxu0 0.0
      %2317 = vmatpush2.msra.mxu0 0.0
      %2318 = vmatprep.subr.mxu0 0.0
      %2319 = vmatpush2.msra.mxu0 0.0
      %2320 = vmatprep.subr.mxu0 0.0
      %2321 = vmatpush2.msra.mxu0 0.0
      %2322 = vmatprep.subr.mxu0 0.0
      %2323 = vmatpush2.msra.mxu0 0.0
      %2324 = vmatprep.subr.mxu0 0.0
      %2325 = vmatpush2.msra.mxu0 0.0
      %2326 = vmatprep.subr.mxu0 0.0
      %2327 = vmatpush2.msra.mxu0 0.0
      %2328 = vmatprep.subr.mxu0 0.0
      %2329 = vmatpush2.msra.mxu0 0.0
      %2330 = vmatprep.subr.mxu0 0.0
      %2331 = vmatpush2.msra.mxu0 0.0
      %2332 = vmatprep.mubr.f32.mxu0 0.0
      %2333 = vmatmul.mubr.f32.gmra.mxu0 %v2194
      %v2334 = vpop.f32.mrf.mxu0
      %v2335 = vadd.f32 0.0, %v2334
      %v2336 = vpop.f32.mrf.mxu0
      %2337 = vmatprep.mubr.f32.mxu0 0.0
      %2338 = vmatmul.mubr.f32.gmra.mxu0 %v2196
      %v2339 = vpop.f32.mrf.mxu0
      %v2340 = vadd.f32 0.0, %v2339
      %v2341 = vpop.f32.mrf.mxu0
      %2342 = vmatprep.mubr.f32.mxu0 0.0
      %2343 = vmatmul.mubr.f32.gmra.mxu0 %v2198
      %v2344 = vpop.f32.mrf.mxu0
      %v2345 = vadd.f32 0.0, %v2344
      %v2346 = vpop.f32.mrf.mxu0
      %2347 = vmatprep.mubr.f32.mxu0 0.0
      %2348 = vmatmul.mubr.f32.gmra.mxu0 %v2200
      %v2349 = vpop.f32.mrf.mxu0
      %v2350 = vadd.f32 0.0, %v2349
      %v2351 = vpop.f32.mrf.mxu0
      %2352 = vmatprep.mubr.f32.mxu0 0.0
      %2353 = vmatmul.mubr.f32.gmra.mxu0 %v2202
      %v2354 = vpop.f32.mrf.mxu0
      %v2355 = vadd.f32 0.0, %v2354
      %v2356 = vpop.f32.mrf.mxu0
      %2357 = vmatprep.mubr.f32.mxu0 0.0
      %2358 = vmatmul.mubr.f32.gmra.mxu0 %v2204
      %v2359 = vpop.f32.mrf.mxu0
      %v2360 = vadd.f32 0.0, %v2359
      %v2361 = vpop.f32.mrf.mxu0
      %2362 = vmatprep.mubr.f32.mxu0 0.0
      %2363 = vmatmul.mubr.f32.gmra.mxu0 %v2206
      %v2364 = vpop.f32.mrf.mxu0
      %v2365 = vadd.f32 0.0, %v2364
      %v2366 = vpop.f32.mrf.mxu0
      %2367 = vmatprep.mubr.f32.mxu0 0.0
      %2368 = vmatmul.mubr.f32.gmra.mxu0 %v2208
      %v2369 = vpop.f32.mrf.mxu0
      %v2370 = vadd.f32 0.0, %v2369
      %v2371 = vpop.f32.mrf.mxu0
      %2372 = vmatprep.mubr.f32.mxu0 0.0
      %2373 = vmatmul.mubr.f32.gmra.mxu0 %v2210
      %v2374 = vpop.f32.mrf.mxu0
      %v2375 = vadd.f32 0.0, %v2374
      %v2376 = vpop.f32.mrf.mxu0
      %2377 = vmatprep.mubr.f32.mxu0 0.0
      %2378 = vmatmul.mubr.f32.gmra.mxu0 %v2212
      %v2379 = vpop.f32.mrf.mxu0
      %v2380 = vadd.f32 0.0, %v2379
      %v2381 = vpop.f32.mrf.mxu0
      %2382 = vmatprep.mubr.f32.mxu0 0.0
      %2383 = vmatmul.mubr.f32.gmra.mxu0 %v2214
      %v2384 = vpop.f32.mrf.mxu0
      %v2385 = vadd.f32 0.0, %v2384
      %v2386 = vpop.f32.mrf.mxu0
      %2387 = vmatprep.mubr.f32.mxu0 0.0
      %2388 = vmatmul.mubr.f32.gmra.mxu0 %v2216
      %v2389 = vpop.f32.mrf.mxu0
      %v2390 = vadd.f32 0.0, %v2389
      %v2391 = vpop.f32.mrf.mxu0
      %2392 = vmatprep.mubr.f32.mxu0 0.0
      %2393 = vmatmul.mubr.f32.gmra.mxu0 %v2218
      %v2394 = vpop.f32.mrf.mxu0
      %v2395 = vadd.f32 0.0, %v2394
      %v2396 = vpop.f32.mrf.mxu0
      %2397 = vmatprep.mubr.f32.mxu0 0.0
      %2398 = vmatmul.mubr.f32.gmra.mxu0 %v2220
      %v2399 = vpop.f32.mrf.mxu0
      %v2400 = vadd.f32 0.0, %v2399
      %v2401 = vpop.f32.mrf.mxu0
      %2402 = vmatprep.mubr.f32.mxu0 0.0
      %2403 = vmatmul.mubr.f32.gmra.mxu0 %v2222
      %v2404 = vpop.f32.mrf.mxu0
      %v2405 = vadd.f32 0.0, %v2404
      %v2406 = vpop.f32.mrf.mxu0
      %2407 = vmatprep.mubr.f32.mxu0 0.0
      %2408 = vmatmul.mubr.f32.gmra.mxu0 %v2224
      %v2409 = vpop.f32.mrf.mxu0
      %v2410 = vadd.f32 0.0, %v2409
      %v2411 = vpop.f32.mrf.mxu0
      %2412 = vmatprep.mubr.f32.mxu0 0.0
      %2413 = vmatmul.mubr.f32.gmra.mxu0 %v2226
      %v2414 = vpop.f32.mrf.mxu0
      %v2415 = vadd.f32 0.0, %v2414
      %v2416 = vpop.f32.mrf.mxu0
      %2417 = vmatprep.mubr.f32.mxu0 0.0
      %2418 = vmatmul.mubr.f32.gmra.mxu0 %v2228
      %v2419 = vpop.f32.mrf.mxu0
      %v2420 = vadd.f32 0.0, %v2419
      %v2421 = vpop.f32.mrf.mxu0
      %2422 = vmatprep.mubr.f32.mxu0 0.0
      %2423 = vmatmul.mubr.f32.gmra.mxu0 %v2230
      %v2424 = vpop.f32.mrf.mxu0
      %v2425 = vadd.f32 0.0, %v2424
      %v2426 = vpop.f32.mrf.mxu0
      %2427 = vmatprep.mubr.f32.mxu0 0.0
      %2428 = vmatmul.mubr.f32.gmra.mxu0 %v2232
      %v2429 = vpop.f32.mrf.mxu0
      %v2430 = vadd.f32 0.0, %v2429
      %v2431 = vpop.f32.mrf.mxu0
      %2432 = vmatprep.mubr.f32.mxu0 0.0
      %2433 = vmatmul.mubr.f32.gmra.mxu0 %v2234
      %v2434 = vpop.f32.mrf.mxu0
      %v2435 = vadd.f32 0.0, %v2434
      %v2436 = vpop.f32.mrf.mxu0
      %2437 = vmatprep.mubr.f32.mxu0 0.0
      %2438 = vmatmul.mubr.f32.gmra.mxu0 %v2236
      %v2439 = vpop.f32.mrf.mxu0
      %v2440 = vadd.f32 0.0, %v2439
      %v2441 = vpop.f32.mrf.mxu0
      %2442 = vmatprep.mubr.f32.mxu0 0.0
      %2443 = vmatmul.mubr.f32.gmra.mxu0 %v2238
      %v2444 = vpop.f32.mrf.mxu0
      %v2445 = vadd.f32 0.0, %v2444
      %v2446 = vpop.f32.mrf.mxu0
      %2447 = vmatprep.mubr.f32.mxu0 0.0
      %2448 = vmatmul.mubr.f32.gmra.mxu0 %v2240
      %v2449 = vpop.f32.mrf.mxu0
      %v2450 = vadd.f32 0.0, %v2449
      %v2451 = vpop.f32.mrf.mxu0
      %2452 = vmatprep.mubr.f32.mxu0 0.0
      %2453 = vmatmul.mubr.f32.gmra.mxu0 %v2242
      %v2454 = vpop.f32.mrf.mxu0
      %v2455 = vadd.f32 0.0, %v2454
      %v2456 = vpop.f32.mrf.mxu0
      %2457 = vmatprep.mubr.f32.mxu0 0.0
      %2458 = vmatmul.mubr.f32.gmra.mxu0 %v2244
      %v2459 = vpop.f32.mrf.mxu0
      %v2460 = vadd.f32 0.0, %v2459
      %v2461 = vpop.f32.mrf.mxu0
      %2462 = vmatprep.mubr.f32.mxu0 0.0
      %2463 = vmatmul.mubr.f32.gmra.mxu0 %v2246
      %v2464 = vpop.f32.mrf.mxu0
      %v2465 = vadd.f32 0.0, %v2464
      %v2466 = vpop.f32.mrf.mxu0
      %2467 = vmatprep.mubr.f32.mxu0 0.0
      %2468 = vmatmul.mubr.f32.gmra.mxu0 %v2248
      %v2469 = vpop.f32.mrf.mxu0
      %v2470 = vadd.f32 0.0, %v2469
      %v2471 = vpop.f32.mrf.mxu0
      %2472 = vmatprep.mubr.f32.mxu0 0.0
      %2473 = vmatmul.mubr.f32.gmra.mxu0 %v2250
      %v2474 = vpop.f32.mrf.mxu0
      %v2475 = vadd.f32 0.0, %v2474
      %v2476 = vpop.f32.mrf.mxu0
      %2477 = vmatprep.mubr.f32.mxu0 0.0
      %2478 = vmatmul.mubr.f32.gmra.mxu0 %v2252
      %v2479 = vpop.f32.mrf.mxu0
      %v2480 = vadd.f32 0.0, %v2479
      %v2481 = vpop.f32.mrf.mxu0
      %2482 = vmatprep.mubr.f32.mxu0 0.0
      %2483 = vmatmul.mubr.f32.gmra.mxu0 %v2254
      %v2484 = vpop.f32.mrf.mxu0
      %v2485 = vadd.f32 0.0, %v2484
      %v2486 = vpop.f32.mrf.mxu0
      %2487 = vmatprep.mubr.f32.mxu0 0.0
      %2488 = vmatmul.mubr.f32.gmra.mxu0 %v2256
      %v2489 = vpop.f32.mrf.mxu0
      %v2490 = vadd.f32 0.0, %v2489
      %v2491 = vpop.f32.mrf.mxu0
      %2492 = vmatprep.mubr.f32.mxu0 0.0
      %2493 = vmatmul.mubr.f32.gmra.mxu0 %v2258
      %v2494 = vpop.f32.mrf.mxu0
      %v2495 = vadd.f32 0.0, %v2494
      %v2496 = vpop.f32.mrf.mxu0
      %2497 = vmatprep.mubr.f32.mxu0 0.0
      %2498 = vmatmul.mubr.f32.gmra.mxu0 %v2260
      %v2499 = vpop.f32.mrf.mxu0
      %v2500 = vadd.f32 0.0, %v2499
      %v2501 = vpop.f32.mrf.mxu0
      %2502 = vmatprep.mubr.f32.mxu0 0.0
      %2503 = vmatmul.mubr.f32.gmra.mxu0 %v2262
      %v2504 = vpop.f32.mrf.mxu0
      %v2505 = vadd.f32 0.0, %v2504
      %v2506 = vpop.f32.mrf.mxu0
      %2507 = vmatprep.mubr.f32.mxu0 0.0
      %2508 = vmatmul.mubr.f32.gmra.mxu0 %v2264
      %v2509 = vpop.f32.mrf.mxu0
      %v2510 = vadd.f32 0.0, %v2509
      %v2511 = vpop.f32.mrf.mxu0
      %2512 = vdwg.mxu0
      %v2513 = vadd.f32 %v2084, %v2335
      %v2514 = vadd.f32 %v2085, %v2340
      %v2515 = vadd.f32 %v2086, %v2345
      %v2516 = vadd.f32 %v2087, %v2350
      %v2517 = vadd.f32 %v2088, %v2355
      %v2518 = vadd.f32 %v2089, %v2360
      %v2519 = vadd.f32 %v2090, %v2365
      %v2520 = vadd.f32 %v2091, %v2370
      %v2521 = vadd.f32 %v2092, %v2375
      %v2522 = vadd.f32 %v2093, %v2380
      %v2523 = vadd.f32 %v2094, %v2385
      %v2524 = vadd.f32 %v2095, %v2390
      %v2525 = vadd.f32 %v2096, %v2395
      %v2526 = vadd.f32 %v2097, %v2400
      %v2527 = vadd.f32 %v2098, %v2405
      %v2528 = vadd.f32 %v2099, %v2410
      %v2529 = vadd.f32 %v2100, %v2415
      %v2530 = vadd.f32 %v2101, %v2420
      %v2531 = vadd.f32 %v2102, %v2425
      %v2532 = vadd.f32 %v2103, %v2430
      %v2533 = vadd.f32 %v2104, %v2435
      %v2534 = vadd.f32 %v2105, %v2440
      %v2535 = vadd.f32 %v2106, %v2445
      %v2536 = vadd.f32 %v2107, %v2450
      %v2537 = vadd.f32 %v2108, %v2455
      %v2538 = vadd.f32 %v2109, %v2460
      %v2539 = vadd.f32 %v2110, %v2465
      %v2540 = vadd.f32 %v2111, %v2470
      %v2541 = vadd.f32 %v2112, %v2475
      %v2542 = vadd.f32 %v2113, %v2480
      %v2543 = vadd.f32 %v2114, %v2485
      %v2544 = vadd.f32 %v2115, %v2490
      %v2545 = vadd.f32 %v2116, %v2495
      %v2546 = vadd.f32 %v2117, %v2500
      %v2547 = vadd.f32 %v2118, %v2505
      %v2548 = vadd.f32 %v2119, %v2510
      %v2551 = vrot.slane %v206, 4
      %v2552 = vsel %vm399, %v2191, %v2551
      %v2553 = vrot.slane %v207, 4
      %v2554 = vsel %vm399, %v2551, %v2553
      %v2555 = vsel %vm326, %v2552, 0
      %v2557 = vsel %vm326, %v2554, 0
      %v2560 = vsel %vm399, %v211, 0
      %2562 = vmatprep.subr.mxu0 0.0
      %2563 = vmatpush1.msra.mxu0 0.0
      %2564 = vmatprep.subr.mxu0 0.0
      %2565 = vmatpush1.msra.mxu0 0.0
      %2566 = vmatprep.subr.mxu0 0.0
      %2567 = vmatpush1.msra.mxu0 0.0
      %2568 = vmatprep.subr.mxu0 0.0
      %2569 = vmatpush1.msra.mxu0 0.0
      %2570 = vmatprep.subr.mxu0 0.0
      %2571 = vmatpush1.msra.mxu0 0.0
      %2572 = vmatprep.subr.mxu0 0.0
      %2573 = vmatpush1.msra.mxu0 0.0
      %2574 = vmatprep.subr.mxu0 0.0
      %2575 = vmatpush1.msra.mxu0 0.0
      %2576 = vmatprep.subr.mxu0 0.0
      %2577 = vmatpush1.msra.mxu0 0.0
      %2578 = vmatprep.subr.mxu0 0.0
      %2579 = vmatpush1.msra.mxu0 0.0
      %2580 = vmatprep.subr.mxu0 0.0
      %2581 = vmatpush1.msra.mxu0 0.0
      %2582 = vmatprep.subr.mxu0 0.0
      %2583 = vmatpush1.msra.mxu0 0.0
      %2584 = vmatprep.subr.mxu0 0.0
      %2585 = vmatpush1.msra.mxu0 0.0
      %2586 = vmatprep.subr.mxu0 0.0
      %2587 = vmatpush1.msra.mxu0 0.0
      %2588 = vmatprep.subr.mxu0 0.0
      %2589 = vmatpush1.msra.mxu0 0.0
      %2590 = vmatprep.subr.mxu0 0.0
      %2591 = vmatpush1.msra.mxu0 0.0
      %2592 = vmatprep.subr.mxu0 0.0
      %2593 = vmatpush1.msra.mxu0 %v2560
      %2594 = vmatprep.subr.mxu0 0.0
      %2595 = vmatpush2.msra.mxu0 0.0
      %2596 = vmatprep.subr.mxu0 0.0
      %2597 = vmatpush2.msra.mxu0 0.0
      %2598 = vmatprep.subr.mxu0 0.0
      %2599 = vmatpush2.msra.mxu0 0.0
      %2600 = vmatprep.subr.mxu0 0.0
      %2601 = vmatpush2.msra.mxu0 0.0
      %2602 = vmatprep.subr.mxu0 0.0
      %2603 = vmatpush2.msra.mxu0 0.0
      %2604 = vmatprep.subr.mxu0 0.0
      %2605 = vmatpush2.msra.mxu0 0.0
      %2606 = vmatprep.subr.mxu0 0.0
      %2607 = vmatpush2.msra.mxu0 0.0
      %2608 = vmatprep.subr.mxu0 0.0
      %2609 = vmatpush2.msra.mxu0 0.0
      %2610 = vmatprep.subr.mxu0 0.0
      %2611 = vmatpush2.msra.mxu0 0.0
      %2612 = vmatprep.subr.mxu0 0.0
      %2613 = vmatpush2.msra.mxu0 0.0
      %2614 = vmatprep.subr.mxu0 0.0
      %2615 = vmatpush2.msra.mxu0 0.0
      %2616 = vmatprep.subr.mxu0 0.0
      %2617 = vmatpush2.msra.mxu0 0.0
      %2618 = vmatprep.subr.mxu0 0.0
      %2619 = vmatpush2.msra.mxu0 0.0
      %2620 = vmatprep.subr.mxu0 0.0
      %2621 = vmatpush2.msra.mxu0 0.0
      %2622 = vmatprep.subr.mxu0 0.0
      %2623 = vmatpush2.msra.mxu0 0.0
      %2624 = vmatprep.subr.mxu0 0.0
      %2625 = vmatpush2.msra.mxu0 0.0
      %2626 = vmatprep.mubr.f32.mxu0 0.0
      %2627 = vmatmul.mubr.f32.gmra.mxu0 %v2198
      %v2628 = vpop.f32.mrf.mxu0
      %v2629 = vadd.f32 0.0, %v2628
      %v2630 = vpop.f32.mrf.mxu0
      %2631 = vmatprep.mubr.f32.mxu0 0.0
      %2632 = vmatmul.mubr.f32.gmra.mxu0 %v2200
      %v2633 = vpop.f32.mrf.mxu0
      %v2634 = vadd.f32 0.0, %v2633
      %v2635 = vpop.f32.mrf.mxu0
      %2636 = vmatprep.mubr.f32.mxu0 0.0
      %2637 = vmatmul.mubr.f32.gmra.mxu0 %v2202
      %v2638 = vpop.f32.mrf.mxu0
      %v2639 = vadd.f32 0.0, %v2638
      %v2640 = vpop.f32.mrf.mxu0
      %2641 = vmatprep.mubr.f32.mxu0 0.0
      %2642 = vmatmul.mubr.f32.gmra.mxu0 %v2204
      %v2643 = vpop.f32.mrf.mxu0
      %v2644 = vadd.f32 0.0, %v2643
      %v2645 = vpop.f32.mrf.mxu0
      %2646 = vmatprep.mubr.f32.mxu0 0.0
      %2647 = vmatmul.mubr.f32.gmra.mxu0 %v2206
      %v2648 = vpop.f32.mrf.mxu0
      %v2649 = vadd.f32 0.0, %v2648
      %v2650 = vpop.f32.mrf.mxu0
      %2651 = vmatprep.mubr.f32.mxu0 0.0
      %2652 = vmatmul.mubr.f32.gmra.mxu0 %v2208
      %v2653 = vpop.f32.mrf.mxu0
      %v2654 = vadd.f32 0.0, %v2653
      %v2655 = vpop.f32.mrf.mxu0
      %2656 = vmatprep.mubr.f32.mxu0 0.0
      %2657 = vmatmul.mubr.f32.gmra.mxu0 %v2210
      %v2658 = vpop.f32.mrf.mxu0
      %v2659 = vadd.f32 0.0, %v2658
      %v2660 = vpop.f32.mrf.mxu0
      %2661 = vmatprep.mubr.f32.mxu0 0.0
      %2662 = vmatmul.mubr.f32.gmra.mxu0 %v2212
      %v2663 = vpop.f32.mrf.mxu0
      %v2664 = vadd.f32 0.0, %v2663
      %v2665 = vpop.f32.mrf.mxu0
      %2666 = vmatprep.mubr.f32.mxu0 0.0
      %2667 = vmatmul.mubr.f32.gmra.mxu0 %v2214
      %v2668 = vpop.f32.mrf.mxu0
      %v2669 = vadd.f32 0.0, %v2668
      %v2670 = vpop.f32.mrf.mxu0
      %2671 = vmatprep.mubr.f32.mxu0 0.0
      %2672 = vmatmul.mubr.f32.gmra.mxu0 %v2216
      %v2673 = vpop.f32.mrf.mxu0
      %v2674 = vadd.f32 0.0, %v2673
      %v2675 = vpop.f32.mrf.mxu0
      %2676 = vmatprep.mubr.f32.mxu0 0.0
      %2677 = vmatmul.mubr.f32.gmra.mxu0 %v2218
      %v2678 = vpop.f32.mrf.mxu0
      %v2679 = vadd.f32 0.0, %v2678
      %v2680 = vpop.f32.mrf.mxu0
      %2681 = vmatprep.mubr.f32.mxu0 0.0
      %2682 = vmatmul.mubr.f32.gmra.mxu0 %v2220
      %v2683 = vpop.f32.mrf.mxu0
      %v2684 = vadd.f32 0.0, %v2683
      %v2685 = vpop.f32.mrf.mxu0
      %2686 = vmatprep.mubr.f32.mxu0 0.0
      %2687 = vmatmul.mubr.f32.gmra.mxu0 %v2222
      %v2688 = vpop.f32.mrf.mxu0
      %v2689 = vadd.f32 0.0, %v2688
      %v2690 = vpop.f32.mrf.mxu0
      %2691 = vmatprep.mubr.f32.mxu0 0.0
      %2692 = vmatmul.mubr.f32.gmra.mxu0 %v2224
      %v2693 = vpop.f32.mrf.mxu0
      %v2694 = vadd.f32 0.0, %v2693
      %v2695 = vpop.f32.mrf.mxu0
      %2696 = vmatprep.mubr.f32.mxu0 0.0
      %2697 = vmatmul.mubr.f32.gmra.mxu0 %v2226
      %v2698 = vpop.f32.mrf.mxu0
      %v2699 = vadd.f32 0.0, %v2698
      %v2700 = vpop.f32.mrf.mxu0
      %2701 = vmatprep.mubr.f32.mxu0 0.0
      %2702 = vmatmul.mubr.f32.gmra.mxu0 %v2228
      %v2703 = vpop.f32.mrf.mxu0
      %v2704 = vadd.f32 0.0, %v2703
      %v2705 = vpop.f32.mrf.mxu0
      %2706 = vmatprep.mubr.f32.mxu0 0.0
      %2707 = vmatmul.mubr.f32.gmra.mxu0 %v2230
      %v2708 = vpop.f32.mrf.mxu0
      %v2709 = vadd.f32 0.0, %v2708
      %v2710 = vpop.f32.mrf.mxu0
      %2711 = vmatprep.mubr.f32.mxu0 0.0
      %2712 = vmatmul.mubr.f32.gmra.mxu0 %v2232
      %v2713 = vpop.f32.mrf.mxu0
      %v2714 = vadd.f32 0.0, %v2713
      %v2715 = vpop.f32.mrf.mxu0
      %2716 = vmatprep.mubr.f32.mxu0 0.0
      %2717 = vmatmul.mubr.f32.gmra.mxu0 %v2234
      %v2718 = vpop.f32.mrf.mxu0
      %v2719 = vadd.f32 0.0, %v2718
      %v2720 = vpop.f32.mrf.mxu0
      %2721 = vmatprep.mubr.f32.mxu0 0.0
      %2722 = vmatmul.mubr.f32.gmra.mxu0 %v2236
      %v2723 = vpop.f32.mrf.mxu0
      %v2724 = vadd.f32 0.0, %v2723
      %v2725 = vpop.f32.mrf.mxu0
      %2726 = vmatprep.mubr.f32.mxu0 0.0
      %2727 = vmatmul.mubr.f32.gmra.mxu0 %v2238
      %v2728 = vpop.f32.mrf.mxu0
      %v2729 = vadd.f32 0.0, %v2728
      %v2730 = vpop.f32.mrf.mxu0
      %2731 = vmatprep.mubr.f32.mxu0 0.0
      %2732 = vmatmul.mubr.f32.gmra.mxu0 %v2240
      %v2733 = vpop.f32.mrf.mxu0
      %v2734 = vadd.f32 0.0, %v2733
      %v2735 = vpop.f32.mrf.mxu0
      %2736 = vmatprep.mubr.f32.mxu0 0.0
      %2737 = vmatmul.mubr.f32.gmra.mxu0 %v2242
      %v2738 = vpop.f32.mrf.mxu0
      %v2739 = vadd.f32 0.0, %v2738
      %v2740 = vpop.f32.mrf.mxu0
      %2741 = vmatprep.mubr.f32.mxu0 0.0
      %2742 = vmatmul.mubr.f32.gmra.mxu0 %v2244
      %v2743 = vpop.f32.mrf.mxu0
      %v2744 = vadd.f32 0.0, %v2743
      %v2745 = vpop.f32.mrf.mxu0
      %2746 = vmatprep.mubr.f32.mxu0 0.0
      %2747 = vmatmul.mubr.f32.gmra.mxu0 %v2246
      %v2748 = vpop.f32.mrf.mxu0
      %v2749 = vadd.f32 0.0, %v2748
      %v2750 = vpop.f32.mrf.mxu0
      %2751 = vmatprep.mubr.f32.mxu0 0.0
      %2752 = vmatmul.mubr.f32.gmra.mxu0 %v2248
      %v2753 = vpop.f32.mrf.mxu0
      %v2754 = vadd.f32 0.0, %v2753
      %v2755 = vpop.f32.mrf.mxu0
      %2756 = vmatprep.mubr.f32.mxu0 0.0
      %2757 = vmatmul.mubr.f32.gmra.mxu0 %v2250
      %v2758 = vpop.f32.mrf.mxu0
      %v2759 = vadd.f32 0.0, %v2758
      %v2760 = vpop.f32.mrf.mxu0
      %2761 = vmatprep.mubr.f32.mxu0 0.0
      %2762 = vmatmul.mubr.f32.gmra.mxu0 %v2252
      %v2763 = vpop.f32.mrf.mxu0
      %v2764 = vadd.f32 0.0, %v2763
      %v2765 = vpop.f32.mrf.mxu0
      %2766 = vmatprep.mubr.f32.mxu0 0.0
      %2767 = vmatmul.mubr.f32.gmra.mxu0 %v2254
      %v2768 = vpop.f32.mrf.mxu0
      %v2769 = vadd.f32 0.0, %v2768
      %v2770 = vpop.f32.mrf.mxu0
      %2771 = vmatprep.mubr.f32.mxu0 0.0
      %2772 = vmatmul.mubr.f32.gmra.mxu0 %v2256
      %v2773 = vpop.f32.mrf.mxu0
      %v2774 = vadd.f32 0.0, %v2773
      %v2775 = vpop.f32.mrf.mxu0
      %2776 = vmatprep.mubr.f32.mxu0 0.0
      %2777 = vmatmul.mubr.f32.gmra.mxu0 %v2258
      %v2778 = vpop.f32.mrf.mxu0
      %v2779 = vadd.f32 0.0, %v2778
      %v2780 = vpop.f32.mrf.mxu0
      %2781 = vmatprep.mubr.f32.mxu0 0.0
      %2782 = vmatmul.mubr.f32.gmra.mxu0 %v2260
      %v2783 = vpop.f32.mrf.mxu0
      %v2784 = vadd.f32 0.0, %v2783
      %v2785 = vpop.f32.mrf.mxu0
      %2786 = vmatprep.mubr.f32.mxu0 0.0
      %2787 = vmatmul.mubr.f32.gmra.mxu0 %v2262
      %v2788 = vpop.f32.mrf.mxu0
      %v2789 = vadd.f32 0.0, %v2788
      %v2790 = vpop.f32.mrf.mxu0
      %2791 = vmatprep.mubr.f32.mxu0 0.0
      %2792 = vmatmul.mubr.f32.gmra.mxu0 %v2264
      %v2793 = vpop.f32.mrf.mxu0
      %v2794 = vadd.f32 0.0, %v2793
      %v2795 = vpop.f32.mrf.mxu0
      %2796 = vmatprep.mubr.f32.mxu0 0.0
      %2797 = vmatmul.mubr.f32.gmra.mxu0 %v2555
      %v2798 = vpop.f32.mrf.mxu0
      %v2799 = vadd.f32 0.0, %v2798
      %v2800 = vpop.f32.mrf.mxu0
      %2801 = vmatprep.mubr.f32.mxu0 0.0
      %2802 = vmatmul.mubr.f32.gmra.mxu0 %v2557
      %v2803 = vpop.f32.mrf.mxu0
      %v2804 = vadd.f32 0.0, %v2803
      %v2805 = vpop.f32.mrf.mxu0
      %2806 = vdwg.mxu0
      %v2807 = vadd.f32 %v2513, %v2629
      %v2808 = vadd.f32 %v2514, %v2634
      %v2809 = vadd.f32 %v2515, %v2639
      %v2810 = vadd.f32 %v2516, %v2644
      %v2811 = vadd.f32 %v2517, %v2649
      %v2812 = vadd.f32 %v2518, %v2654
      %v2813 = vadd.f32 %v2519, %v2659
      %v2814 = vadd.f32 %v2520, %v2664
      %v2815 = vadd.f32 %v2521, %v2669
      %v2816 = vadd.f32 %v2522, %v2674
      %v2817 = vadd.f32 %v2523, %v2679
      %v2818 = vadd.f32 %v2524, %v2684
      %v2819 = vadd.f32 %v2525, %v2689
      %v2820 = vadd.f32 %v2526, %v2694
      %v2821 = vadd.f32 %v2527, %v2699
      %v2822 = vadd.f32 %v2528, %v2704
      %v2823 = vadd.f32 %v2529, %v2709
      %v2824 = vadd.f32 %v2530, %v2714
      %v2825 = vadd.f32 %v2531, %v2719
      %v2826 = vadd.f32 %v2532, %v2724
      %v2827 = vadd.f32 %v2533, %v2729
      %v2828 = vadd.f32 %v2534, %v2734
      %v2829 = vadd.f32 %v2535, %v2739
      %v2830 = vadd.f32 %v2536, %v2744
      %v2831 = vadd.f32 %v2537, %v2749
      %v2832 = vadd.f32 %v2538, %v2754
      %v2833 = vadd.f32 %v2539, %v2759
      %v2834 = vadd.f32 %v2540, %v2764
      %v2835 = vadd.f32 %v2541, %v2769
      %v2836 = vadd.f32 %v2542, %v2774
      %v2837 = vadd.f32 %v2543, %v2779
      %v2838 = vadd.f32 %v2544, %v2784
      %v2839 = vadd.f32 %v2545, %v2789
      %v2840 = vadd.f32 %v2546, %v2794
      %v2841 = vadd.f32 %v2547, %v2799
      %v2842 = vadd.f32 %v2548, %v2804
      %vm2843 = vcmask 1042432
      %v2844 = vrot.slane %v171, 5
      %v2845 = vrot.slane %v172, 5
      %v2846 = vsel %vm2843, %v2844, %v2845
      %v2847 = vrot.slane %v173, 5
      %v2848 = vsel %vm2843, %v2845, %v2847
      %v2849 = vrot.slane %v174, 5
      %v2850 = vsel %vm2843, %v2847, %v2849
      %v2851 = vrot.slane %v175, 5
      %v2852 = vsel %vm2843, %v2849, %v2851
      %v2853 = vrot.slane %v176, 5
      %v2854 = vsel %vm2843, %v2851, %v2853
      %v2855 = vrot.slane %v177, 5
      %v2856 = vsel %vm2843, %v2853, %v2855
      %v2857 = vrot.slane %v178, 5
      %v2858 = vsel %vm2843, %v2855, %v2857
      %v2859 = vrot.slane %v179, 5
      %v2860 = vsel %vm2843, %v2857, %v2859
      %v2861 = vrot.slane %v180, 5
      %v2862 = vsel %vm2843, %v2859, %v2861
      %v2863 = vrot.slane %v181, 5
      %v2864 = vsel %vm2843, %v2861, %v2863
      %v2865 = vrot.slane %v182, 5
      %v2866 = vsel %vm2843, %v2863, %v2865
      %v2867 = vrot.slane %v183, 5
      %v2868 = vsel %vm2843, %v2865, %v2867
      %v2869 = vrot.slane %v184, 5
      %v2870 = vsel %vm2843, %v2867, %v2869
      %v2871 = vrot.slane %v185, 5
      %v2872 = vsel %vm2843, %v2869, %v2871
      %v2873 = vrot.slane %v186, 5
      %v2874 = vsel %vm2843, %v2871, %v2873
      %v2875 = vrot.slane %v187, 5
      %v2876 = vsel %vm2843, %v2873, %v2875
      %v2877 = vrot.slane %v188, 5
      %v2878 = vsel %vm2843, %v2875, %v2877
      %v2879 = vrot.slane %v189, 5
      %v2880 = vsel %vm2843, %v2877, %v2879
      %v2881 = vrot.slane %v190, 5
      %v2882 = vsel %vm2843, %v2879, %v2881
      %v2883 = vrot.slane %v191, 5
      %v2884 = vsel %vm2843, %v2881, %v2883
      %v2885 = vrot.slane %v192, 5
      %v2886 = vsel %vm2843, %v2883, %v2885
      %v2887 = vrot.slane %v193, 5
      %v2888 = vsel %vm2843, %v2885, %v2887
      %v2889 = vrot.slane %v194, 5
      %v2890 = vsel %vm2843, %v2887, %v2889
      %v2891 = vrot.slane %v195, 5
      %v2892 = vsel %vm2843, %v2889, %v2891
      %v2893 = vrot.slane %v196, 5
      %v2894 = vsel %vm2843, %v2891, %v2893
      %v2895 = vrot.slane %v197, 5
      %v2896 = vsel %vm2843, %v2893, %v2895
      %v2897 = vrot.slane %v198, 5
      %v2898 = vsel %vm2843, %v2895, %v2897
      %v2899 = vrot.slane %v199, 5
      %v2900 = vsel %vm2843, %v2897, %v2899
      %v2901 = vrot.slane %v200, 5
      %v2902 = vsel %vm2843, %v2899, %v2901
      %v2903 = vrot.slane %v201, 5
      %v2904 = vsel %vm2843, %v2901, %v2903
      %v2905 = vrot.slane %v202, 5
      %v2906 = vsel %vm2843, %v2903, %v2905
      %v2907 = vrot.slane %v203, 5
      %v2908 = vsel %vm2843, %v2905, %v2907
      %v2909 = vrot.slane %v204, 5
      %v2910 = vsel %vm2843, %v2907, %v2909
      %v2911 = vrot.slane %v205, 5
      %v2912 = vsel %vm2843, %v2909, %v2911
      %v2913 = vrot.slane %v206, 5
      %v2914 = vsel %vm2843, %v2911, %v2913
      %v2915 = vrot.slane %v207, 5
      %v2916 = vsel %vm2843, %v2913, %v2915
      %v2917 = vrot.slane %v211, 4
      %v2918 = vsel %vm326, %v2846, 0
      %v2920 = vsel %vm326, %v2848, 0
      %v2922 = vsel %vm326, %v2850, 0
      %v2924 = vsel %vm326, %v2852, 0
      %v2926 = vsel %vm326, %v2854, 0
      %v2928 = vsel %vm326, %v2856, 0
      %v2930 = vsel %vm326, %v2858, 0
      %v2932 = vsel %vm326, %v2860, 0
      %v2934 = vsel %vm326, %v2862, 0
      %v2936 = vsel %vm326, %v2864, 0
      %v2938 = vsel %vm326, %v2866, 0
      %v2940 = vsel %vm326, %v2868, 0
      %v2942 = vsel %vm326, %v2870, 0
      %v2944 = vsel %vm326, %v2872, 0
      %v2946 = vsel %vm326, %v2874, 0
      %v2948 = vsel %vm326, %v2876, 0
      %v2950 = vsel %vm326, %v2878, 0
      %v2952 = vsel %vm326, %v2880, 0
      %v2954 = vsel %vm326, %v2882, 0
      %v2956 = vsel %vm326, %v2884, 0
      %v2958 = vsel %vm326, %v2886, 0
      %v2960 = vsel %vm326, %v2888, 0
      %v2962 = vsel %vm326, %v2890, 0
      %v2964 = vsel %vm326, %v2892, 0
      %v2966 = vsel %vm326, %v2894, 0
      %v2968 = vsel %vm326, %v2896, 0
      %v2970 = vsel %vm326, %v2898, 0
      %v2972 = vsel %vm326, %v2900, 0
      %v2974 = vsel %vm326, %v2902, 0
      %v2976 = vsel %vm326, %v2904, 0
      %v2978 = vsel %vm326, %v2906, 0
      %v2980 = vsel %vm326, %v2908, 0
      %v2982 = vsel %vm326, %v2910, 0
      %v2984 = vsel %vm326, %v2912, 0
      %v2986 = vsel %vm326, %v2914, 0
      %v2988 = vsel %vm326, %v2916, 0
      %v2990 = vsel %vm399, %v2917, 0
      %2992 = vmatprep.subr.mxu0 0.0
      %2993 = vmatpush1.msra.mxu0 0.0
      %2994 = vmatprep.subr.mxu0 0.0
      %2995 = vmatpush1.msra.mxu0 0.0
      %2996 = vmatprep.subr.mxu0 0.0
      %2997 = vmatpush1.msra.mxu0 0.0
      %2998 = vmatprep.subr.mxu0 0.0
      %2999 = vmatpush1.msra.mxu0 0.0
      %3000 = vmatprep.subr.mxu0 0.0
      %3001 = vmatpush1.msra.mxu0 0.0
      %3002 = vmatprep.subr.mxu0 0.0
      %3003 = vmatpush1.msra.mxu0 0.0
      %3004 = vmatprep.subr.mxu0 0.0
      %3005 = vmatpush1.msra.mxu0 0.0
      %3006 = vmatprep.subr.mxu0 0.0
      %3007 = vmatpush1.msra.mxu0 0.0
      %3008 = vmatprep.subr.mxu0 0.0
      %3009 = vmatpush1.msra.mxu0 0.0
      %3010 = vmatprep.subr.mxu0 0.0
      %3011 = vmatpush1.msra.mxu0 0.0
      %3012 = vmatprep.subr.mxu0 0.0
      %3013 = vmatpush1.msra.mxu0 0.0
      %3014 = vmatprep.subr.mxu0 0.0
      %3015 = vmatpush1.msra.mxu0 0.0
      %3016 = vmatprep.subr.mxu0 0.0
      %3017 = vmatpush1.msra.mxu0 0.0
      %3018 = vmatprep.subr.mxu0 0.0
      %3019 = vmatpush1.msra.mxu0 0.0
      %3020 = vmatprep.subr.mxu0 0.0
      %3021 = vmatpush1.msra.mxu0 0.0
      %3022 = vmatprep.subr.mxu0 0.0
      %3023 = vmatpush1.msra.mxu0 %v2990
      %3024 = vmatprep.subr.mxu0 0.0
      %3025 = vmatpush2.msra.mxu0 0.0
      %3026 = vmatprep.subr.mxu0 0.0
      %3027 = vmatpush2.msra.mxu0 0.0
      %3028 = vmatprep.subr.mxu0 0.0
      %3029 = vmatpush2.msra.mxu0 0.0
      %3030 = vmatprep.subr.mxu0 0.0
      %3031 = vmatpush2.msra.mxu0 0.0
      %3032 = vmatprep.subr.mxu0 0.0
      %3033 = vmatpush2.msra.mxu0 0.0
      %3034 = vmatprep.subr.mxu0 0.0
      %3035 = vmatpush2.msra.mxu0 0.0
      %3036 = vmatprep.subr.mxu0 0.0
      %3037 = vmatpush2.msra.mxu0 0.0
      %3038 = vmatprep.subr.mxu0 0.0
      %3039 = vmatpush2.msra.mxu0 0.0
      %3040 = vmatprep.subr.mxu0 0.0
      %3041 = vmatpush2.msra.mxu0 0.0
      %3042 = vmatprep.subr.mxu0 0.0
      %3043 = vmatpush2.msra.mxu0 0.0
      %3044 = vmatprep.subr.mxu0 0.0
      %3045 = vmatpush2.msra.mxu0 0.0
      %3046 = vmatprep.subr.mxu0 0.0
      %3047 = vmatpush2.msra.mxu0 0.0
      %3048 = vmatprep.subr.mxu0 0.0
      %3049 = vmatpush2.msra.mxu0 0.0
      %3050 = vmatprep.subr.mxu0 0.0
      %3051 = vmatpush2.msra.mxu0 0.0
      %3052 = vmatprep.subr.mxu0 0.0
      %3053 = vmatpush2.msra.mxu0 0.0
      %3054 = vmatprep.subr.mxu0 0.0
      %3055 = vmatpush2.msra.mxu0 0.0
      %3056 = vmatprep.mubr.f32.mxu0 0.0
      %3057 = vmatmul.mubr.f32.gmra.mxu0 %v2918
      %v3058 = vpop.f32.mrf.mxu0
      %v3059 = vadd.f32 0.0, %v3058
      %v3060 = vpop.f32.mrf.mxu0
      %3061 = vmatprep.mubr.f32.mxu0 0.0
      %3062 = vmatmul.mubr.f32.gmra.mxu0 %v2920
      %v3063 = vpop.f32.mrf.mxu0
      %v3064 = vadd.f32 0.0, %v3063
      %v3065 = vpop.f32.mrf.mxu0
      %3066 = vmatprep.mubr.f32.mxu0 0.0
      %3067 = vmatmul.mubr.f32.gmra.mxu0 %v2922
      %v3068 = vpop.f32.mrf.mxu0
      %v3069 = vadd.f32 0.0, %v3068
      %v3070 = vpop.f32.mrf.mxu0
      %3071 = vmatprep.mubr.f32.mxu0 0.0
      %3072 = vmatmul.mubr.f32.gmra.mxu0 %v2924
      %v3073 = vpop.f32.mrf.mxu0
      %v3074 = vadd.f32 0.0, %v3073
      %v3075 = vpop.f32.mrf.mxu0
      %3076 = vmatprep.mubr.f32.mxu0 0.0
      %3077 = vmatmul.mubr.f32.gmra.mxu0 %v2926
      %v3078 = vpop.f32.mrf.mxu0
      %v3079 = vadd.f32 0.0, %v3078
      %v3080 = vpop.f32.mrf.mxu0
      %3081 = vmatprep.mubr.f32.mxu0 0.0
      %3082 = vmatmul.mubr.f32.gmra.mxu0 %v2928
      %v3083 = vpop.f32.mrf.mxu0
      %v3084 = vadd.f32 0.0, %v3083
      %v3085 = vpop.f32.mrf.mxu0
      %3086 = vmatprep.mubr.f32.mxu0 0.0
      %3087 = vmatmul.mubr.f32.gmra.mxu0 %v2930
      %v3088 = vpop.f32.mrf.mxu0
      %v3089 = vadd.f32 0.0, %v3088
      %v3090 = vpop.f32.mrf.mxu0
      %3091 = vmatprep.mubr.f32.mxu0 0.0
      %3092 = vmatmul.mubr.f32.gmra.mxu0 %v2932
      %v3093 = vpop.f32.mrf.mxu0
      %v3094 = vadd.f32 0.0, %v3093
      %v3095 = vpop.f32.mrf.mxu0
      %3096 = vmatprep.mubr.f32.mxu0 0.0
      %3097 = vmatmul.mubr.f32.gmra.mxu0 %v2934
      %v3098 = vpop.f32.mrf.mxu0
      %v3099 = vadd.f32 0.0, %v3098
      %v3100 = vpop.f32.mrf.mxu0
      %3101 = vmatprep.mubr.f32.mxu0 0.0
      %3102 = vmatmul.mubr.f32.gmra.mxu0 %v2936
      %v3103 = vpop.f32.mrf.mxu0
      %v3104 = vadd.f32 0.0, %v3103
      %v3105 = vpop.f32.mrf.mxu0
      %3106 = vmatprep.mubr.f32.mxu0 0.0
      %3107 = vmatmul.mubr.f32.gmra.mxu0 %v2938
      %v3108 = vpop.f32.mrf.mxu0
      %v3109 = vadd.f32 0.0, %v3108
      %v3110 = vpop.f32.mrf.mxu0
      %3111 = vmatprep.mubr.f32.mxu0 0.0
      %3112 = vmatmul.mubr.f32.gmra.mxu0 %v2940
      %v3113 = vpop.f32.mrf.mxu0
      %v3114 = vadd.f32 0.0, %v3113
      %v3115 = vpop.f32.mrf.mxu0
      %3116 = vmatprep.mubr.f32.mxu0 0.0
      %3117 = vmatmul.mubr.f32.gmra.mxu0 %v2942
      %v3118 = vpop.f32.mrf.mxu0
      %v3119 = vadd.f32 0.0, %v3118
      %v3120 = vpop.f32.mrf.mxu0
      %3121 = vmatprep.mubr.f32.mxu0 0.0
      %3122 = vmatmul.mubr.f32.gmra.mxu0 %v2944
      %v3123 = vpop.f32.mrf.mxu0
      %v3124 = vadd.f32 0.0, %v3123
      %v3125 = vpop.f32.mrf.mxu0
      %3126 = vmatprep.mubr.f32.mxu0 0.0
      %3127 = vmatmul.mubr.f32.gmra.mxu0 %v2946
      %v3128 = vpop.f32.mrf.mxu0
      %v3129 = vadd.f32 0.0, %v3128
      %v3130 = vpop.f32.mrf.mxu0
      %3131 = vmatprep.mubr.f32.mxu0 0.0
      %3132 = vmatmul.mubr.f32.gmra.mxu0 %v2948
      %v3133 = vpop.f32.mrf.mxu0
      %v3134 = vadd.f32 0.0, %v3133
      %v3135 = vpop.f32.mrf.mxu0
      %3136 = vmatprep.mubr.f32.mxu0 0.0
      %3137 = vmatmul.mubr.f32.gmra.mxu0 %v2950
      %v3138 = vpop.f32.mrf.mxu0
      %v3139 = vadd.f32 0.0, %v3138
      %v3140 = vpop.f32.mrf.mxu0
      %3141 = vmatprep.mubr.f32.mxu0 0.0
      %3142 = vmatmul.mubr.f32.gmra.mxu0 %v2952
      %v3143 = vpop.f32.mrf.mxu0
      %v3144 = vadd.f32 0.0, %v3143
      %v3145 = vpop.f32.mrf.mxu0
      %3146 = vmatprep.mubr.f32.mxu0 0.0
      %3147 = vmatmul.mubr.f32.gmra.mxu0 %v2954
      %v3148 = vpop.f32.mrf.mxu0
      %v3149 = vadd.f32 0.0, %v3148
      %v3150 = vpop.f32.mrf.mxu0
      %3151 = vmatprep.mubr.f32.mxu0 0.0
      %3152 = vmatmul.mubr.f32.gmra.mxu0 %v2956
      %v3153 = vpop.f32.mrf.mxu0
      %v3154 = vadd.f32 0.0, %v3153
      %v3155 = vpop.f32.mrf.mxu0
      %3156 = vmatprep.mubr.f32.mxu0 0.0
      %3157 = vmatmul.mubr.f32.gmra.mxu0 %v2958
      %v3158 = vpop.f32.mrf.mxu0
      %v3159 = vadd.f32 0.0, %v3158
      %v3160 = vpop.f32.mrf.mxu0
      %3161 = vmatprep.mubr.f32.mxu0 0.0
      %3162 = vmatmul.mubr.f32.gmra.mxu0 %v2960
      %v3163 = vpop.f32.mrf.mxu0
      %v3164 = vadd.f32 0.0, %v3163
      %v3165 = vpop.f32.mrf.mxu0
      %3166 = vmatprep.mubr.f32.mxu0 0.0
      %3167 = vmatmul.mubr.f32.gmra.mxu0 %v2962
      %v3168 = vpop.f32.mrf.mxu0
      %v3169 = vadd.f32 0.0, %v3168
      %v3170 = vpop.f32.mrf.mxu0
      %3171 = vmatprep.mubr.f32.mxu0 0.0
      %3172 = vmatmul.mubr.f32.gmra.mxu0 %v2964
      %v3173 = vpop.f32.mrf.mxu0
      %v3174 = vadd.f32 0.0, %v3173
      %v3175 = vpop.f32.mrf.mxu0
      %3176 = vmatprep.mubr.f32.mxu0 0.0
      %3177 = vmatmul.mubr.f32.gmra.mxu0 %v2966
      %v3178 = vpop.f32.mrf.mxu0
      %v3179 = vadd.f32 0.0, %v3178
      %v3180 = vpop.f32.mrf.mxu0
      %3181 = vmatprep.mubr.f32.mxu0 0.0
      %3182 = vmatmul.mubr.f32.gmra.mxu0 %v2968
      %v3183 = vpop.f32.mrf.mxu0
      %v3184 = vadd.f32 0.0, %v3183
      %v3185 = vpop.f32.mrf.mxu0
      %3186 = vmatprep.mubr.f32.mxu0 0.0
      %3187 = vmatmul.mubr.f32.gmra.mxu0 %v2970
      %v3188 = vpop.f32.mrf.mxu0
      %v3189 = vadd.f32 0.0, %v3188
      %v3190 = vpop.f32.mrf.mxu0
      %3191 = vmatprep.mubr.f32.mxu0 0.0
      %3192 = vmatmul.mubr.f32.gmra.mxu0 %v2972
      %v3193 = vpop.f32.mrf.mxu0
      %v3194 = vadd.f32 0.0, %v3193
      %v3195 = vpop.f32.mrf.mxu0
      %3196 = vmatprep.mubr.f32.mxu0 0.0
      %3197 = vmatmul.mubr.f32.gmra.mxu0 %v2974
      %v3198 = vpop.f32.mrf.mxu0
      %v3199 = vadd.f32 0.0, %v3198
      %v3200 = vpop.f32.mrf.mxu0
      %3201 = vmatprep.mubr.f32.mxu0 0.0
      %3202 = vmatmul.mubr.f32.gmra.mxu0 %v2976
      %v3203 = vpop.f32.mrf.mxu0
      %v3204 = vadd.f32 0.0, %v3203
      %v3205 = vpop.f32.mrf.mxu0
      %3206 = vmatprep.mubr.f32.mxu0 0.0
      %3207 = vmatmul.mubr.f32.gmra.mxu0 %v2978
      %v3208 = vpop.f32.mrf.mxu0
      %v3209 = vadd.f32 0.0, %v3208
      %v3210 = vpop.f32.mrf.mxu0
      %3211 = vmatprep.mubr.f32.mxu0 0.0
      %3212 = vmatmul.mubr.f32.gmra.mxu0 %v2980
      %v3213 = vpop.f32.mrf.mxu0
      %v3214 = vadd.f32 0.0, %v3213
      %v3215 = vpop.f32.mrf.mxu0
      %3216 = vmatprep.mubr.f32.mxu0 0.0
      %3217 = vmatmul.mubr.f32.gmra.mxu0 %v2982
      %v3218 = vpop.f32.mrf.mxu0
      %v3219 = vadd.f32 0.0, %v3218
      %v3220 = vpop.f32.mrf.mxu0
      %3221 = vmatprep.mubr.f32.mxu0 0.0
      %3222 = vmatmul.mubr.f32.gmra.mxu0 %v2984
      %v3223 = vpop.f32.mrf.mxu0
      %v3224 = vadd.f32 0.0, %v3223
      %v3225 = vpop.f32.mrf.mxu0
      %3226 = vmatprep.mubr.f32.mxu0 0.0
      %3227 = vmatmul.mubr.f32.gmra.mxu0 %v2986
      %v3228 = vpop.f32.mrf.mxu0
      %v3229 = vadd.f32 0.0, %v3228
      %v3230 = vpop.f32.mrf.mxu0
      %3231 = vmatprep.mubr.f32.mxu0 0.0
      %3232 = vmatmul.mubr.f32.gmra.mxu0 %v2988
      %v3233 = vpop.f32.mrf.mxu0
      %v3234 = vadd.f32 0.0, %v3233
      %v3235 = vpop.f32.mrf.mxu0
      %3236 = vdwg.mxu0
      %v3237 = vadd.f32 %v2807, %v3059
      %v3238 = vadd.f32 %v2808, %v3064
      %v3239 = vadd.f32 %v2809, %v3069
      %v3240 = vadd.f32 %v2810, %v3074
      %v3241 = vadd.f32 %v2811, %v3079
      %v3242 = vadd.f32 %v2812, %v3084
      %v3243 = vadd.f32 %v2813, %v3089
      %v3244 = vadd.f32 %v2814, %v3094
      %v3245 = vadd.f32 %v2815, %v3099
      %v3246 = vadd.f32 %v2816, %v3104
      %v3247 = vadd.f32 %v2817, %v3109
      %v3248 = vadd.f32 %v2818, %v3114
      %v3249 = vadd.f32 %v2819, %v3119
      %v3250 = vadd.f32 %v2820, %v3124
      %v3251 = vadd.f32 %v2821, %v3129
      %v3252 = vadd.f32 %v2822, %v3134
      %v3253 = vadd.f32 %v2823, %v3139
      %v3254 = vadd.f32 %v2824, %v3144
      %v3255 = vadd.f32 %v2825, %v3149
      %v3256 = vadd.f32 %v2826, %v3154
      %v3257 = vadd.f32 %v2827, %v3159
      %v3258 = vadd.f32 %v2828, %v3164
      %v3259 = vadd.f32 %v2829, %v3169
      %v3260 = vadd.f32 %v2830, %v3174
      %v3261 = vadd.f32 %v2831, %v3179
      %v3262 = vadd.f32 %v2832, %v3184
      %v3263 = vadd.f32 %v2833, %v3189
      %v3264 = vadd.f32 %v2834, %v3194
      %v3265 = vadd.f32 %v2835, %v3199
      %v3266 = vadd.f32 %v2836, %v3204
      %v3267 = vadd.f32 %v2837, %v3209
      %v3268 = vadd.f32 %v2838, %v3214
      %v3269 = vadd.f32 %v2839, %v3219
      %v3270 = vadd.f32 %v2840, %v3224
      %v3271 = vadd.f32 %v2841, %v3229
      %v3272 = vadd.f32 %v2842, %v3234
      %vm3273 = vcmask 1041408
      %v3274 = vrot.slane %v171, 6
      %v3275 = vrot.slane %v172, 6
      %v3276 = vsel %vm3273, %v3274, %v3275
      %v3277 = vrot.slane %v173, 6
      %v3278 = vsel %vm3273, %v3275, %v3277
      %v3279 = vrot.slane %v174, 6
      %v3280 = vsel %vm3273, %v3277, %v3279
      %v3281 = vrot.slane %v175, 6
      %v3282 = vsel %vm3273, %v3279, %v3281
      %v3283 = vrot.slane %v176, 6
      %v3284 = vsel %vm3273, %v3281, %v3283
      %v3285 = vrot.slane %v177, 6
      %v3286 = vsel %vm3273, %v3283, %v3285
      %v3287 = vrot.slane %v178, 6
      %v3288 = vsel %vm3273, %v3285, %v3287
      %v3289 = vrot.slane %v179, 6
      %v3290 = vsel %vm3273, %v3287, %v3289
      %v3291 = vrot.slane %v180, 6
      %v3292 = vsel %vm3273, %v3289, %v3291
      %v3293 = vrot.slane %v181, 6
      %v3294 = vsel %vm3273, %v3291, %v3293
      %v3295 = vrot.slane %v182, 6
      %v3296 = vsel %vm3273, %v3293, %v3295
      %v3297 = vrot.slane %v183, 6
      %v3298 = vsel %vm3273, %v3295, %v3297
      %v3299 = vrot.slane %v184, 6
      %v3300 = vsel %vm3273, %v3297, %v3299
      %v3301 = vrot.slane %v185, 6
      %v3302 = vsel %vm3273, %v3299, %v3301
      %v3303 = vrot.slane %v186, 6
      %v3304 = vsel %vm3273, %v3301, %v3303
      %v3305 = vrot.slane %v187, 6
      %v3306 = vsel %vm3273, %v3303, %v3305
      %v3307 = vrot.slane %v188, 6
      %v3308 = vsel %vm3273, %v3305, %v3307
      %v3309 = vrot.slane %v189, 6
      %v3310 = vsel %vm3273, %v3307, %v3309
      %v3311 = vrot.slane %v190, 6
      %v3312 = vsel %vm3273, %v3309, %v3311
      %v3313 = vrot.slane %v191, 6
      %v3314 = vsel %vm3273, %v3311, %v3313
      %v3315 = vrot.slane %v192, 6
      %v3316 = vsel %vm3273, %v3313, %v3315
      %v3317 = vrot.slane %v193, 6
      %v3318 = vsel %vm3273, %v3315, %v3317
      %v3319 = vrot.slane %v194, 6
      %v3320 = vsel %vm3273, %v3317, %v3319
      %v3321 = vrot.slane %v195, 6
      %v3322 = vsel %vm3273, %v3319, %v3321
      %v3323 = vrot.slane %v196, 6
      %v3324 = vsel %vm3273, %v3321, %v3323
      %v3325 = vrot.slane %v197, 6
      %v3326 = vsel %vm3273, %v3323, %v3325
      %v3327 = vrot.slane %v198, 6
      %v3328 = vsel %vm3273, %v3325, %v3327
      %v3329 = vrot.slane %v199, 6
      %v3330 = vsel %vm3273, %v3327, %v3329
      %v3331 = vrot.slane %v200, 6
      %v3332 = vsel %vm3273, %v3329, %v3331
      %v3333 = vrot.slane %v201, 6
      %v3334 = vsel %vm3273, %v3331, %v3333
      %v3335 = vrot.slane %v202, 6
      %v3336 = vsel %vm3273, %v3333, %v3335
      %v3337 = vrot.slane %v203, 6
      %v3338 = vsel %vm3273, %v3335, %v3337
      %v3339 = vrot.slane %v204, 6
      %v3340 = vsel %vm3273, %v3337, %v3339
      %v3341 = vrot.slane %v205, 6
      %v3342 = vsel %vm3273, %v3339, %v3341
      %v3343 = vrot.slane %v206, 6
      %v3344 = vsel %vm3273, %v3341, %v3343
      %v3345 = vrot.slane %v207, 6
      %v3346 = vsel %vm3273, %v3343, %v3345
      %v3347 = vsel %vm326, %v3276, 0
      %v3349 = vsel %vm326, %v3278, 0
      %v3351 = vsel %vm326, %v3280, 0
      %v3353 = vsel %vm326, %v3282, 0
      %v3355 = vsel %vm326, %v3284, 0
      %v3357 = vsel %vm326, %v3286, 0
      %v3359 = vsel %vm326, %v3288, 0
      %v3361 = vsel %vm326, %v3290, 0
      %v3363 = vsel %vm326, %v3292, 0
      %v3365 = vsel %vm326, %v3294, 0
      %v3367 = vsel %vm326, %v3296, 0
      %v3369 = vsel %vm326, %v3298, 0
      %v3371 = vsel %vm326, %v3300, 0
      %v3373 = vsel %vm326, %v3302, 0
      %v3375 = vsel %vm326, %v3304, 0
      %v3377 = vsel %vm326, %v3306, 0
      %v3379 = vsel %vm326, %v3308, 0
      %v3381 = vsel %vm326, %v3310, 0
      %v3383 = vsel %vm326, %v3312, 0
      %v3385 = vsel %vm326, %v3314, 0
      %v3387 = vsel %vm326, %v3316, 0
      %v3389 = vsel %vm326, %v3318, 0
      %v3391 = vsel %vm326, %v3320, 0
      %v3393 = vsel %vm326, %v3322, 0
      %v3395 = vsel %vm326, %v3324, 0
      %v3397 = vsel %vm326, %v3326, 0
      %v3399 = vsel %vm326, %v3328, 0
      %v3401 = vsel %vm326, %v3330, 0
      %v3403 = vsel %vm326, %v3332, 0
      %v3405 = vsel %vm326, %v3334, 0
      %v3407 = vsel %vm326, %v3336, 0
      %v3409 = vsel %vm326, %v3338, 0
      %v3411 = vsel %vm326, %v3340, 0
      %v3413 = vsel %vm326, %v3342, 0
      %v3415 = vsel %vm326, %v3344, 0
      %v3417 = vsel %vm326, %v3346, 0
      %v3420 = vsel %vm399, %v212, 0
      %3422 = vmatprep.subr.mxu0 0.0
      %3423 = vmatpush1.msra.mxu0 0.0
      %3424 = vmatprep.subr.mxu0 0.0
      %3425 = vmatpush1.msra.mxu0 0.0
      %3426 = vmatprep.subr.mxu0 0.0
      %3427 = vmatpush1.msra.mxu0 0.0
      %3428 = vmatprep.subr.mxu0 0.0
      %3429 = vmatpush1.msra.mxu0 0.0
      %3430 = vmatprep.subr.mxu0 0.0
      %3431 = vmatpush1.msra.mxu0 0.0
      %3432 = vmatprep.subr.mxu0 0.0
      %3433 = vmatpush1.msra.mxu0 0.0
      %3434 = vmatprep.subr.mxu0 0.0
      %3435 = vmatpush1.msra.mxu0 0.0
      %3436 = vmatprep.subr.mxu0 0.0
      %3437 = vmatpush1.msra.mxu0 0.0
      %3438 = vmatprep.subr.mxu0 0.0
      %3439 = vmatpush1.msra.mxu0 0.0
      %3440 = vmatprep.subr.mxu0 0.0
      %3441 = vmatpush1.msra.mxu0 0.0
      %3442 = vmatprep.subr.mxu0 0.0
      %3443 = vmatpush1.msra.mxu0 0.0
      %3444 = vmatprep.subr.mxu0 0.0
      %3445 = vmatpush1.msra.mxu0 0.0
      %3446 = vmatprep.subr.mxu0 0.0
      %3447 = vmatpush1.msra.mxu0 0.0
      %3448 = vmatprep.subr.mxu0 0.0
      %3449 = vmatpush1.msra.mxu0 0.0
      %3450 = vmatprep.subr.mxu0 0.0
      %3451 = vmatpush1.msra.mxu0 0.0
      %3452 = vmatprep.subr.mxu0 0.0
      %3453 = vmatpush1.msra.mxu0 %v3420
      %3454 = vmatprep.subr.mxu0 0.0
      %3455 = vmatpush2.msra.mxu0 0.0
      %3456 = vmatprep.subr.mxu0 0.0
      %3457 = vmatpush2.msra.mxu0 0.0
      %3458 = vmatprep.subr.mxu0 0.0
      %3459 = vmatpush2.msra.mxu0 0.0
      %3460 = vmatprep.subr.mxu0 0.0
      %3461 = vmatpush2.msra.mxu0 0.0
      %3462 = vmatprep.subr.mxu0 0.0
      %3463 = vmatpush2.msra.mxu0 0.0
      %3464 = vmatprep.subr.mxu0 0.0
      %3465 = vmatpush2.msra.mxu0 0.0
      %3466 = vmatprep.subr.mxu0 0.0
      %3467 = vmatpush2.msra.mxu0 0.0
      %3468 = vmatprep.subr.mxu0 0.0
      %3469 = vmatpush2.msra.mxu0 0.0
      %3470 = vmatprep.subr.mxu0 0.0
      %3471 = vmatpush2.msra.mxu0 0.0
      %3472 = vmatprep.subr.mxu0 0.0
      %3473 = vmatpush2.msra.mxu0 0.0
      %3474 = vmatprep.subr.mxu0 0.0
      %3475 = vmatpush2.msra.mxu0 0.0
      %3476 = vmatprep.subr.mxu0 0.0
      %3477 = vmatpush2.msra.mxu0 0.0
      %3478 = vmatprep.subr.mxu0 0.0
      %3479 = vmatpush2.msra.mxu0 0.0
      %3480 = vmatprep.subr.mxu0 0.0
      %3481 = vmatpush2.msra.mxu0 0.0
      %3482 = vmatprep.subr.mxu0 0.0
      %3483 = vmatpush2.msra.mxu0 0.0
      %3484 = vmatprep.subr.mxu0 0.0
      %3485 = vmatpush2.msra.mxu0 0.0
      %3486 = vmatprep.mubr.f32.mxu0 0.0
      %3487 = vmatmul.mubr.f32.gmra.mxu0 %v3347
      %v3488 = vpop.f32.mrf.mxu0
      %v3489 = vadd.f32 0.0, %v3488
      %v3490 = vpop.f32.mrf.mxu0
      %3491 = vmatprep.mubr.f32.mxu0 0.0
      %3492 = vmatmul.mubr.f32.gmra.mxu0 %v3349
      %v3493 = vpop.f32.mrf.mxu0
      %v3494 = vadd.f32 0.0, %v3493
      %v3495 = vpop.f32.mrf.mxu0
      %3496 = vmatprep.mubr.f32.mxu0 0.0
      %3497 = vmatmul.mubr.f32.gmra.mxu0 %v3351
      %v3498 = vpop.f32.mrf.mxu0
      %v3499 = vadd.f32 0.0, %v3498
      %v3500 = vpop.f32.mrf.mxu0
      %3501 = vmatprep.mubr.f32.mxu0 0.0
      %3502 = vmatmul.mubr.f32.gmra.mxu0 %v3353
      %v3503 = vpop.f32.mrf.mxu0
      %v3504 = vadd.f32 0.0, %v3503
      %v3505 = vpop.f32.mrf.mxu0
      %3506 = vmatprep.mubr.f32.mxu0 0.0
      %3507 = vmatmul.mubr.f32.gmra.mxu0 %v3355
      %v3508 = vpop.f32.mrf.mxu0
      %v3509 = vadd.f32 0.0, %v3508
      %v3510 = vpop.f32.mrf.mxu0
      %3511 = vmatprep.mubr.f32.mxu0 0.0
      %3512 = vmatmul.mubr.f32.gmra.mxu0 %v3357
      %v3513 = vpop.f32.mrf.mxu0
      %v3514 = vadd.f32 0.0, %v3513
      %v3515 = vpop.f32.mrf.mxu0
      %3516 = vmatprep.mubr.f32.mxu0 0.0
      %3517 = vmatmul.mubr.f32.gmra.mxu0 %v3359
      %v3518 = vpop.f32.mrf.mxu0
      %v3519 = vadd.f32 0.0, %v3518
      %v3520 = vpop.f32.mrf.mxu0
      %3521 = vmatprep.mubr.f32.mxu0 0.0
      %3522 = vmatmul.mubr.f32.gmra.mxu0 %v3361
      %v3523 = vpop.f32.mrf.mxu0
      %v3524 = vadd.f32 0.0, %v3523
      %v3525 = vpop.f32.mrf.mxu0
      %3526 = vmatprep.mubr.f32.mxu0 0.0
      %3527 = vmatmul.mubr.f32.gmra.mxu0 %v3363
      %v3528 = vpop.f32.mrf.mxu0
      %v3529 = vadd.f32 0.0, %v3528
      %v3530 = vpop.f32.mrf.mxu0
      %3531 = vmatprep.mubr.f32.mxu0 0.0
      %3532 = vmatmul.mubr.f32.gmra.mxu0 %v3365
      %v3533 = vpop.f32.mrf.mxu0
      %v3534 = vadd.f32 0.0, %v3533
      %v3535 = vpop.f32.mrf.mxu0
      %3536 = vmatprep.mubr.f32.mxu0 0.0
      %3537 = vmatmul.mubr.f32.gmra.mxu0 %v3367
      %v3538 = vpop.f32.mrf.mxu0
      %v3539 = vadd.f32 0.0, %v3538
      %v3540 = vpop.f32.mrf.mxu0
      %3541 = vmatprep.mubr.f32.mxu0 0.0
      %3542 = vmatmul.mubr.f32.gmra.mxu0 %v3369
      %v3543 = vpop.f32.mrf.mxu0
      %v3544 = vadd.f32 0.0, %v3543
      %v3545 = vpop.f32.mrf.mxu0
      %3546 = vmatprep.mubr.f32.mxu0 0.0
      %3547 = vmatmul.mubr.f32.gmra.mxu0 %v3371
      %v3548 = vpop.f32.mrf.mxu0
      %v3549 = vadd.f32 0.0, %v3548
      %v3550 = vpop.f32.mrf.mxu0
      %3551 = vmatprep.mubr.f32.mxu0 0.0
      %3552 = vmatmul.mubr.f32.gmra.mxu0 %v3373
      %v3553 = vpop.f32.mrf.mxu0
      %v3554 = vadd.f32 0.0, %v3553
      %v3555 = vpop.f32.mrf.mxu0
      %3556 = vmatprep.mubr.f32.mxu0 0.0
      %3557 = vmatmul.mubr.f32.gmra.mxu0 %v3375
      %v3558 = vpop.f32.mrf.mxu0
      %v3559 = vadd.f32 0.0, %v3558
      %v3560 = vpop.f32.mrf.mxu0
      %3561 = vmatprep.mubr.f32.mxu0 0.0
      %3562 = vmatmul.mubr.f32.gmra.mxu0 %v3377
      %v3563 = vpop.f32.mrf.mxu0
      %v3564 = vadd.f32 0.0, %v3563
      %v3565 = vpop.f32.mrf.mxu0
      %3566 = vmatprep.mubr.f32.mxu0 0.0
      %3567 = vmatmul.mubr.f32.gmra.mxu0 %v3379
      %v3568 = vpop.f32.mrf.mxu0
      %v3569 = vadd.f32 0.0, %v3568
      %v3570 = vpop.f32.mrf.mxu0
      %3571 = vmatprep.mubr.f32.mxu0 0.0
      %3572 = vmatmul.mubr.f32.gmra.mxu0 %v3381
      %v3573 = vpop.f32.mrf.mxu0
      %v3574 = vadd.f32 0.0, %v3573
      %v3575 = vpop.f32.mrf.mxu0
      %3576 = vmatprep.mubr.f32.mxu0 0.0
      %3577 = vmatmul.mubr.f32.gmra.mxu0 %v3383
      %v3578 = vpop.f32.mrf.mxu0
      %v3579 = vadd.f32 0.0, %v3578
      %v3580 = vpop.f32.mrf.mxu0
      %3581 = vmatprep.mubr.f32.mxu0 0.0
      %3582 = vmatmul.mubr.f32.gmra.mxu0 %v3385
      %v3583 = vpop.f32.mrf.mxu0
      %v3584 = vadd.f32 0.0, %v3583
      %v3585 = vpop.f32.mrf.mxu0
      %3586 = vmatprep.mubr.f32.mxu0 0.0
      %3587 = vmatmul.mubr.f32.gmra.mxu0 %v3387
      %v3588 = vpop.f32.mrf.mxu0
      %v3589 = vadd.f32 0.0, %v3588
      %v3590 = vpop.f32.mrf.mxu0
      %3591 = vmatprep.mubr.f32.mxu0 0.0
      %3592 = vmatmul.mubr.f32.gmra.mxu0 %v3389
      %v3593 = vpop.f32.mrf.mxu0
      %v3594 = vadd.f32 0.0, %v3593
      %v3595 = vpop.f32.mrf.mxu0
      %3596 = vmatprep.mubr.f32.mxu0 0.0
      %3597 = vmatmul.mubr.f32.gmra.mxu0 %v3391
      %v3598 = vpop.f32.mrf.mxu0
      %v3599 = vadd.f32 0.0, %v3598
      %v3600 = vpop.f32.mrf.mxu0
      %3601 = vmatprep.mubr.f32.mxu0 0.0
      %3602 = vmatmul.mubr.f32.gmra.mxu0 %v3393
      %v3603 = vpop.f32.mrf.mxu0
      %v3604 = vadd.f32 0.0, %v3603
      %v3605 = vpop.f32.mrf.mxu0
      %3606 = vmatprep.mubr.f32.mxu0 0.0
      %3607 = vmatmul.mubr.f32.gmra.mxu0 %v3395
      %v3608 = vpop.f32.mrf.mxu0
      %v3609 = vadd.f32 0.0, %v3608
      %v3610 = vpop.f32.mrf.mxu0
      %3611 = vmatprep.mubr.f32.mxu0 0.0
      %3612 = vmatmul.mubr.f32.gmra.mxu0 %v3397
      %v3613 = vpop.f32.mrf.mxu0
      %v3614 = vadd.f32 0.0, %v3613
      %v3615 = vpop.f32.mrf.mxu0
      %3616 = vmatprep.mubr.f32.mxu0 0.0
      %3617 = vmatmul.mubr.f32.gmra.mxu0 %v3399
      %v3618 = vpop.f32.mrf.mxu0
      %v3619 = vadd.f32 0.0, %v3618
      %v3620 = vpop.f32.mrf.mxu0
      %3621 = vmatprep.mubr.f32.mxu0 0.0
      %3622 = vmatmul.mubr.f32.gmra.mxu0 %v3401
      %v3623 = vpop.f32.mrf.mxu0
      %v3624 = vadd.f32 0.0, %v3623
      %v3625 = vpop.f32.mrf.mxu0
      %3626 = vmatprep.mubr.f32.mxu0 0.0
      %3627 = vmatmul.mubr.f32.gmra.mxu0 %v3403
      %v3628 = vpop.f32.mrf.mxu0
      %v3629 = vadd.f32 0.0, %v3628
      %v3630 = vpop.f32.mrf.mxu0
      %3631 = vmatprep.mubr.f32.mxu0 0.0
      %3632 = vmatmul.mubr.f32.gmra.mxu0 %v3405
      %v3633 = vpop.f32.mrf.mxu0
      %v3634 = vadd.f32 0.0, %v3633
      %v3635 = vpop.f32.mrf.mxu0
      %3636 = vmatprep.mubr.f32.mxu0 0.0
      %3637 = vmatmul.mubr.f32.gmra.mxu0 %v3407
      %v3638 = vpop.f32.mrf.mxu0
      %v3639 = vadd.f32 0.0, %v3638
      %v3640 = vpop.f32.mrf.mxu0
      %3641 = vmatprep.mubr.f32.mxu0 0.0
      %3642 = vmatmul.mubr.f32.gmra.mxu0 %v3409
      %v3643 = vpop.f32.mrf.mxu0
      %v3644 = vadd.f32 0.0, %v3643
      %v3645 = vpop.f32.mrf.mxu0
      %3646 = vmatprep.mubr.f32.mxu0 0.0
      %3647 = vmatmul.mubr.f32.gmra.mxu0 %v3411
      %v3648 = vpop.f32.mrf.mxu0
      %v3649 = vadd.f32 0.0, %v3648
      %v3650 = vpop.f32.mrf.mxu0
      %3651 = vmatprep.mubr.f32.mxu0 0.0
      %3652 = vmatmul.mubr.f32.gmra.mxu0 %v3413
      %v3653 = vpop.f32.mrf.mxu0
      %v3654 = vadd.f32 0.0, %v3653
      %v3655 = vpop.f32.mrf.mxu0
      %3656 = vmatprep.mubr.f32.mxu0 0.0
      %3657 = vmatmul.mubr.f32.gmra.mxu0 %v3415
      %v3658 = vpop.f32.mrf.mxu0
      %v3659 = vadd.f32 0.0, %v3658
      %v3660 = vpop.f32.mrf.mxu0
      %3661 = vmatprep.mubr.f32.mxu0 0.0
      %3662 = vmatmul.mubr.f32.gmra.mxu0 %v3417
      %v3663 = vpop.f32.mrf.mxu0
      %v3664 = vadd.f32 0.0, %v3663
      %v3665 = vpop.f32.mrf.mxu0
      %3666 = vdwg.mxu0
      %v3667 = vadd.f32 %v3237, %v3489
      %v3668 = vadd.f32 %v3238, %v3494
      %v3669 = vadd.f32 %v3239, %v3499
      %v3670 = vadd.f32 %v3240, %v3504
      %v3671 = vadd.f32 %v3241, %v3509
      %v3672 = vadd.f32 %v3242, %v3514
      %v3673 = vadd.f32 %v3243, %v3519
      %v3674 = vadd.f32 %v3244, %v3524
      %v3675 = vadd.f32 %v3245, %v3529
      %v3676 = vadd.f32 %v3246, %v3534
      %v3677 = vadd.f32 %v3247, %v3539
      %v3678 = vadd.f32 %v3248, %v3544
      %v3679 = vadd.f32 %v3249, %v3549
      %v3680 = vadd.f32 %v3250, %v3554
      %v3681 = vadd.f32 %v3251, %v3559
      %v3682 = vadd.f32 %v3252, %v3564
      %v3683 = vadd.f32 %v3253, %v3569
      %v3684 = vadd.f32 %v3254, %v3574
      %v3685 = vadd.f32 %v3255, %v3579
      %v3686 = vadd.f32 %v3256, %v3584
      %v3687 = vadd.f32 %v3257, %v3589
      %v3688 = vadd.f32 %v3258, %v3594
      %v3689 = vadd.f32 %v3259, %v3599
      %v3690 = vadd.f32 %v3260, %v3604
      %v3691 = vadd.f32 %v3261, %v3609
      %v3692 = vadd.f32 %v3262, %v3614
      %v3693 = vadd.f32 %v3263, %v3619
      %v3694 = vadd.f32 %v3264, %v3624
      %v3695 = vadd.f32 %v3265, %v3629
      %v3696 = vadd.f32 %v3266, %v3634
      %v3697 = vadd.f32 %v3267, %v3639
      %v3698 = vadd.f32 %v3268, %v3644
      %v3699 = vadd.f32 %v3269, %v3649
      %v3700 = vadd.f32 %v3270, %v3654
      %v3701 = vadd.f32 %v3271, %v3659
      %v3702 = vadd.f32 %v3272, %v3664
      %v3703 = vld [vmem:[%s2] sm:$0x1]
      %v3705 = vlaneseq
      %v3706 = vshrl.u32 %v3705, 7
      %v3707 = vsub.s32 0, %v3706
      %v3708 = vrot.slane %v3703, %v3707
      %v3710 = vadd.f32 %v3667, %v3708
      %v3711 = vadd.f32 %v3668, %v3708
      %v3712 = vadd.f32 %v3669, %v3708
      %v3713 = vadd.f32 %v3670, %v3708
      %v3714 = vadd.f32 %v3671, %v3708
      %v3715 = vadd.f32 %v3672, %v3708
      %v3716 = vadd.f32 %v3673, %v3708
      %v3717 = vadd.f32 %v3674, %v3708
      %v3718 = vadd.f32 %v3675, %v3708
      %v3719 = vadd.f32 %v3676, %v3708
      %v3720 = vadd.f32 %v3677, %v3708
      %v3721 = vadd.f32 %v3678, %v3708
      %v3722 = vadd.f32 %v3679, %v3708
      %v3723 = vadd.f32 %v3680, %v3708
      %v3724 = vadd.f32 %v3681, %v3708
      %v3725 = vadd.f32 %v3682, %v3708
      %v3726 = vadd.f32 %v3683, %v3708
      %v3727 = vadd.f32 %v3684, %v3708
      %v3728 = vadd.f32 %v3685, %v3708
      %v3729 = vadd.f32 %v3686, %v3708
      %v3730 = vadd.f32 %v3687, %v3708
      %v3731 = vadd.f32 %v3688, %v3708
      %v3732 = vadd.f32 %v3689, %v3708
      %v3733 = vadd.f32 %v3690, %v3708
      %v3734 = vadd.f32 %v3691, %v3708
      %v3735 = vadd.f32 %v3692, %v3708
      %v3736 = vadd.f32 %v3693, %v3708
      %v3737 = vadd.f32 %v3694, %v3708
      %v3738 = vadd.f32 %v3695, %v3708
      %v3739 = vadd.f32 %v3696, %v3708
      %v3740 = vadd.f32 %v3697, %v3708
      %v3741 = vadd.f32 %v3698, %v3708
      %v3742 = vadd.f32 %v3699, %v3708
      %v3743 = vadd.f32 %v3700, %v3708
      %v3744 = vadd.f32 %v3701, %v3708
      %v3745 = vadd.f32 %v3702, %v3708
      %v3746 = vmax.f32 %v3710, 0.0
      %v3747 = vmax.f32 %v3711, 0.0
      %v3748 = vmax.f32 %v3712, 0.0
      %v3749 = vmax.f32 %v3713, 0.0
      %v3750 = vmax.f32 %v3714, 0.0
      %v3751 = vmax.f32 %v3715, 0.0
      %v3752 = vmax.f32 %v3716, 0.0
      %v3753 = vmax.f32 %v3717, 0.0
      %v3754 = vmax.f32 %v3718, 0.0
      %v3755 = vmax.f32 %v3719, 0.0
      %v3756 = vmax.f32 %v3720, 0.0
      %v3757 = vmax.f32 %v3721, 0.0
      %v3758 = vmax.f32 %v3722, 0.0
      %v3759 = vmax.f32 %v3723, 0.0
      %v3760 = vmax.f32 %v3724, 0.0
      %v3761 = vmax.f32 %v3725, 0.0
      %v3762 = vmax.f32 %v3726, 0.0
      %v3763 = vmax.f32 %v3727, 0.0
      %v3764 = vmax.f32 %v3728, 0.0
      %v3765 = vmax.f32 %v3729, 0.0
      %v3766 = vmax.f32 %v3730, 0.0
      %v3767 = vmax.f32 %v3731, 0.0
      %v3768 = vmax.f32 %v3732, 0.0
      %v3769 = vmax.f32 %v3733, 0.0
      %v3770 = vmax.f32 %v3734, 0.0
      %v3771 = vmax.f32 %v3735, 0.0
      %v3772 = vmax.f32 %v3736, 0.0
      %v3773 = vmax.f32 %v3737, 0.0
      %v3774 = vmax.f32 %v3738, 0.0
      %v3775 = vmax.f32 %v3739, 0.0
      %v3776 = vmax.f32 %v3740, 0.0
      %v3777 = vmax.f32 %v3741, 0.0
      %v3778 = vmax.f32 %v3742, 0.0
      %v3779 = vmax.f32 %v3743, 0.0
      %v3780 = vmax.f32 %v3744, 0.0
      %v3781 = vmax.f32 %v3745, 0.0
      %v3782 = vlaneseq
      %v3783 = vshrl.u32 %v3782, 7
      %v3784 = vadd.s32 %v3783, 8
      %v3785 = vadd.s32 %v3783, 16
      %v3786 = vadd.s32 %v3783, 24
      %v3787 = vadd.s32 %v3783, 32
      %v3788 = vadd.s32 %v3783, 40
      %v3789 = vadd.s32 %v3783, 48
      %v3790 = vadd.s32 %v3783, 56
      %v3791 = vadd.s32 %v3783, 64
      %v3792 = vadd.s32 %v3783, 72
      %v3793 = vadd.s32 %v3783, 80
      %v3794 = vadd.s32 %v3783, 88
      %v3795 = vadd.s32 %v3783, 96
      %v3796 = vadd.s32 %v3783, 104
      %v3797 = vadd.s32 %v3783, 112
      %v3798 = vadd.s32 %v3783, 120
      %v3799 = vadd.s32 %v3783, 128
      %v3800 = vadd.s32 %v3783, 136
      %v3801 = vadd.s32 %v3783, 144
      %v3802 = vadd.s32 %v3783, 152
      %v3803 = vadd.s32 %v3783, 160
      %v3804 = vadd.s32 %v3783, 168
      %v3805 = vadd.s32 %v3783, 176
      %v3806 = vadd.s32 %v3783, 184
      %v3807 = vadd.s32 %v3783, 192
      %v3808 = vadd.s32 %v3783, 200
      %v3809 = vadd.s32 %v3783, 208
      %v3810 = vadd.s32 %v3783, 216
      %v3811 = vadd.s32 %v3783, 224
      %v3812 = vadd.s32 %v3783, 232
      %v3813 = vadd.s32 %v3783, 240
      %v3814 = vadd.s32 %v3783, 248
      %v3815 = vadd.s32 %v3783, 256
      %v3816 = vadd.s32 %v3783, 264
      %v3817 = vadd.s32 %v3783, 272
      %v3818 = vadd.s32 %v3783, 280
      %vm3819 = vcmp.lt.s32.totalorder %v3783, 0
      %v3820 = vsub.s32 0, %v3783
      %v3821 = vsel %vm3819, %v3820, %v3783
      %v3822 = vmul.u32.u64.compose %v3821, 3817748708
      %v3823 = vextract.low.u32 %v3822
      %v3824 = vextract.high.u32 %v3822
      %v3825 = vshrl.u32 %v3824, 4
      %v3826 = vmul.u32 %v3825, 18
      %v3827 = vsub.s32 %v3821, %v3826
      %v3828 = vsub.s32 0, %v3827
      %v3829 = vsel %vm3819, %v3828, %v3827
      %vm3830 = vcmp.lt.s32.totalorder %v3784, 0
      %v3831 = vsub.s32 0, %v3784
      %v3832 = vsel %vm3830, %v3831, %v3784
      %v3833 = vmul.u32.u64.compose %v3832, 3817748708
      %v3834 = vextract.low.u32 %v3833
      %v3835 = vextract.high.u32 %v3833
      %v3836 = vshrl.u32 %v3835, 4
      %v3837 = vmul.u32 %v3836, 18
      %v3838 = vsub.s32 %v3832, %v3837
      %v3839 = vsub.s32 0, %v3838
      %v3840 = vsel %vm3830, %v3839, %v3838
      %vm3841 = vcmp.lt.s32.totalorder %v3785, 0
      %v3842 = vsub.s32 0, %v3785
      %v3843 = vsel %vm3841, %v3842, %v3785
      %v3844 = vmul.u32.u64.compose %v3843, 3817748708
      %v3845 = vextract.low.u32 %v3844
      %v3846 = vextract.high.u32 %v3844
      %v3847 = vshrl.u32 %v3846, 4
      %v3848 = vmul.u32 %v3847, 18
      %v3849 = vsub.s32 %v3843, %v3848
      %v3850 = vsub.s32 0, %v3849
      %v3851 = vsel %vm3841, %v3850, %v3849
      %vm3852 = vcmp.lt.s32.totalorder %v3786, 0
      %v3853 = vsub.s32 0, %v3786
      %v3854 = vsel %vm3852, %v3853, %v3786
      %v3855 = vmul.u32.u64.compose %v3854, 3817748708
      %v3856 = vextract.low.u32 %v3855
      %v3857 = vextract.high.u32 %v3855
      %v3858 = vshrl.u32 %v3857, 4
      %v3859 = vmul.u32 %v3858, 18
      %v3860 = vsub.s32 %v3854, %v3859
      %v3861 = vsub.s32 0, %v3860
      %v3862 = vsel %vm3852, %v3861, %v3860
      %vm3863 = vcmp.lt.s32.totalorder %v3787, 0
      %v3864 = vsub.s32 0, %v3787
      %v3865 = vsel %vm3863, %v3864, %v3787
      %v3866 = vmul.u32.u64.compose %v3865, 3817748708
      %v3867 = vextract.low.u32 %v3866
      %v3868 = vextract.high.u32 %v3866
      %v3869 = vshrl.u32 %v3868, 4
      %v3870 = vmul.u32 %v3869, 18
      %v3871 = vsub.s32 %v3865, %v3870
      %v3872 = vsub.s32 0, %v3871
      %v3873 = vsel %vm3863, %v3872, %v3871
      %vm3874 = vcmp.lt.s32.totalorder %v3788, 0
      %v3875 = vsub.s32 0, %v3788
      %v3876 = vsel %vm3874, %v3875, %v3788
      %v3877 = vmul.u32.u64.compose %v3876, 3817748708
      %v3878 = vextract.low.u32 %v3877
      %v3879 = vextract.high.u32 %v3877
      %v3880 = vshrl.u32 %v3879, 4
      %v3881 = vmul.u32 %v3880, 18
      %v3882 = vsub.s32 %v3876, %v3881
      %v3883 = vsub.s32 0, %v3882
      %v3884 = vsel %vm3874, %v3883, %v3882
      %vm3885 = vcmp.lt.s32.totalorder %v3789, 0
      %v3886 = vsub.s32 0, %v3789
      %v3887 = vsel %vm3885, %v3886, %v3789
      %v3888 = vmul.u32.u64.compose %v3887, 3817748708
      %v3889 = vextract.low.u32 %v3888
      %v3890 = vextract.high.u32 %v3888
      %v3891 = vshrl.u32 %v3890, 4
      %v3892 = vmul.u32 %v3891, 18
      %v3893 = vsub.s32 %v3887, %v3892
      %v3894 = vsub.s32 0, %v3893
      %v3895 = vsel %vm3885, %v3894, %v3893
      %vm3896 = vcmp.lt.s32.totalorder %v3790, 0
      %v3897 = vsub.s32 0, %v3790
      %v3898 = vsel %vm3896, %v3897, %v3790
      %v3899 = vmul.u32.u64.compose %v3898, 3817748708
      %v3900 = vextract.low.u32 %v3899
      %v3901 = vextract.high.u32 %v3899
      %v3902 = vshrl.u32 %v3901, 4
      %v3903 = vmul.u32 %v3902, 18
      %v3904 = vsub.s32 %v3898, %v3903
      %v3905 = vsub.s32 0, %v3904
      %v3906 = vsel %vm3896, %v3905, %v3904
      %vm3907 = vcmp.lt.s32.totalorder %v3791, 0
      %v3908 = vsub.s32 0, %v3791
      %v3909 = vsel %vm3907, %v3908, %v3791
      %v3910 = vmul.u32.u64.compose %v3909, 3817748708
      %v3911 = vextract.low.u32 %v3910
      %v3912 = vextract.high.u32 %v3910
      %v3913 = vshrl.u32 %v3912, 4
      %v3914 = vmul.u32 %v3913, 18
      %v3915 = vsub.s32 %v3909, %v3914
      %v3916 = vsub.s32 0, %v3915
      %v3917 = vsel %vm3907, %v3916, %v3915
      %vm3918 = vcmp.lt.s32.totalorder %v3792, 0
      %v3919 = vsub.s32 0, %v3792
      %v3920 = vsel %vm3918, %v3919, %v3792
      %v3921 = vmul.u32.u64.compose %v3920, 3817748708
      %v3922 = vextract.low.u32 %v3921
      %v3923 = vextract.high.u32 %v3921
      %v3924 = vshrl.u32 %v3923, 4
      %v3925 = vmul.u32 %v3924, 18
      %v3926 = vsub.s32 %v3920, %v3925
      %v3927 = vsub.s32 0, %v3926
      %v3928 = vsel %vm3918, %v3927, %v3926
      %vm3929 = vcmp.lt.s32.totalorder %v3793, 0
      %v3930 = vsub.s32 0, %v3793
      %v3931 = vsel %vm3929, %v3930, %v3793
      %v3932 = vmul.u32.u64.compose %v3931, 3817748708
      %v3933 = vextract.low.u32 %v3932
      %v3934 = vextract.high.u32 %v3932
      %v3935 = vshrl.u32 %v3934, 4
      %v3936 = vmul.u32 %v3935, 18
      %v3937 = vsub.s32 %v3931, %v3936
      %v3938 = vsub.s32 0, %v3937
      %v3939 = vsel %vm3929, %v3938, %v3937
      %vm3940 = vcmp.lt.s32.totalorder %v3794, 0
      %v3941 = vsub.s32 0, %v3794
      %v3942 = vsel %vm3940, %v3941, %v3794
      %v3943 = vmul.u32.u64.compose %v3942, 3817748708
      %v3944 = vextract.low.u32 %v3943
      %v3945 = vextract.high.u32 %v3943
      %v3946 = vshrl.u32 %v3945, 4
      %v3947 = vmul.u32 %v3946, 18
      %v3948 = vsub.s32 %v3942, %v3947
      %v3949 = vsub.s32 0, %v3948
      %v3950 = vsel %vm3940, %v3949, %v3948
      %vm3951 = vcmp.lt.s32.totalorder %v3795, 0
      %v3952 = vsub.s32 0, %v3795
      %v3953 = vsel %vm3951, %v3952, %v3795
      %v3954 = vmul.u32.u64.compose %v3953, 3817748708
      %v3955 = vextract.low.u32 %v3954
      %v3956 = vextract.high.u32 %v3954
      %v3957 = vshrl.u32 %v3956, 4
      %v3958 = vmul.u32 %v3957, 18
      %v3959 = vsub.s32 %v3953, %v3958
      %v3960 = vsub.s32 0, %v3959
      %v3961 = vsel %vm3951, %v3960, %v3959
      %vm3962 = vcmp.lt.s32.totalorder %v3796, 0
      %v3963 = vsub.s32 0, %v3796
      %v3964 = vsel %vm3962, %v3963, %v3796
      %v3965 = vmul.u32.u64.compose %v3964, 3817748708
      %v3966 = vextract.low.u32 %v3965
      %v3967 = vextract.high.u32 %v3965
      %v3968 = vshrl.u32 %v3967, 4
      %v3969 = vmul.u32 %v3968, 18
      %v3970 = vsub.s32 %v3964, %v3969
      %v3971 = vsub.s32 0, %v3970
      %v3972 = vsel %vm3962, %v3971, %v3970
      %vm3973 = vcmp.lt.s32.totalorder %v3797, 0
      %v3974 = vsub.s32 0, %v3797
      %v3975 = vsel %vm3973, %v3974, %v3797
      %v3976 = vmul.u32.u64.compose %v3975, 3817748708
      %v3977 = vextract.low.u32 %v3976
      %v3978 = vextract.high.u32 %v3976
      %v3979 = vshrl.u32 %v3978, 4
      %v3980 = vmul.u32 %v3979, 18
      %v3981 = vsub.s32 %v3975, %v3980
      %v3982 = vsub.s32 0, %v3981
      %v3983 = vsel %vm3973, %v3982, %v3981
      %vm3984 = vcmp.lt.s32.totalorder %v3798, 0
      %v3985 = vsub.s32 0, %v3798
      %v3986 = vsel %vm3984, %v3985, %v3798
      %v3987 = vmul.u32.u64.compose %v3986, 3817748708
      %v3988 = vextract.low.u32 %v3987
      %v3989 = vextract.high.u32 %v3987
      %v3990 = vshrl.u32 %v3989, 4
      %v3991 = vmul.u32 %v3990, 18
      %v3992 = vsub.s32 %v3986, %v3991
      %v3993 = vsub.s32 0, %v3992
      %v3994 = vsel %vm3984, %v3993, %v3992
      %vm3995 = vcmp.lt.s32.totalorder %v3799, 0
      %v3996 = vsub.s32 0, %v3799
      %v3997 = vsel %vm3995, %v3996, %v3799
      %v3998 = vmul.u32.u64.compose %v3997, 3817748708
      %v3999 = vextract.low.u32 %v3998
      %v4000 = vextract.high.u32 %v3998
      %v4001 = vshrl.u32 %v4000, 4
      %v4002 = vmul.u32 %v4001, 18
      %v4003 = vsub.s32 %v3997, %v4002
      %v4004 = vsub.s32 0, %v4003
      %v4005 = vsel %vm3995, %v4004, %v4003
      %vm4006 = vcmp.lt.s32.totalorder %v3800, 0
      %v4007 = vsub.s32 0, %v3800
      %v4008 = vsel %vm4006, %v4007, %v3800
      %v4009 = vmul.u32.u64.compose %v4008, 3817748708
      %v4010 = vextract.low.u32 %v4009
      %v4011 = vextract.high.u32 %v4009
      %v4012 = vshrl.u32 %v4011, 4
      %v4013 = vmul.u32 %v4012, 18
      %v4014 = vsub.s32 %v4008, %v4013
      %v4015 = vsub.s32 0, %v4014
      %v4016 = vsel %vm4006, %v4015, %v4014
      %vm4017 = vcmp.lt.s32.totalorder %v3801, 0
      %v4018 = vsub.s32 0, %v3801
      %v4019 = vsel %vm4017, %v4018, %v3801
      %v4020 = vmul.u32.u64.compose %v4019, 3817748708
      %v4021 = vextract.low.u32 %v4020
      %v4022 = vextract.high.u32 %v4020
      %v4023 = vshrl.u32 %v4022, 4
      %v4024 = vmul.u32 %v4023, 18
      %v4025 = vsub.s32 %v4019, %v4024
      %v4026 = vsub.s32 0, %v4025
      %v4027 = vsel %vm4017, %v4026, %v4025
      %vm4028 = vcmp.lt.s32.totalorder %v3802, 0
      %v4029 = vsub.s32 0, %v3802
      %v4030 = vsel %vm4028, %v4029, %v3802
      %v4031 = vmul.u32.u64.compose %v4030, 3817748708
      %v4032 = vextract.low.u32 %v4031
      %v4033 = vextract.high.u32 %v4031
      %v4034 = vshrl.u32 %v4033, 4
      %v4035 = vmul.u32 %v4034, 18
      %v4036 = vsub.s32 %v4030, %v4035
      %v4037 = vsub.s32 0, %v4036
      %v4038 = vsel %vm4028, %v4037, %v4036
      %vm4039 = vcmp.lt.s32.totalorder %v3803, 0
      %v4040 = vsub.s32 0, %v3803
      %v4041 = vsel %vm4039, %v4040, %v3803
      %v4042 = vmul.u32.u64.compose %v4041, 3817748708
      %v4043 = vextract.low.u32 %v4042
      %v4044 = vextract.high.u32 %v4042
      %v4045 = vshrl.u32 %v4044, 4
      %v4046 = vmul.u32 %v4045, 18
      %v4047 = vsub.s32 %v4041, %v4046
      %v4048 = vsub.s32 0, %v4047
      %v4049 = vsel %vm4039, %v4048, %v4047
      %vm4050 = vcmp.lt.s32.totalorder %v3804, 0
      %v4051 = vsub.s32 0, %v3804
      %v4052 = vsel %vm4050, %v4051, %v3804
      %v4053 = vmul.u32.u64.compose %v4052, 3817748708
      %v4054 = vextract.low.u32 %v4053
      %v4055 = vextract.high.u32 %v4053
      %v4056 = vshrl.u32 %v4055, 4
      %v4057 = vmul.u32 %v4056, 18
      %v4058 = vsub.s32 %v4052, %v4057
      %v4059 = vsub.s32 0, %v4058
      %v4060 = vsel %vm4050, %v4059, %v4058
      %vm4061 = vcmp.lt.s32.totalorder %v3805, 0
      %v4062 = vsub.s32 0, %v3805
      %v4063 = vsel %vm4061, %v4062, %v3805
      %v4064 = vmul.u32.u64.compose %v4063, 3817748708
      %v4065 = vextract.low.u32 %v4064
      %v4066 = vextract.high.u32 %v4064
      %v4067 = vshrl.u32 %v4066, 4
      %v4068 = vmul.u32 %v4067, 18
      %v4069 = vsub.s32 %v4063, %v4068
      %v4070 = vsub.s32 0, %v4069
      %v4071 = vsel %vm4061, %v4070, %v4069
      %vm4072 = vcmp.lt.s32.totalorder %v3806, 0
      %v4073 = vsub.s32 0, %v3806
      %v4074 = vsel %vm4072, %v4073, %v3806
      %v4075 = vmul.u32.u64.compose %v4074, 3817748708
      %v4076 = vextract.low.u32 %v4075
      %v4077 = vextract.high.u32 %v4075
      %v4078 = vshrl.u32 %v4077, 4
      %v4079 = vmul.u32 %v4078, 18
      %v4080 = vsub.s32 %v4074, %v4079
      %v4081 = vsub.s32 0, %v4080
      %v4082 = vsel %vm4072, %v4081, %v4080
      %vm4083 = vcmp.lt.s32.totalorder %v3807, 0
      %v4084 = vsub.s32 0, %v3807
      %v4085 = vsel %vm4083, %v4084, %v3807
      %v4086 = vmul.u32.u64.compose %v4085, 3817748708
      %v4087 = vextract.low.u32 %v4086
      %v4088 = vextract.high.u32 %v4086
      %v4089 = vshrl.u32 %v4088, 4
      %v4090 = vmul.u32 %v4089, 18
      %v4091 = vsub.s32 %v4085, %v4090
      %v4092 = vsub.s32 0, %v4091
      %v4093 = vsel %vm4083, %v4092, %v4091
      %vm4094 = vcmp.lt.s32.totalorder %v3808, 0
      %v4095 = vsub.s32 0, %v3808
      %v4096 = vsel %vm4094, %v4095, %v3808
      %v4097 = vmul.u32.u64.compose %v4096, 3817748708
      %v4098 = vextract.low.u32 %v4097
      %v4099 = vextract.high.u32 %v4097
      %v4100 = vshrl.u32 %v4099, 4
      %v4101 = vmul.u32 %v4100, 18
      %v4102 = vsub.s32 %v4096, %v4101
      %v4103 = vsub.s32 0, %v4102
      %v4104 = vsel %vm4094, %v4103, %v4102
      %vm4105 = vcmp.lt.s32.totalorder %v3809, 0
      %v4106 = vsub.s32 0, %v3809
      %v4107 = vsel %vm4105, %v4106, %v3809
      %v4108 = vmul.u32.u64.compose %v4107, 3817748708
      %v4109 = vextract.low.u32 %v4108
      %v4110 = vextract.high.u32 %v4108
      %v4111 = vshrl.u32 %v4110, 4
      %v4112 = vmul.u32 %v4111, 18
      %v4113 = vsub.s32 %v4107, %v4112
      %v4114 = vsub.s32 0, %v4113
      %v4115 = vsel %vm4105, %v4114, %v4113
      %vm4116 = vcmp.lt.s32.totalorder %v3810, 0
      %v4117 = vsub.s32 0, %v3810
      %v4118 = vsel %vm4116, %v4117, %v3810
      %v4119 = vmul.u32.u64.compose %v4118, 3817748708
      %v4120 = vextract.low.u32 %v4119
      %v4121 = vextract.high.u32 %v4119
      %v4122 = vshrl.u32 %v4121, 4
      %v4123 = vmul.u32 %v4122, 18
      %v4124 = vsub.s32 %v4118, %v4123
      %v4125 = vsub.s32 0, %v4124
      %v4126 = vsel %vm4116, %v4125, %v4124
      %vm4127 = vcmp.lt.s32.totalorder %v3811, 0
      %v4128 = vsub.s32 0, %v3811
      %v4129 = vsel %vm4127, %v4128, %v3811
      %v4130 = vmul.u32.u64.compose %v4129, 3817748708
      %v4131 = vextract.low.u32 %v4130
      %v4132 = vextract.high.u32 %v4130
      %v4133 = vshrl.u32 %v4132, 4
      %v4134 = vmul.u32 %v4133, 18
      %v4135 = vsub.s32 %v4129, %v4134
      %v4136 = vsub.s32 0, %v4135
      %v4137 = vsel %vm4127, %v4136, %v4135
      %vm4138 = vcmp.lt.s32.totalorder %v3812, 0
      %v4139 = vsub.s32 0, %v3812
      %v4140 = vsel %vm4138, %v4139, %v3812
      %v4141 = vmul.u32.u64.compose %v4140, 3817748708
      %v4142 = vextract.low.u32 %v4141
      %v4143 = vextract.high.u32 %v4141
      %v4144 = vshrl.u32 %v4143, 4
      %v4145 = vmul.u32 %v4144, 18
      %v4146 = vsub.s32 %v4140, %v4145
      %v4147 = vsub.s32 0, %v4146
      %v4148 = vsel %vm4138, %v4147, %v4146
      %vm4149 = vcmp.lt.s32.totalorder %v3813, 0
      %v4150 = vsub.s32 0, %v3813
      %v4151 = vsel %vm4149, %v4150, %v3813
      %v4152 = vmul.u32.u64.compose %v4151, 3817748708
      %v4153 = vextract.low.u32 %v4152
      %v4154 = vextract.high.u32 %v4152
      %v4155 = vshrl.u32 %v4154, 4
      %v4156 = vmul.u32 %v4155, 18
      %v4157 = vsub.s32 %v4151, %v4156
      %v4158 = vsub.s32 0, %v4157
      %v4159 = vsel %vm4149, %v4158, %v4157
      %vm4160 = vcmp.lt.s32.totalorder %v3814, 0
      %v4161 = vsub.s32 0, %v3814
      %v4162 = vsel %vm4160, %v4161, %v3814
      %v4163 = vmul.u32.u64.compose %v4162, 3817748708
      %v4164 = vextract.low.u32 %v4163
      %v4165 = vextract.high.u32 %v4163
      %v4166 = vshrl.u32 %v4165, 4
      %v4167 = vmul.u32 %v4166, 18
      %v4168 = vsub.s32 %v4162, %v4167
      %v4169 = vsub.s32 0, %v4168
      %v4170 = vsel %vm4160, %v4169, %v4168
      %vm4171 = vcmp.lt.s32.totalorder %v3815, 0
      %v4172 = vsub.s32 0, %v3815
      %v4173 = vsel %vm4171, %v4172, %v3815
      %v4174 = vmul.u32.u64.compose %v4173, 3817748708
      %v4175 = vextract.low.u32 %v4174
      %v4176 = vextract.high.u32 %v4174
      %v4177 = vshrl.u32 %v4176, 4
      %v4178 = vmul.u32 %v4177, 18
      %v4179 = vsub.s32 %v4173, %v4178
      %v4180 = vsub.s32 0, %v4179
      %v4181 = vsel %vm4171, %v4180, %v4179
      %vm4182 = vcmp.lt.s32.totalorder %v3816, 0
      %v4183 = vsub.s32 0, %v3816
      %v4184 = vsel %vm4182, %v4183, %v3816
      %v4185 = vmul.u32.u64.compose %v4184, 3817748708
      %v4186 = vextract.low.u32 %v4185
      %v4187 = vextract.high.u32 %v4185
      %v4188 = vshrl.u32 %v4187, 4
      %v4189 = vmul.u32 %v4188, 18
      %v4190 = vsub.s32 %v4184, %v4189
      %v4191 = vsub.s32 0, %v4190
      %v4192 = vsel %vm4182, %v4191, %v4190
      %vm4193 = vcmp.lt.s32.totalorder %v3817, 0
      %v4194 = vsub.s32 0, %v3817
      %v4195 = vsel %vm4193, %v4194, %v3817
      %v4196 = vmul.u32.u64.compose %v4195, 3817748708
      %v4197 = vextract.low.u32 %v4196
      %v4198 = vextract.high.u32 %v4196
      %v4199 = vshrl.u32 %v4198, 4
      %v4200 = vmul.u32 %v4199, 18
      %v4201 = vsub.s32 %v4195, %v4200
      %v4202 = vsub.s32 0, %v4201
      %v4203 = vsel %vm4193, %v4202, %v4201
      %vm4204 = vcmp.lt.s32.totalorder %v3818, 0
      %v4205 = vsub.s32 0, %v3818
      %v4206 = vsel %vm4204, %v4205, %v3818
      %v4207 = vmul.u32.u64.compose %v4206, 3817748708
      %v4208 = vextract.low.u32 %v4207
      %v4209 = vextract.high.u32 %v4207
      %v4210 = vshrl.u32 %v4209, 4
      %v4211 = vmul.u32 %v4210, 18
      %v4212 = vsub.s32 %v4206, %v4211
      %v4213 = vsub.s32 0, %v4212
      %v4214 = vsel %vm4204, %v4213, %v4212
      %vm4215 = vcmp.ne.s32.totalorder %v3829, 0
      %vm4216 = vcmp.ne.s32.totalorder %v3840, 0
      %vm4217 = vcmp.ne.s32.totalorder %v3851, 0
      %vm4218 = vcmp.ne.s32.totalorder %v3862, 0
      %vm4219 = vcmp.ne.s32.totalorder %v3873, 0
      %vm4220 = vcmp.ne.s32.totalorder %v3884, 0
      %vm4221 = vcmp.ne.s32.totalorder %v3895, 0
      %vm4222 = vcmp.ne.s32.totalorder %v3906, 0
      %vm4223 = vcmp.ne.s32.totalorder %v3917, 0
      %vm4224 = vcmp.ne.s32.totalorder %v3928, 0
      %vm4225 = vcmp.ne.s32.totalorder %v3939, 0
      %vm4226 = vcmp.ne.s32.totalorder %v3950, 0
      %vm4227 = vcmp.ne.s32.totalorder %v3961, 0
      %vm4228 = vcmp.ne.s32.totalorder %v3972, 0
      %vm4229 = vcmp.ne.s32.totalorder %v3983, 0
      %vm4230 = vcmp.ne.s32.totalorder %v3994, 0
      %vm4231 = vcmp.ne.s32.totalorder %v4005, 0
      %vm4232 = vcmp.ne.s32.totalorder %v4016, 0
      %vm4233 = vcmp.ne.s32.totalorder %v4027, 0
      %vm4234 = vcmp.ne.s32.totalorder %v4038, 0
      %vm4235 = vcmp.ne.s32.totalorder %v4049, 0
      %vm4236 = vcmp.ne.s32.totalorder %v4060, 0
      %vm4237 = vcmp.ne.s32.totalorder %v4071, 0
      %vm4238 = vcmp.ne.s32.totalorder %v4082, 0
      %vm4239 = vcmp.ne.s32.totalorder %v4093, 0
      %vm4240 = vcmp.ne.s32.totalorder %v4104, 0
      %vm4241 = vcmp.ne.s32.totalorder %v4115, 0
      %vm4242 = vcmp.ne.s32.totalorder %v4126, 0
      %vm4243 = vcmp.ne.s32.totalorder %v4137, 0
      %vm4244 = vcmp.ne.s32.totalorder %v4148, 0
      %vm4245 = vcmp.ne.s32.totalorder %v4159, 0
      %vm4246 = vcmp.ne.s32.totalorder %v4170, 0
      %vm4247 = vcmp.ne.s32.totalorder %v4181, 0
      %vm4248 = vcmp.ne.s32.totalorder %v4192, 0
      %vm4249 = vcmp.ne.s32.totalorder %v4203, 0
      %vm4250 = vcmp.ne.s32.totalorder %v4214, 0
      %vm4251 = vcmp.lt.s32.totalorder %v3829, 0
      %vm4252 = vcmp.lt.s32.totalorder %v3840, 0
      %vm4253 = vcmp.lt.s32.totalorder %v3851, 0
      %vm4254 = vcmp.lt.s32.totalorder %v3862, 0
      %vm4255 = vcmp.lt.s32.totalorder %v3873, 0
      %vm4256 = vcmp.lt.s32.totalorder %v3884, 0
      %vm4257 = vcmp.lt.s32.totalorder %v3895, 0
      %vm4258 = vcmp.lt.s32.totalorder %v3906, 0
      %vm4259 = vcmp.lt.s32.totalorder %v3917, 0
      %vm4260 = vcmp.lt.s32.totalorder %v3928, 0
      %vm4261 = vcmp.lt.s32.totalorder %v3939, 0
      %vm4262 = vcmp.lt.s32.totalorder %v3950, 0
      %vm4263 = vcmp.lt.s32.totalorder %v3961, 0
      %vm4264 = vcmp.lt.s32.totalorder %v3972, 0
      %vm4265 = vcmp.lt.s32.totalorder %v3983, 0
      %vm4266 = vcmp.lt.s32.totalorder %v3994, 0
      %vm4267 = vcmp.lt.s32.totalorder %v4005, 0
      %vm4268 = vcmp.lt.s32.totalorder %v4016, 0
      %vm4269 = vcmp.lt.s32.totalorder %v4027, 0
      %vm4270 = vcmp.lt.s32.totalorder %v4038, 0
      %vm4271 = vcmp.lt.s32.totalorder %v4049, 0
      %vm4272 = vcmp.lt.s32.totalorder %v4060, 0
      %vm4273 = vcmp.lt.s32.totalorder %v4071, 0
      %vm4274 = vcmp.lt.s32.totalorder %v4082, 0
      %vm4275 = vcmp.lt.s32.totalorder %v4093, 0
      %vm4276 = vcmp.lt.s32.totalorder %v4104, 0
      %vm4277 = vcmp.lt.s32.totalorder %v4115, 0
      %vm4278 = vcmp.lt.s32.totalorder %v4126, 0
      %vm4279 = vcmp.lt.s32.totalorder %v4137, 0
      %vm4280 = vcmp.lt.s32.totalorder %v4148, 0
      %vm4281 = vcmp.lt.s32.totalorder %v4159, 0
      %vm4282 = vcmp.lt.s32.totalorder %v4170, 0
      %vm4283 = vcmp.lt.s32.totalorder %v4181, 0
      %vm4284 = vcmp.lt.s32.totalorder %v4192, 0
      %vm4285 = vcmp.lt.s32.totalorder %v4203, 0
      %vm4286 = vcmp.lt.s32.totalorder %v4214, 0
      %vm4287 = vmand %vm4251, %vm4215
      %vm4288 = vmand %vm4252, %vm4216
      %vm4289 = vmand %vm4253, %vm4217
      %vm4290 = vmand %vm4254, %vm4218
      %vm4291 = vmand %vm4255, %vm4219
      %vm4292 = vmand %vm4256, %vm4220
      %vm4293 = vmand %vm4257, %vm4221
      %vm4294 = vmand %vm4258, %vm4222
      %vm4295 = vmand %vm4259, %vm4223
      %vm4296 = vmand %vm4260, %vm4224
      %vm4297 = vmand %vm4261, %vm4225
      %vm4298 = vmand %vm4262, %vm4226
      %vm4299 = vmand %vm4263, %vm4227
      %vm4300 = vmand %vm4264, %vm4228
      %vm4301 = vmand %vm4265, %vm4229
      %vm4302 = vmand %vm4266, %vm4230
      %vm4303 = vmand %vm4267, %vm4231
      %vm4304 = vmand %vm4268, %vm4232
      %vm4305 = vmand %vm4269, %vm4233
      %vm4306 = vmand %vm4270, %vm4234
      %vm4307 = vmand %vm4271, %vm4235
      %vm4308 = vmand %vm4272, %vm4236
      %vm4309 = vmand %vm4273, %vm4237
      %vm4310 = vmand %vm4274, %vm4238
      %vm4311 = vmand %vm4275, %vm4239
      %vm4312 = vmand %vm4276, %vm4240
      %vm4313 = vmand %vm4277, %vm4241
      %vm4314 = vmand %vm4278, %vm4242
      %vm4315 = vmand %vm4279, %vm4243
      %vm4316 = vmand %vm4280, %vm4244
      %vm4317 = vmand %vm4281, %vm4245
      %vm4318 = vmand %vm4282, %vm4246
      %vm4319 = vmand %vm4283, %vm4247
      %vm4320 = vmand %vm4284, %vm4248
      %vm4321 = vmand %vm4285, %vm4249
      %vm4322 = vmand %vm4286, %vm4250
      %v4323 = vadd.s32 %v3829, 18
      %v4324 = vadd.s32 %v3840, 18
      %v4325 = vadd.s32 %v3851, 18
      %v4326 = vadd.s32 %v3862, 18
      %v4327 = vadd.s32 %v3873, 18
      %v4328 = vadd.s32 %v3884, 18
      %v4329 = vadd.s32 %v3895, 18
      %v4330 = vadd.s32 %v3906, 18
      %v4331 = vadd.s32 %v3917, 18
      %v4332 = vadd.s32 %v3928, 18
      %v4333 = vadd.s32 %v3939, 18
      %v4334 = vadd.s32 %v3950, 18
      %v4335 = vadd.s32 %v3961, 18
      %v4336 = vadd.s32 %v3972, 18
      %v4337 = vadd.s32 %v3983, 18
      %v4338 = vadd.s32 %v3994, 18
      %v4339 = vadd.s32 %v4005, 18
      %v4340 = vadd.s32 %v4016, 18
      %v4341 = vadd.s32 %v4027, 18
      %v4342 = vadd.s32 %v4038, 18
      %v4343 = vadd.s32 %v4049, 18
      %v4344 = vadd.s32 %v4060, 18
      %v4345 = vadd.s32 %v4071, 18
      %v4346 = vadd.s32 %v4082, 18
      %v4347 = vadd.s32 %v4093, 18
      %v4348 = vadd.s32 %v4104, 18
      %v4349 = vadd.s32 %v4115, 18
      %v4350 = vadd.s32 %v4126, 18
      %v4351 = vadd.s32 %v4137, 18
      %v4352 = vadd.s32 %v4148, 18
      %v4353 = vadd.s32 %v4159, 18
      %v4354 = vadd.s32 %v4170, 18
      %v4355 = vadd.s32 %v4181, 18
      %v4356 = vadd.s32 %v4192, 18
      %v4357 = vadd.s32 %v4203, 18
      %v4358 = vadd.s32 %v4214, 18
      %v4359 = vsel %vm4287, %v4323, %v3829
      %v4360 = vsel %vm4288, %v4324, %v3840
      %v4361 = vsel %vm4289, %v4325, %v3851
      %v4362 = vsel %vm4290, %v4326, %v3862
      %v4363 = vsel %vm4291, %v4327, %v3873
      %v4364 = vsel %vm4292, %v4328, %v3884
      %v4365 = vsel %vm4293, %v4329, %v3895
      %v4366 = vsel %vm4294, %v4330, %v3906
      %v4367 = vsel %vm4295, %v4331, %v3917
      %v4368 = vsel %vm4296, %v4332, %v3928
      %v4369 = vsel %vm4297, %v4333, %v3939
      %v4370 = vsel %vm4298, %v4334, %v3950
      %v4371 = vsel %vm4299, %v4335, %v3961
      %v4372 = vsel %vm4300, %v4336, %v3972
      %v4373 = vsel %vm4301, %v4337, %v3983
      %v4374 = vsel %vm4302, %v4338, %v3994
      %v4375 = vsel %vm4303, %v4339, %v4005
      %v4376 = vsel %vm4304, %v4340, %v4016
      %v4377 = vsel %vm4305, %v4341, %v4027
      %v4378 = vsel %vm4306, %v4342, %v4038
      %v4379 = vsel %vm4307, %v4343, %v4049
      %v4380 = vsel %vm4308, %v4344, %v4060
      %v4381 = vsel %vm4309, %v4345, %v4071
      %v4382 = vsel %vm4310, %v4346, %v4082
      %v4383 = vsel %vm4311, %v4347, %v4093
      %v4384 = vsel %vm4312, %v4348, %v4104
      %v4385 = vsel %vm4313, %v4349, %v4115
      %v4386 = vsel %vm4314, %v4350, %v4126
      %v4387 = vsel %vm4315, %v4351, %v4137
      %v4388 = vsel %vm4316, %v4352, %v4148
      %v4389 = vsel %vm4317, %v4353, %v4159
      %v4390 = vsel %vm4318, %v4354, %v4170
      %v4391 = vsel %vm4319, %v4355, %v4181
      %v4392 = vsel %vm4320, %v4356, %v4192
      %v4393 = vsel %vm4321, %v4357, %v4203
      %v4394 = vsel %vm4322, %v4358, %v4214
      %vm4395 = vcmp.lt.s32.totalorder %v4359, 16
      %vm4396 = vcmp.lt.s32.totalorder %v4360, 16
      %vm4397 = vcmp.lt.s32.totalorder %v4361, 16
      %vm4398 = vcmp.lt.s32.totalorder %v4362, 16
      %vm4399 = vcmp.lt.s32.totalorder %v4363, 16
      %vm4400 = vcmp.lt.s32.totalorder %v4364, 16
      %vm4401 = vcmp.lt.s32.totalorder %v4365, 16
      %vm4402 = vcmp.lt.s32.totalorder %v4366, 16
      %vm4403 = vcmp.lt.s32.totalorder %v4367, 16
      %vm4404 = vcmp.lt.s32.totalorder %v4368, 16
      %vm4405 = vcmp.lt.s32.totalorder %v4369, 16
      %vm4406 = vcmp.lt.s32.totalorder %v4370, 16
      %vm4407 = vcmp.lt.s32.totalorder %v4371, 16
      %vm4408 = vcmp.lt.s32.totalorder %v4372, 16
      %vm4409 = vcmp.lt.s32.totalorder %v4373, 16
      %vm4410 = vcmp.lt.s32.totalorder %v4374, 16
      %vm4411 = vcmp.lt.s32.totalorder %v4375, 16
      %vm4412 = vcmp.lt.s32.totalorder %v4376, 16
      %vm4413 = vcmp.lt.s32.totalorder %v4377, 16
      %vm4414 = vcmp.lt.s32.totalorder %v4378, 16
      %vm4415 = vcmp.lt.s32.totalorder %v4379, 16
      %vm4416 = vcmp.lt.s32.totalorder %v4380, 16
      %vm4417 = vcmp.lt.s32.totalorder %v4381, 16
      %vm4418 = vcmp.lt.s32.totalorder %v4382, 16
      %vm4419 = vcmp.lt.s32.totalorder %v4383, 16
      %vm4420 = vcmp.lt.s32.totalorder %v4384, 16
      %vm4421 = vcmp.lt.s32.totalorder %v4385, 16
      %vm4422 = vcmp.lt.s32.totalorder %v4386, 16
      %vm4423 = vcmp.lt.s32.totalorder %v4387, 16
      %vm4424 = vcmp.lt.s32.totalorder %v4388, 16
      %vm4425 = vcmp.lt.s32.totalorder %v4389, 16
      %vm4426 = vcmp.lt.s32.totalorder %v4390, 16
      %vm4427 = vcmp.lt.s32.totalorder %v4391, 16
      %vm4428 = vcmp.lt.s32.totalorder %v4392, 16
      %vm4429 = vcmp.lt.s32.totalorder %v4393, 16
      %vm4430 = vcmp.lt.s32.totalorder %v4394, 16
      %v4431 = vsel %vm4395, 1, 0
      %v4432 = vsel %vm4396, 1, 0
      %v4433 = vsel %vm4397, 1, 0
      %v4434 = vsel %vm4398, 1, 0
      %v4435 = vsel %vm4399, 1, 0
      %v4436 = vsel %vm4400, 1, 0
      %v4437 = vsel %vm4401, 1, 0
      %v4438 = vsel %vm4402, 1, 0
      %v4439 = vsel %vm4403, 1, 0
      %v4440 = vsel %vm4404, 1, 0
      %v4441 = vsel %vm4405, 1, 0
      %v4442 = vsel %vm4406, 1, 0
      %v4443 = vsel %vm4407, 1, 0
      %v4444 = vsel %vm4408, 1, 0
      %v4445 = vsel %vm4409, 1, 0
      %v4446 = vsel %vm4410, 1, 0
      %v4447 = vsel %vm4411, 1, 0
      %v4448 = vsel %vm4412, 1, 0
      %v4449 = vsel %vm4413, 1, 0
      %v4450 = vsel %vm4414, 1, 0
      %v4451 = vsel %vm4415, 1, 0
      %v4452 = vsel %vm4416, 1, 0
      %v4453 = vsel %vm4417, 1, 0
      %v4454 = vsel %vm4418, 1, 0
      %v4455 = vsel %vm4419, 1, 0
      %v4456 = vsel %vm4420, 1, 0
      %v4457 = vsel %vm4421, 1, 0
      %v4458 = vsel %vm4422, 1, 0
      %v4459 = vsel %vm4423, 1, 0
      %v4460 = vsel %vm4424, 1, 0
      %v4461 = vsel %vm4425, 1, 0
      %v4462 = vsel %vm4426, 1, 0
      %v4463 = vsel %vm4427, 1, 0
      %v4464 = vsel %vm4428, 1, 0
      %v4465 = vsel %vm4429, 1, 0
      %v4466 = vsel %vm4430, 1, 0
      %vm4467 = vcmp.eq.s32.totalorder %v4431, 1
      %vm4468 = vcmp.eq.s32.totalorder %v4432, 1
      %vm4469 = vcmp.eq.s32.totalorder %v4433, 1
      %vm4470 = vcmp.eq.s32.totalorder %v4434, 1
      %vm4471 = vcmp.eq.s32.totalorder %v4435, 1
      %vm4472 = vcmp.eq.s32.totalorder %v4436, 1
      %vm4473 = vcmp.eq.s32.totalorder %v4437, 1
      %vm4474 = vcmp.eq.s32.totalorder %v4438, 1
      %vm4475 = vcmp.eq.s32.totalorder %v4439, 1
      %vm4476 = vcmp.eq.s32.totalorder %v4440, 1
      %vm4477 = vcmp.eq.s32.totalorder %v4441, 1
      %vm4478 = vcmp.eq.s32.totalorder %v4442, 1
      %vm4479 = vcmp.eq.s32.totalorder %v4443, 1
      %vm4480 = vcmp.eq.s32.totalorder %v4444, 1
      %vm4481 = vcmp.eq.s32.totalorder %v4445, 1
      %vm4482 = vcmp.eq.s32.totalorder %v4446, 1
      %vm4483 = vcmp.eq.s32.totalorder %v4447, 1
      %vm4484 = vcmp.eq.s32.totalorder %v4448, 1
      %vm4485 = vcmp.eq.s32.totalorder %v4449, 1
      %vm4486 = vcmp.eq.s32.totalorder %v4450, 1
      %vm4487 = vcmp.eq.s32.totalorder %v4451, 1
      %vm4488 = vcmp.eq.s32.totalorder %v4452, 1
      %vm4489 = vcmp.eq.s32.totalorder %v4453, 1
      %vm4490 = vcmp.eq.s32.totalorder %v4454, 1
      %vm4491 = vcmp.eq.s32.totalorder %v4455, 1
      %vm4492 = vcmp.eq.s32.totalorder %v4456, 1
      %vm4493 = vcmp.eq.s32.totalorder %v4457, 1
      %vm4494 = vcmp.eq.s32.totalorder %v4458, 1
      %vm4495 = vcmp.eq.s32.totalorder %v4459, 1
      %vm4496 = vcmp.eq.s32.totalorder %v4460, 1
      %vm4497 = vcmp.eq.s32.totalorder %v4461, 1
      %vm4498 = vcmp.eq.s32.totalorder %v4462, 1
      %vm4499 = vcmp.eq.s32.totalorder %v4463, 1
      %vm4500 = vcmp.eq.s32.totalorder %v4464, 1
      %vm4501 = vcmp.eq.s32.totalorder %v4465, 1
      %vm4502 = vcmp.eq.s32.totalorder %v4466, 1
      %v4503 = vsel %vm4467, %v3746, 0.0
      %v4504 = vsel %vm4468, %v3747, 0.0
      %v4505 = vsel %vm4469, %v3748, 0.0
      %v4506 = vsel %vm4470, %v3749, 0.0
      %v4507 = vsel %vm4471, %v3750, 0.0
      %v4508 = vsel %vm4472, %v3751, 0.0
      %v4509 = vsel %vm4473, %v3752, 0.0
      %v4510 = vsel %vm4474, %v3753, 0.0
      %v4511 = vsel %vm4475, %v3754, 0.0
      %v4512 = vsel %vm4476, %v3755, 0.0
      %v4513 = vsel %vm4477, %v3756, 0.0
      %v4514 = vsel %vm4478, %v3757, 0.0
      %v4515 = vsel %vm4479, %v3758, 0.0
      %v4516 = vsel %vm4480, %v3759, 0.0
      %v4517 = vsel %vm4481, %v3760, 0.0
      %v4518 = vsel %vm4482, %v3761, 0.0
      %v4519 = vsel %vm4483, %v3762, 0.0
      %v4520 = vsel %vm4484, %v3763, 0.0
      %v4521 = vsel %vm4485, %v3764, 0.0
      %v4522 = vsel %vm4486, %v3765, 0.0
      %v4523 = vsel %vm4487, %v3766, 0.0
      %v4524 = vsel %vm4488, %v3767, 0.0
      %v4525 = vsel %vm4489, %v3768, 0.0
      %v4526 = vsel %vm4490, %v3769, 0.0
      %v4527 = vsel %vm4491, %v3770, 0.0
      %v4528 = vsel %vm4492, %v3771, 0.0
      %v4529 = vsel %vm4493, %v3772, 0.0
      %v4530 = vsel %vm4494, %v3773, 0.0
      %v4531 = vsel %vm4495, %v3774, 0.0
      %v4532 = vsel %vm4496, %v3775, 0.0
      %v4533 = vsel %vm4497, %v3776, 0.0
      %v4534 = vsel %vm4498, %v3777, 0.0
      %v4535 = vsel %vm4499, %v3778, 0.0
      %v4536 = vsel %vm4500, %v3779, 0.0
      %v4537 = vsel %vm4501, %v3780, 0.0
      %v4538 = vsel %vm4502, %v3781, 0.0
      %v4539 = vadd.f32 %v4503, %v4504
      %v4540 = vadd.f32 %v4539, %v4505
      %v4541 = vadd.f32 %v4540, %v4506
      %v4542 = vadd.f32 %v4541, %v4507
      %v4543 = vadd.f32 %v4542, %v4508
      %v4544 = vadd.f32 %v4543, %v4509
      %v4545 = vadd.f32 %v4544, %v4510
      %v4546 = vadd.f32 %v4545, %v4511
      %v4547 = vadd.f32 %v4546, %v4512
      %v4548 = vadd.f32 %v4547, %v4513
      %v4549 = vadd.f32 %v4548, %v4514
      %v4550 = vadd.f32 %v4549, %v4515
      %v4551 = vadd.f32 %v4550, %v4516
      %v4552 = vadd.f32 %v4551, %v4517
      %v4553 = vadd.f32 %v4552, %v4518
      %v4554 = vadd.f32 %v4553, %v4519
      %v4555 = vadd.f32 %v4554, %v4520
      %v4556 = vadd.f32 %v4555, %v4521
      %v4557 = vadd.f32 %v4556, %v4522
      %v4558 = vadd.f32 %v4557, %v4523
      %v4559 = vadd.f32 %v4558, %v4524
      %v4560 = vadd.f32 %v4559, %v4525
      %v4561 = vadd.f32 %v4560, %v4526
      %v4562 = vadd.f32 %v4561, %v4527
      %v4563 = vadd.f32 %v4562, %v4528
      %v4564 = vadd.f32 %v4563, %v4529
      %v4565 = vadd.f32 %v4564, %v4530
      %v4566 = vadd.f32 %v4565, %v4531
      %v4567 = vadd.f32 %v4566, %v4532
      %v4568 = vadd.f32 %v4567, %v4533
      %v4569 = vadd.f32 %v4568, %v4534
      %v4570 = vadd.f32 %v4569, %v4535
      %v4571 = vadd.f32 %v4570, %v4536
      %v4572 = vadd.f32 %v4571, %v4537
      %v4573 = vadd.f32 %v4572, %v4538
      %v4574 = vrot.slane %v4573, 4
      %v4575 = vadd.f32 %v4573, %v4574
      %v4576 = vrot.slane %v4575, 2
      %v4577 = vadd.f32 %v4575, %v4576
      %v4578 = vrot.slane %v4577, 1
      %v4579 = vadd.f32 %v4577, %v4578
      %v4580 = vmul.f32 %v4579, 0.00390625
      %4581 = vst [vmem:[%s166] sm:$0x1] %v4580
      %p4582 = scmp.lt.s32.totalorder %s14, 3
      %s4583 = scalar_select %p4582, %s14, 3
      %s4584 = scalar_lea.vmem %s3, %s4583
      // Predicated region
      $region33: #{simclr_forward.2} parent=31 // pred_check
        %p4585 = pneg %p100
      $region34: #{simclr_forward.2} parent=31 // pred_check_branch
        %4587 = sbr.rel (%p4585) target = $region36
      $region35: #{simclr_forward.2} parent=31 // pred_region
        _
      $region36: #{simclr_forward.2} parent=31 // pred_fallthru
        _
    $region32: #{simclr_forward.2} parent=5 // pred_fallthru
      _
    %p4588 = scmp.le.s32.totalorder 2, %s9
    // Predicated region
    $region37: #{simclr_forward.2} parent=5 // pred_check
      %p4589 = pneg %p4588
    $region38: #{simclr_forward.2} parent=5 // pred_check_branch
      %4591 = sbr.rel (%p4589) target = $region40
    $region39: #{simclr_forward.2} parent=5 // pred_region
      %s4592 = ssub.s32 %s9, 2
      // Predicated region
      $region41: #{simclr_forward.2} parent=39 // pred_check
        %p4593 = pneg %p106
      $region42: #{simclr_forward.2} parent=39 // pred_check_branch
        %4595 = sbr.rel (%p4593) target = $region44
      $region43: #{simclr_forward.2} parent=39 // pred_region
        %p4596 = scmp.lt.s32.totalorder %s15, 3
        %s4597 = scalar_select %p4596, %s15, 3
        %s4598 = scalar_lea.vmem %s3, %s4597
      $region44: #{simclr_forward.2} parent=39 // pred_fallthru
        _
    $region40: #{simclr_forward.2} parent=5 // pred_fallthru
      _
  $region6: #{simclr_forward.2} parent=0 // loop_footer
    %s13 = sadd.s32 1, %s9
  $region7: #{simclr_forward.2} parent=0 // loop_footer_branch
    %8 = sbr.rel target = $region3
  $region8: #{simclr_forward.2} parent=0 // loop_exit
    _

</llo_original>
